<compile_context>
chip_gen: v7x
topology: tpu7x:2x2x1
jax: 0.10.0
libtpu: 0.0.40
codegen_flags: <defaults>
</compile_context>

<pallas_src>
import functools

import jax
import jax.numpy as jnp
from jax.experimental import pallas as pl
from jax.experimental.pallas import tpu as pltpu


# --------------------------------------------------------------------------- #
# Helpers
# --------------------------------------------------------------------------- #

def _pick_row_tile(m, target=1024):
    """Largest row tile <= target that divides m and is a multiple of 8,
    preferring a grid of >= 2 tiles (both v7x TensorCores get work).
    Falls back to a single full tile -- no padding copies are ever made."""
    for t in range(min(target, m), 0, -1):
        if m % t == 0 and t % 8 == 0 and m // t >= 2:
            return t
    return m


def _vmem_limit_bytes(working_bytes):
    """Working-set estimate (double-buffer already counted) + headroom,
    clamped so it stays valid on v7x (64 MiB physical VMEM)."""
    return int(min(max(4 * working_bytes, 16 * 2 ** 20), 48 * 2 ** 20))


def bn_fold(conv_bias, gamma, beta, mean, var, eps=1e-5):
    scale = gamma / jnp.sqrt(var + eps)
    shift = (conv_bias - mean) * scale + beta
    return scale, shift


# --------------------------------------------------------------------------- #
# Pallas kernels
# --------------------------------------------------------------------------- #

def _fused_convt_bn_kernel(p_ref, w_ref, shift_ref, floor_ref, o_ref):
    """(TM, 9*Cin) @ (9*Cin, 8*Cout): sub-pixel ConvT for both paths at once.

    BN scale is pre-folded into the weight columns; the epilogue adds the BN
    shift and applies ReLU only to the main-path columns via a per-column
    lower bound (0 for main columns, -1e30 for residual columns)."""
    acc = jnp.dot(p_ref[...], w_ref[...], preferred_element_type=jnp.float32)
    y = jnp.maximum(acc + shift_ref[...], floor_ref[...])
    o_ref[...] = y.astype(o_ref.dtype)


def fused_convt_bn(patches, w_fused, shift, floor):
    m, k = patches.shape
    nc = w_fused.shape[1]
    tm = _pick_row_tile(m)
    working = 4 * (2 * tm * k + k * nc + 2 * nc + 2 * tm * nc)
    return pl.pallas_call(
        _fused_convt_bn_kernel,
        out_shape=jax.ShapeDtypeStruct((m, nc), jnp.float32),
        grid_spec=pltpu.PrefetchScalarGridSpec(
            num_scalar_prefetch=0,
            grid=(m // tm,),
            in_specs=[
                pl.BlockSpec((tm, k), lambda i: (i, 0)),
                pl.BlockSpec((k, nc), lambda i: (0, 0)),
                pl.BlockSpec((1, nc), lambda i: (0, 0)),
                pl.BlockSpec((1, nc), lambda i: (0, 0)),
            ],
            out_specs=pl.BlockSpec((tm, nc), lambda i: (i, 0)),
        ),
        compiler_params=pltpu.CompilerParams(
            dimension_semantics=("parallel",),
            vmem_limit_bytes=_vmem_limit_bytes(working),
        ),
    )(patches, w_fused, shift, floor)


def _conv3_bn_add_relu_kernel(h_ref, w_ref, shift_ref, res_ref, o_ref, *,
                              h2, wwp, c):
    """3x3 conv (pad 1) + BN2 shift + residual add + final ReLU, one image.

    h_ref   : (C, P)     channel-first, spatially padded & flattened features
    w_ref   : (9, C, C)  per-tap (Cout, Cin) weights, BN2 scale pre-folded
    res_ref : (C, M2)    residual (already BN'd), width-padded & flattened
    o_ref   : (C, M2)    lane-dense output, M2 = H2*(W2+2); the two junk
                         columns per row are sliced off by the wrapper."""
    m2 = h2 * wwp
    acc = jnp.zeros((c, m2), jnp.float32)
    for di in range(3):
        for dj in range(3):
            off = di * wwp + dj
            acc = acc + jnp.dot(w_ref[di * 3 + dj],
                                h_ref[:, off:off + m2],
                                preferred_element_type=jnp.float32)
    y = acc + shift_ref[...] + res_ref[...]
    o_ref[...] = jnp.maximum(y, 0.0).astype(o_ref.dtype)


def conv3_bn_add_relu(h_flat, w_taps, shift, res_flat, *, h2, wwp):
    n, c, p = h_flat.shape
    m2 = h2 * wwp
    working = 4 * (2 * (c * p + 2 * c * m2) + 9 * c * c + c + c * m2)
    kernel = functools.partial(_conv3_bn_add_relu_kernel, h2=h2, wwp=wwp, c=c)
    return pl.pallas_call(
        kernel,
        out_shape=jax.ShapeDtypeStruct((n, c, m2), jnp.float32),
        grid_spec=pltpu.PrefetchScalarGridSpec(
            num_scalar_prefetch=0,
            grid=(n,),
            in_specs=[
                pl.BlockSpec((None, c, p), lambda i: (i, 0, 0)),
                pl.BlockSpec((9, c, c), lambda i: (0, 0, 0)),
                pl.BlockSpec((c, 1), lambda i: (0, 0)),
                pl.BlockSpec((None, c, m2), lambda i: (i, 0, 0)),
            ],
            out_specs=pl.BlockSpec((None, c, m2), lambda i: (i, 0, 0)),
        ),
        compiler_params=pltpu.CompilerParams(
            dimension_semantics=("parallel",),
            vmem_limit_bytes=_vmem_limit_bytes(working),
        ),
    )(h_flat, w_taps, shift, res_flat)


# --------------------------------------------------------------------------- #
# Weight lowering (sub-pixel ConvTranspose)
# --------------------------------------------------------------------------- #

def convt_subpixel_weight(w_iohw):
    """ConvTranspose2d(4,4,s=2,p=1) weight (Cin,Cout,4,4) -> sub-pixel matrix.

    Returns (9*Cin, 4*Cout): rows follow the 3x3 im2col of the LOW-res input
    (tap order (di, dj), channel fastest); columns are (phase(pi,pj), Cout).
    Output pixel (2a+pi, 2b+pj) = patches[a, b] @ W[:, phase]."""
    cin, cout = w_iohw.shape[:2]
    wm = jnp.zeros((9 * cin, 4 * cout), jnp.float32)
    for pi in range(2):
        for pj in range(2):
            col = (pi * 2 + pj) * cout
            for di in (pi, pi + 1):      # input-row offset (di - 1) in {pi-1, pi}
                for dj in (pj, pj + 1):
                    kh = pi + 3 - 2 * di  # transposed-conv tap hit by this phase
                    kw = pj + 3 - 2 * dj
                    row = (di * 3 + dj) * cin
                    wm = wm.at[row:row + cin, col:col + cout].set(
                        w_iohw[:, :, kh, kw].astype(jnp.float32))
    return wm


# --------------------------------------------------------------------------- #
# Forward pass
# --------------------------------------------------------------------------- #

def residual_upsample_block(x_nchw, params):
    """ResidualUpsampleBlock(in_ch, out_ch, upsample=True) forward, eval mode."""
    x = x_nchw.astype(jnp.float32)
    n, cin, hh, ww = x.shape
    cout = params["ct_main_w"].shape[1]
    h2, w2 = 2 * hh, 2 * ww

    # ---------------- Stage 1: fused ConvT(main) + ConvT(residual) -----------
    # 3x3 im2col of the LOW-res input (9*Cin columns), read once for both paths.
    x_nhwc = jnp.transpose(x, (0, 2, 3, 1))
    xp = jnp.pad(x_nhwc, ((0, 0), (1, 1), (1, 1), (0, 0)))
    cols = [xp[:, di:di + hh, dj:dj + ww, :] for di in range(3) for dj in range(3)]
    patches = jnp.concatenate(cols, axis=-1).reshape(n * hh * ww, 9 * cin)

    s1, sh1 = bn_fold(params["ct_main_b"], params["bn1_g"], params["bn1_b"],
                      params["bn1_m"], params["bn1_v"])
    sr, shr = bn_fold(params["ct_res_b"], params["bnr_g"], params["bnr_b"],
                      params["bnr_m"], params["bnr_v"])
    wm = convt_subpixel_weight(params["ct_main_w"]) * jnp.tile(s1, 4)[None, :]
    wr = convt_subpixel_weight(params["ct_res_w"]) * jnp.tile(sr, 4)[None, :]
    # Fused column order: (phase(4), path(2), Cout)
    w_fused = jnp.stack([wm.reshape(9 * cin, 4, cout),
                         wr.reshape(9 * cin, 4, cout)],
                        axis=2).reshape(9 * cin, 8 * cout).astype(jnp.float32)
    shift_f = jnp.stack([jnp.broadcast_to(sh1, (4, cout)),
                         jnp.broadcast_to(shr, (4, cout))],
                        axis=1).reshape(1, 8 * cout).astype(jnp.float32)
    floor_f = jnp.stack([jnp.zeros((4, cout), jnp.float32),          # main: ReLU
                         jnp.full((4, cout), -1e30, jnp.float32)],   # res: none
                        axis=1).reshape(1, 8 * cout)

    y1 = fused_convt_bn(patches, w_fused, shift_f, floor_f)    # (N*H*W, 8*Cout)

    # Pixel-shuffle the 4 phases onto the 2x grid, split main/residual, and go
    # channel-first so stage 2 produces lane-dense NCHW output directly.
    y1 = y1.reshape(n, hh, ww, 2, 2, 2, cout)           # (n, a, b, pi, pj, path, co)
    y1 = jnp.transpose(y1, (0, 5, 6, 1, 3, 2, 4))       # (n, path, co, a, pi, b, pj)
    y1 = y1.reshape(n, 2, cout, h2, w2)
    h_main = y1[:, 0]                                   # post BN1 + ReLU
    res = y1[:, 1]                                      # post BNr

    # ---------------- Stage 2: Conv3x3 + BN2 + add + ReLU --------------------
    wwp = w2 + 2                                        # padded row width
    h_pad = jnp.pad(h_main, ((0, 0), (0, 0), (1, 2), (1, 1)))   # (n,c,h2+3,w2+2)
    h_flat = h_pad.reshape(n, cout, (h2 + 3) * wwp)
    res_flat = jnp.pad(res, ((0, 0), (0, 0), (0, 0), (0, 2))
                       ).reshape(n, cout, h2 * wwp)

    s2, sh2 = bn_fold(params["conv2_b"], params["bn2_g"], params["bn2_b"],
                      params["bn2_m"], params["bn2_v"])
    w_taps = jnp.transpose(params["conv2_w"], (2, 3, 0, 1))     # (3,3,co,ci)
    w_taps = (w_taps * s2[None, None, :, None]
              ).reshape(9, cout, cout).astype(jnp.float32)

    out_flat = conv3_bn_add_relu(h_flat, w_taps,
                                 sh2.reshape(cout, 1).astype(jnp.float32),
                                 res_flat, h2=h2, wwp=wwp)      # (n, c, h2*wwp)
    out = out_flat.reshape(n, cout, h2, wwp)[:, :, :, :w2]      # drop junk cols
    return out                                                  # already NCHW


# --------------------------------------------------------------------------- #
# Reference (independent lowering via lax convs, PyTorch conventions)
# --------------------------------------------------------------------------- #

def _reference(x_nchw, params, eps=1e-5):
    x = x_nchw.astype(jnp.float32)
    hi = jax.lax.Precision.HIGHEST

    def conv_t(inp, w, b):  # w: (Cin, Cout, 4, 4) -- PyTorch ConvTranspose2d layout
        w_conv = jnp.transpose(w[:, :, ::-1, ::-1], (1, 0, 2, 3))
        y = jax.lax.conv_general_dilated(
            inp, w_conv, window_strides=(1, 1), padding=((2, 2), (2, 2)),
            lhs_dilation=(2, 2), dimension_numbers=("NCHW", "OIHW", "NCHW"),
            precision=hi)
        return y + b[None, :, None, None]

    def conv3(inp, w, b):
        y = jax.lax.conv_general_dilated(
            inp, w, window_strides=(1, 1), padding=((1, 1), (1, 1)),
            dimension_numbers=("NCHW", "OIHW", "NCHW"), precision=hi)
        return y + b[None, :, None, None]

    def bn(inp, g, be, m, v):
        inv = g / jnp.sqrt(v + eps)
        return ((inp - m[None, :, None, None]) * inv[None, :, None, None]
                + be[None, :, None, None])

    h = jax.nn.relu(bn(conv_t(x, params["ct_main_w"], params["ct_main_b"]),
                       params["bn1_g"], params["bn1_b"],
                       params["bn1_m"], params["bn1_v"]))
    main = bn(conv3(h, params["conv2_w"], params["conv2_b"]),
              params["bn2_g"], params["bn2_b"], params["bn2_m"], params["bn2_v"])
    res = bn(conv_t(x, params["ct_res_w"], params["ct_res_b"]),
             params["bnr_g"], params["bnr_b"], params["bnr_m"], params["bnr_v"])
    return jax.nn.relu(main + res)


# --------------------------------------------------------------------------- #
# Parameters & test
# --------------------------------------------------------------------------- #

def init_params(key, in_channels, out_channels):
    ks = jax.random.split(key, 8)
    return {
        # main path
        "ct_main_w": jax.random.normal(ks[0], (in_channels, out_channels, 4, 4)) * 0.1,
        "ct_main_b": jax.random.normal(ks[1], (out_channels,)) * 0.1,
        "bn1_g": jnp.ones((out_channels,)) * 1.1,
        "bn1_b": jnp.ones((out_channels,)) * 0.05,
        "bn1_m": jax.random.normal(ks[2], (out_channels,)) * 0.1,
        "bn1_v": jnp.abs(jax.random.normal(ks[3], (out_channels,))) + 0.5,
        "conv2_w": jax.random.normal(ks[4], (out_channels, out_channels, 3, 3)) * 0.1,
        "conv2_b": jax.random.normal(ks[5], (out_channels,)) * 0.1,
        "bn2_g": jnp.ones((out_channels,)) * 0.9,
        "bn2_b": jnp.ones((out_channels,)) * -0.02,
        "bn2_m": jax.random.normal(ks[6], (out_channels,)) * 0.1,
        "bn2_v": jnp.abs(jax.random.normal(ks[7], (out_channels,))) + 0.5,
        # residual path
        "ct_res_w": jax.random.normal(jax.random.fold_in(key, 100),
                                      (in_channels, out_channels, 4, 4)) * 0.1,
        "ct_res_b": jax.random.normal(jax.random.fold_in(key, 101),
                                      (out_channels,)) * 0.1,
        "bnr_g": jnp.ones((out_channels,)) * 1.05,
        "bnr_b": jnp.ones((out_channels,)) * 0.01,
        "bnr_m": jax.random.normal(jax.random.fold_in(key, 102),
                                   (out_channels,)) * 0.1,
        "bnr_v": jnp.abs(jax.random.normal(jax.random.fold_in(key, 103),
                                           (out_channels,))) + 0.5,
    }


if __name__ == "__main__":
    key = jax.random.PRNGKey(0)
    in_channels, out_channels = 4, 8
    x = jax.random.normal(jax.random.fold_in(key, 7),
                          (2, in_channels, 16, 16), dtype=jnp.float32)   # NCHW
    params = init_params(key, in_channels, out_channels)

    fwd = jax.jit(residual_upsample_block)
    y = jax.block_until_ready(fwd(x, params))
    assert y.shape == (2, out_channels, 32, 32), y.shape

    y_ref = jax.block_until_ready(jax.jit(_reference)(x, params))
    max_err = float(jnp.max(jnp.abs(y - y_ref)))
    assert jnp.allclose(y, y_ref, atol=1e-3, rtol=1e-3), max_err

    print("KERNEL_OK")
</pallas_src>

<mosaic_0001>
module attributes {stable_mosaic.version = 11 : i64} {
  func.func @_fused_convt_bn_kernel(%arg0: i32, %arg1: memref<256x36xf32, #tpu.memory_space<vmem>>, %arg2: memref<36x64xf32, #tpu.memory_space<vmem>>, %arg3: memref<1x64xf32, #tpu.memory_space<vmem>>, %arg4: memref<1x64xf32, #tpu.memory_space<vmem>>, %arg5: memref<256x64xf32, #tpu.memory_space<vmem>>) attributes {dimension_semantics = [#tpu.dimension_semantics<parallel>], iteration_bounds = array<i64: 2>, scalar_prefetch = 0 : i64, scratch_operands = 0 : i64, tpu.core_type = #tpu.core_type<tc>, window_params = [{transform_indices = @transform_0, window_bounds = array<i64: 256, 36>}, {pipeline_mode = #tpu.pipeline_mode<synchronous>, transform_indices = @transform_1, window_bounds = array<i64: 36, 64>}, {pipeline_mode = #tpu.pipeline_mode<synchronous>, transform_indices = @transform_2, window_bounds = array<i64: 1, 64>}, {pipeline_mode = #tpu.pipeline_mode<synchronous>, transform_indices = @transform_3, window_bounds = array<i64: 1, 64>}, {transform_indices = @transform_4, window_bounds = array<i64: 256, 64>}]} {
    %c0 = arith.constant 0 : index
    %c0_0 = arith.constant 0 : index
    %0 = vector.load %arg1[%c0, %c0_0] : memref<256x36xf32, #tpu.memory_space<vmem>>, vector<256x36xf32>
    %c0_1 = arith.constant 0 : index
    %c0_2 = arith.constant 0 : index
    %1 = vector.load %arg2[%c0_1, %c0_2] : memref<36x64xf32, #tpu.memory_space<vmem>>, vector<36x64xf32>
    %cst = arith.constant dense<0.000000e+00> : vector<256x64xf32>
    %2 = tpu.matmul %0, %1, %cst {dimension_numbers = #tpu.dot_dimension_numbers<[1], [0], [0], [1], [0, 0, 1, 1], [], []>} : vector<256x36xf32>, vector<36x64xf32>, vector<256x64xf32> -> vector<256x64xf32>
    %c0_3 = arith.constant 0 : index
    %c0_4 = arith.constant 0 : index
    %3 = vector.load %arg3[%c0_3, %c0_4] : memref<1x64xf32, #tpu.memory_space<vmem>>, vector<1x64xf32>
    %4 = vector.broadcast %3 : vector<1x64xf32> to vector<256x64xf32>
    %5 = arith.addf %2, %4 : vector<256x64xf32>
    %c0_5 = arith.constant 0 : index
    %c0_6 = arith.constant 0 : index
    %6 = vector.load %arg4[%c0_5, %c0_6] : memref<1x64xf32, #tpu.memory_space<vmem>>, vector<1x64xf32>
    %7 = vector.broadcast %6 : vector<1x64xf32> to vector<256x64xf32>
    %8 = arith.maximumf %5, %7 : vector<256x64xf32>
    %c0_7 = arith.constant 0 : index
    %c0_8 = arith.constant 0 : index
    %9 = vector.load %arg5[%c0_7, %c0_8] : memref<256x64xf32, #tpu.memory_space<vmem>>, vector<256x64xf32>
    tpu.vector_store %arg5[%c0_7, %c0_8], %8 {strides = array<i32>} : memref<256x64xf32, #tpu.memory_space<vmem>>, vector<256x64xf32>,
    return
  }
  func.func @transform_0(%arg0: i32) -> (i32, i32) {
    %c0_i32 = arith.constant 0 : i32
    %c0_i32_0 = arith.constant 0 : i32
    return %arg0, %c0_i32 : i32, i32
  }
  func.func @transform_1(%arg0: i32) -> (i32, i32) {
    %c0_i32 = arith.constant 0 : i32
    %c0_i32_0 = arith.constant 0 : i32
    %c0_i32_1 = arith.constant 0 : i32
    return %c0_i32, %c0_i32_0 : i32, i32
  }
  func.func @transform_2(%arg0: i32) -> (i32, i32) {
    %c0_i32 = arith.constant 0 : i32
    %c0_i32_0 = arith.constant 0 : i32
    %c0_i32_1 = arith.constant 0 : i32
    return %c0_i32, %c0_i32_0 : i32, i32
  }
  func.func @transform_3(%arg0: i32) -> (i32, i32) {
    %c0_i32 = arith.constant 0 : i32
    %c0_i32_0 = arith.constant 0 : i32
    %c0_i32_1 = arith.constant 0 : i32
    return %c0_i32, %c0_i32_0 : i32, i32
  }
  func.func @transform_4(%arg0: i32) -> (i32, i32) {
    %c0_i32 = arith.constant 0 : i32
    %c0_i32_0 = arith.constant 0 : i32
    return %arg0, %c0_i32 : i32, i32
  }
}

module attributes {stable_mosaic.version = 11 : i64} {
  func.func @_conv3_bn_add_relu_kernel(%arg0: i32, %arg1: memref<1x8x1190xf32, #tpu.memory_space<vmem>>, %arg2: memref<9x8x8xf32, #tpu.memory_space<vmem>>, %arg3: memref<8x1xf32, #tpu.memory_space<vmem>>, %arg4: memref<1x8x1088xf32, #tpu.memory_space<vmem>>, %arg5: memref<1x8x1088xf32, #tpu.memory_space<vmem>>) attributes {dimension_semantics = [#tpu.dimension_semantics<parallel>], iteration_bounds = array<i64: 2>, scalar_prefetch = 0 : i64, scratch_operands = 0 : i64, tpu.core_type = #tpu.core_type<tc>, window_params = [{transform_indices = @transform_0, window_bounds = array<i64: 1, 8, 1190>}, {pipeline_mode = #tpu.pipeline_mode<synchronous>, transform_indices = @transform_1, window_bounds = array<i64: 9, 8, 8>}, {pipeline_mode = #tpu.pipeline_mode<synchronous>, transform_indices = @transform_2, window_bounds = array<i64: 8, 1>}, {transform_indices = @transform_3, window_bounds = array<i64: 1, 8, 1088>}, {transform_indices = @transform_4, window_bounds = array<i64: 1, 8, 1088>}]} {
    %cst = arith.constant 0.000000e+00 : f32
    %0 = vector.broadcast %cst : f32 to vector<8x1088xf32>
    %c0 = arith.constant 0 : index
    %c0_0 = arith.constant 0 : index
    %c0_1 = arith.constant 0 : index
    %1 = vector.load %arg2[%c0, %c0_0, %c0_1] : memref<9x8x8xf32, #tpu.memory_space<vmem>>, vector<1x8x8xf32>
    %2 = vector.shape_cast %1 : vector<1x8x8xf32> to vector<8x8xf32>
    %c0_2 = arith.constant 0 : index
    %c0_3 = arith.constant 0 : index
    %c0_4 = arith.constant 0 : index
    %3 = vector.load %arg1[%c0_2, %c0_3, %c0_4] : memref<1x8x1190xf32, #tpu.memory_space<vmem>>, vector<1x8x1088xf32>
    %4 = vector.shape_cast %3 : vector<1x8x1088xf32> to vector<8x1088xf32>
    %cst_5 = arith.constant dense<0.000000e+00> : vector<8x1088xf32>
    %5 = tpu.matmul %2, %4, %cst_5 {dimension_numbers = #tpu.dot_dimension_numbers<[1], [0], [0], [1], [0, 0, 1, 1], [], []>} : vector<8x8xf32>, vector<8x1088xf32>, vector<8x1088xf32> -> vector<8x1088xf32>
    %6 = arith.addf %0, %5 : vector<8x1088xf32>
    %c1 = arith.constant 1 : index
    %c0_6 = arith.constant 0 : index
    %c0_7 = arith.constant 0 : index
    %7 = vector.load %arg2[%c1, %c0_6, %c0_7] : memref<9x8x8xf32, #tpu.memory_space<vmem>>, vector<1x8x8xf32>
    %8 = vector.shape_cast %7 : vector<1x8x8xf32> to vector<8x8xf32>
    %c0_8 = arith.constant 0 : index
    %c0_9 = arith.constant 0 : index
    %c1_10 = arith.constant 1 : index
    %9 = vector.load %arg1[%c0_8, %c0_9, %c1_10] : memref<1x8x1190xf32, #tpu.memory_space<vmem>>, vector<1x8x1088xf32>
    %10 = vector.shape_cast %9 : vector<1x8x1088xf32> to vector<8x1088xf32>
    %cst_11 = arith.constant dense<0.000000e+00> : vector<8x1088xf32>
    %11 = tpu.matmul %8, %10, %cst_11 {dimension_numbers = #tpu.dot_dimension_numbers<[1], [0], [0], [1], [0, 0, 1, 1], [], []>} : vector<8x8xf32>, vector<8x1088xf32>, vector<8x1088xf32> -> vector<8x1088xf32>
    %12 = arith.addf %6, %11 : vector<8x1088xf32>
    %c2 = arith.constant 2 : index
    %c0_12 = arith.constant 0 : index
    %c0_13 = arith.constant 0 : index
    %13 = vector.load %arg2[%c2, %c0_12, %c0_13] : memref<9x8x8xf32, #tpu.memory_space<vmem>>, vector<1x8x8xf32>
    %14 = vector.shape_cast %13 : vector<1x8x8xf32> to vector<8x8xf32>
    %c0_14 = arith.constant 0 : index
    %c0_15 = arith.constant 0 : index
    %c2_16 = arith.constant 2 : index
    %15 = vector.load %arg1[%c0_14, %c0_15, %c2_16] : memref<1x8x1190xf32, #tpu.memory_space<vmem>>, vector<1x8x1088xf32>
    %16 = vector.shape_cast %15 : vector<1x8x1088xf32> to vector<8x1088xf32>
    %cst_17 = arith.constant dense<0.000000e+00> : vector<8x1088xf32>
    %17 = tpu.matmul %14, %16, %cst_17 {dimension_numbers = #tpu.dot_dimension_numbers<[1], [0], [0], [1], [0, 0, 1, 1], [], []>} : vector<8x8xf32>, vector<8x1088xf32>, vector<8x1088xf32> -> vector<8x1088xf32>
    %18 = arith.addf %12, %17 : vector<8x1088xf32>
    %c3 = arith.constant 3 : index
    %c0_18 = arith.constant 0 : index
    %c0_19 = arith.constant 0 : index
    %19 = vector.load %arg2[%c3, %c0_18, %c0_19] : memref<9x8x8xf32, #tpu.memory_space<vmem>>, vector<1x8x8xf32>
    %20 = vector.shape_cast %19 : vector<1x8x8xf32> to vector<8x8xf32>
    %c0_20 = arith.constant 0 : index
    %c0_21 = arith.constant 0 : index
    %c34 = arith.constant 34 : index
    %21 = vector.load %arg1[%c0_20, %c0_21, %c34] : memref<1x8x1190xf32, #tpu.memory_space<vmem>>, vector<1x8x1088xf32>
    %22 = vector.shape_cast %21 : vector<1x8x1088xf32> to vector<8x1088xf32>
    %cst_22 = arith.constant dense<0.000000e+00> : vector<8x1088xf32>
    %23 = tpu.matmul %20, %22, %cst_22 {dimension_numbers = #tpu.dot_dimension_numbers<[1], [0], [0], [1], [0, 0, 1, 1], [], []>} : vector<8x8xf32>, vector<8x1088xf32>, vector<8x1088xf32> -> vector<8x1088xf32>
    %24 = arith.addf %18, %23 : vector<8x1088xf32>
    %c4 = arith.constant 4 : index
    %c0_23 = arith.constant 0 : index
    %c0_24 = arith.constant 0 : index
    %25 = vector.load %arg2[%c4, %c0_23, %c0_24] : memref<9x8x8xf32, #tpu.memory_space<vmem>>, vector<1x8x8xf32>
    %26 = vector.shape_cast %25 : vector<1x8x8xf32> to vector<8x8xf32>
    %c0_25 = arith.constant 0 : index
    %c0_26 = arith.constant 0 : index
    %c35 = arith.constant 35 : index
    %27 = vector.load %arg1[%c0_25, %c0_26, %c35] : memref<1x8x1190xf32, #tpu.memory_space<vmem>>, vector<1x8x1088xf32>
    %28 = vector.shape_cast %27 : vector<1x8x1088xf32> to vector<8x1088xf32>
    %cst_27 = arith.constant dense<0.000000e+00> : vector<8x1088xf32>
    %29 = tpu.matmul %26, %28, %cst_27 {dimension_numbers = #tpu.dot_dimension_numbers<[1], [0], [0], [1], [0, 0, 1, 1], [], []>} : vector<8x8xf32>, vector<8x1088xf32>, vector<8x1088xf32> -> vector<8x1088xf32>
    %30 = arith.addf %24, %29 : vector<8x1088xf32>
    %c5 = arith.constant 5 : index
    %c0_28 = arith.constant 0 : index
    %c0_29 = arith.constant 0 : index
    %31 = vector.load %arg2[%c5, %c0_28, %c0_29] : memref<9x8x8xf32, #tpu.memory_space<vmem>>, vector<1x8x8xf32>
    %32 = vector.shape_cast %31 : vector<1x8x8xf32> to vector<8x8xf32>
    %c0_30 = arith.constant 0 : index
    %c0_31 = arith.constant 0 : index
    %c36 = arith.constant 36 : index
    %33 = vector.load %arg1[%c0_30, %c0_31, %c36] : memref<1x8x1190xf32, #tpu.memory_space<vmem>>, vector<1x8x1088xf32>
    %34 = vector.shape_cast %33 : vector<1x8x1088xf32> to vector<8x1088xf32>
    %cst_32 = arith.constant dense<0.000000e+00> : vector<8x1088xf32>
    %35 = tpu.matmul %32, %34, %cst_32 {dimension_numbers = #tpu.dot_dimension_numbers<[1], [0], [0], [1], [0, 0, 1, 1], [], []>} : vector<8x8xf32>, vector<8x1088xf32>, vector<8x1088xf32> -> vector<8x1088xf32>
    %36 = arith.addf %30, %35 : vector<8x1088xf32>
    %c6 = arith.constant 6 : index
    %c0_33 = arith.constant 0 : index
    %c0_34 = arith.constant 0 : index
    %37 = vector.load %arg2[%c6, %c0_33, %c0_34] : memref<9x8x8xf32, #tpu.memory_space<vmem>>, vector<1x8x8xf32>
    %38 = vector.shape_cast %37 : vector<1x8x8xf32> to vector<8x8xf32>
    %c0_35 = arith.constant 0 : index
    %c0_36 = arith.constant 0 : index
    %c68 = arith.constant 68 : index
    %39 = vector.load %arg1[%c0_35, %c0_36, %c68] : memref<1x8x1190xf32, #tpu.memory_space<vmem>>, vector<1x8x1088xf32>
    %40 = vector.shape_cast %39 : vector<1x8x1088xf32> to vector<8x1088xf32>
    %cst_37 = arith.constant dense<0.000000e+00> : vector<8x1088xf32>
    %41 = tpu.matmul %38, %40, %cst_37 {dimension_numbers = #tpu.dot_dimension_numbers<[1], [0], [0], [1], [0, 0, 1, 1], [], []>} : vector<8x8xf32>, vector<8x1088xf32>, vector<8x1088xf32> -> vector<8x1088xf32>
    %42 = arith.addf %36, %41 : vector<8x1088xf32>
    %c7 = arith.constant 7 : index
    %c0_38 = arith.constant 0 : index
    %c0_39 = arith.constant 0 : index
    %43 = vector.load %arg2[%c7, %c0_38, %c0_39] : memref<9x8x8xf32, #tpu.memory_space<vmem>>, vector<1x8x8xf32>
    %44 = vector.shape_cast %43 : vector<1x8x8xf32> to vector<8x8xf32>
    %c0_40 = arith.constant 0 : index
    %c0_41 = arith.constant 0 : index
    %c69 = arith.constant 69 : index
    %45 = vector.load %arg1[%c0_40, %c0_41, %c69] : memref<1x8x1190xf32, #tpu.memory_space<vmem>>, vector<1x8x1088xf32>
    %46 = vector.shape_cast %45 : vector<1x8x1088xf32> to vector<8x1088xf32>
    %cst_42 = arith.constant dense<0.000000e+00> : vector<8x1088xf32>
    %47 = tpu.matmul %44, %46, %cst_42 {dimension_numbers = #tpu.dot_dimension_numbers<[1], [0], [0], [1], [0, 0, 1, 1], [], []>} : vector<8x8xf32>, vector<8x1088xf32>, vector<8x1088xf32> -> vector<8x1088xf32>
    %48 = arith.addf %42, %47 : vector<8x1088xf32>
    %c8 = arith.constant 8 : index
    %c0_43 = arith.constant 0 : index
    %c0_44 = arith.constant 0 : index
    %49 = vector.load %arg2[%c8, %c0_43, %c0_44] : memref<9x8x8xf32, #tpu.memory_space<vmem>>, vector<1x8x8xf32>
    %50 = vector.shape_cast %49 : vector<1x8x8xf32> to vector<8x8xf32>
    %c0_45 = arith.constant 0 : index
    %c0_46 = arith.constant 0 : index
    %c70 = arith.constant 70 : index
    %51 = vector.load %arg1[%c0_45, %c0_46, %c70] : memref<1x8x1190xf32, #tpu.memory_space<vmem>>, vector<1x8x1088xf32>
    %52 = vector.shape_cast %51 : vector<1x8x1088xf32> to vector<8x1088xf32>
    %cst_47 = arith.constant dense<0.000000e+00> : vector<8x1088xf32>
    %53 = tpu.matmul %50, %52, %cst_47 {dimension_numbers = #tpu.dot_dimension_numbers<[1], [0], [0], [1], [0, 0, 1, 1], [], []>} : vector<8x8xf32>, vector<8x1088xf32>, vector<8x1088xf32> -> vector<8x1088xf32>
    %54 = arith.addf %48, %53 : vector<8x1088xf32>
    %c0_48 = arith.constant 0 : index
    %c0_49 = arith.constant 0 : index
    %55 = vector.load %arg3[%c0_48, %c0_49] : memref<8x1xf32, #tpu.memory_space<vmem>>, vector<8x1xf32>
    %56 = vector.broadcast %55 : vector<8x1xf32> to vector<8x1088xf32>
    %57 = arith.addf %54, %56 : vector<8x1088xf32>
    %c0_50 = arith.constant 0 : index
    %c0_51 = arith.constant 0 : index
    %c0_52 = arith.constant 0 : index
    %58 = vector.load %arg4[%c0_50, %c0_51, %c0_52] : memref<1x8x1088xf32, #tpu.memory_space<vmem>>, vector<1x8x1088xf32>
    %59 = vector.shape_cast %58 : vector<1x8x1088xf32> to vector<8x1088xf32>
    %60 = arith.addf %57, %59 : vector<8x1088xf32>
    %cst_53 = arith.constant 0.000000e+00 : f32
    %61 = vector.broadcast %cst_53 : f32 to vector<8x1088xf32>
    %62 = arith.maximumf %60, %61 : vector<8x1088xf32>
    %c0_54 = arith.constant 0 : index
    %c0_55 = arith.constant 0 : index
    %c0_56 = arith.constant 0 : index
    %63 = vector.load %arg5[%c0_54, %c0_55, %c0_56] : memref<1x8x1088xf32, #tpu.memory_space<vmem>>, vector<1x8x1088xf32>
    %64 = vector.shape_cast %63 : vector<1x8x1088xf32> to vector<8x1088xf32>
    %65 = vector.shape_cast %62 : vector<8x1088xf32> to vector<1x8x1088xf32>
    tpu.vector_store %arg5[%c0_54, %c0_55, %c0_56], %65 {strides = array<i32>} : memref<1x8x1088xf32, #tpu.memory_space<vmem>>, vector<1x8x1088xf32>,
    return
  }
  func.func @transform_0(%arg0: i32) -> (i32, i32, i32) {
    %c0_i32 = arith.constant 0 : i32
    %c0_i32_0 = arith.constant 0 : i32
    %c0_i32_1 = arith.constant 0 : i32
    return %arg0, %c0_i32, %c0_i32_0 : i32, i32, i32
  }
  func.func @transform_1(%arg0: i32) -> (i32, i32, i32) {
    %c0_i32 = arith.constant 0 : i32
    %c0_i32_0 = arith.constant 0 : i32
    %c0_i32_1 = arith.constant 0 : i32
    %c0_i32_2 = arith.constant 0 : i32
    return %c0_i32, %c0_i32_0, %c0_i32_1 : i32, i32, i32
  }
  func.func @transform_2(%arg0: i32) -> (i32, i32) {
    %c0_i32 = arith.constant 0 : i32
    %c0_i32_0 = arith.constant 0 : i32
    %c0_i32_1 = arith.constant 0 : i32
    return %c0_i32, %c0_i32_0 : i32, i32
  }
  func.func @transform_3(%arg0: i32) -> (i32, i32, i32) {
    %c0_i32 = arith.constant 0 : i32
    %c0_i32_0 = arith.constant 0 : i32
    %c0_i32_1 = arith.constant 0 : i32
    return %arg0, %c0_i32, %c0_i32_0 : i32, i32, i32
  }
  func.func @transform_4(%arg0: i32) -> (i32, i32, i32) {
    %c0_i32 = arith.constant 0 : i32
    %c0_i32_0 = arith.constant 0 : i32
    %c0_i32_1 = arith.constant 0 : i32
    return %arg0, %c0_i32, %c0_i32_0 : i32, i32, i32
  }
}

</mosaic_0001>

<llo_original>
// kernel: tile.13
$region0: #{tile.13}
  #allocation0 [shape = 's32[1]{0}', space=sflag, size = 0x4, scoped, tag = 'scoped memory for tile.13']
  %s0 = inlined_call_operand.vmem [shape: f32[8], index: 0, kind: input, shape index: {}]
  %s1 = inlined_call_operand.vmem [shape: f32[4,8], index: 1, kind: output, shape index: {}]
  // Predicated region
  $region2: #{tile.13} parent=0 // pred_check
    _
  $region3: #{tile.13} parent=0 // pred_check_branch
    %3 = sbr.rel (0) target = $region5
  $region4: #{tile.13} parent=0 // pred_region
    _
  $region5: #{tile.13} parent=0 // pred_fallthru
    _
  %v4 = vld [vmem:[%s0] ss:$0 sm:$0xff]
  %5 = vst [vmem:[%s1] sm:$0xf] %v4

// kernel: mul.18
$region0: #{mul.18}
  %s0 = inlined_call_operand.vmem [shape: f32[4,8], index: 0, kind: input, shape index: {}]
  %s1 = inlined_call_operand.vmem [shape: f32[32], index: 1, kind: output, shape index: {}]
  $region1: #{mul.18} parent=0
    #allocation0 [shape = 'u8[4096]{0}', space=vmem, size = 0x1000, scoped, tag = 'scoped mem for output reshape']
    #allocation1 [shape = 'u8[4096]{0}', space=vmem, size = 0x1000, scoped, tag = 'scoped mem for input reshape']
    %s3 = sshllo.u32 0, 4
    %v4 = vld [vmem:[%s0] sm:%s3]
    %5 = vst [vmem:[#allocation1] sm:%s3] %v4
    %v6 = vld [vmem:[#allocation1] sm:$0x1]
    %vm7 = vcmask 64512
    %8 = vst.msk [vmem:[#allocation0] sm:$0x1] %vm7, %v6
    %s9 = scalar_lea.vmem [#allocation1], 3
    %v10 = vld [vmem:[%s9] sm:$0x1]
    %11 = vrot.lane.b32.xlu0 %v10, 24
    %v12 = vpop.permute.xlu0 %11
    %vm13 = vcmask 261312
    %14 = vst.msk [vmem:[#allocation0] sm:$0x1] %vm13, %v12
    %s15 = scalar_lea.vmem [#allocation1], 2
    %v16 = vld [vmem:[%s15] sm:$0x1]
    %17 = vrot.lane.b32.xlu0 %v16, 16
    %v18 = vpop.permute.xlu0 %17
    %vm19 = vcmask 195712
    %20 = vst.msk [vmem:[#allocation0] sm:$0x1] %vm19, %v18
    %s21 = scalar_lea.vmem [#allocation1], 1
    %v22 = vld [vmem:[%s21] sm:$0x1]
    %23 = vrot.lane.b32.xlu0 %v22, 8
    %v24 = vpop.permute.xlu0 %23
    %vm25 = vcmask 130112
    %26 = vst.msk [vmem:[#allocation0] sm:$0x1] %vm25, %v24
    %s28 = sshllo.u32 0, 1
    %v30 = vld [vmem:[#allocation0] sm:%s28]
    %s31 = sshllo.u32 0, 1
    %32 = vst [vmem:[%s1] sm:%s31] %v30

// kernel: residual_upsample_block.2
$region0: #{residual_upsample_block.2}
  #allocation0 [shape = 'u32[]', space=smem, size = 0x4, offset = 0x4, fixed_abs, tag = 'smem constant byte address 0x4 - core index']
  #allocation1 [shape = 'u32[144,128]{1,0:T(1,128)}', space=vmem, size = 0x12000, scoped, tag = 'internal scratch']
  %s0 = inlined_call_operand.vmem [shape: f32[512,36], index: 0, kind: input, shape index: {}]
  %s1 = inlined_call_operand.vmem [shape: f32[36,64], index: 1, kind: input, shape index: {}]
  %s2 = inlined_call_operand.vmem [shape: f32[1,64], index: 2, kind: input, shape index: {}]
  %s3 = inlined_call_operand.vmem [shape: f32[1,64], index: 3, kind: input, shape index: {}]
  %s4 = inlined_call_operand.vmem [shape: f32[512,64], index: 4, kind: output, shape index: {}]
  %s5 = sld [smem:[#allocation0]]
  $region49: #{residual_upsample_block.2} parent=0
    _
  %s7 = ssub.s32 1, %s5
  %s8 = scalar_select 0, %s7, %s5
  loop: start=0, step=1, limit=4
  $region2: #{residual_upsample_block.2} parent=0 // loop_pre_header
    _
  $region3: #{residual_upsample_block.2} parent=0 // loop_header
    %s10 = sphi 0, %s14
    %p11 = scmp.ge.s32.totalorder %s10, 4
    %s20 = sphi 0, %s22
    %s23 = sphi 0, %s20
    %s24 = sphi 0, %s23
    %s40 = sphi 0, %s24
    %s44 = sphi 0, %s44
    %s46 = sphi 0, %s44
    %s47 = sphi 0, %s46
    %s61 = sphi 0, %s47
    %s65 = sphi 0, %s65
    %s67 = sphi 0, %s65
    %s68 = sphi 0, %s67
    %s82 = sphi 0, %s68
    %s86 = sphi 0, %s86
    %s88 = sphi 0, %s86
    %s89 = sphi 0, %s88
    %s103 = sphi 0, %s89
    %s109 = sphi 0, %s111
    %s112 = sphi 0, %s109
    %s113 = sphi 0, %s112
    %s129 = sphi 0, %s113
  $region4: #{residual_upsample_block.2} parent=0 // loop_header_branch
    %13 = sbr.rel (%p11) target = $region8
  $region5: #{residual_upsample_block.2} parent=0 // loop_body
    %s15 = ssub.s32 %s10, 1
    %s16 = ssub.s32 %s10, 2
    %s17 = sadd.s32 %s10, 1
    %s18 = ssub.s32 %s10, %s17
    %p19 = scmp.eq.s32.totalorder %s18, 0
    %s21 = sadd.s32 %s20, 1
    %s22 = scalar_select %p19, %s20, %s21
    %p25 = pneg %p19
    %p26 = scmp.eq.s32.totalorder %s10, 1
    %p27 = por %p25, %p26
    %p28 = scmp.ne.s32.totalorder %s20, %s23
    %p29 = scmp.eq.s32.totalorder %s10, 0
    %p30 = por %p28, %p29
    %p31 = scmp.ne.s32.totalorder %s20, %s23
    %p32 = scmp.eq.s32.totalorder %s15, 1
    %p33 = por %p31, %p32
    %p34 = scmp.ne.s32.totalorder %s23, %s24
    %p35 = scmp.eq.s32.totalorder %s15, 0
    %p36 = por %p34, %p35
    %p37 = scmp.ne.s32.totalorder %s23, %s24
    %p38 = scmp.eq.s32.totalorder %s16, 1
    %p39 = por %p37, %p38
    %p41 = scmp.ne.s32.totalorder %s24, %s40
    %p42 = scmp.eq.s32.totalorder %s16, 0
    %p43 = por %p41, %p42
    %s45 = sadd.s32 %s44, 1
    %p48 = scmp.eq.s32.totalorder %s10, 1
    %p49 = scmp.ne.s32.totalorder %s44, %s46
    %p50 = scmp.eq.s32.totalorder %s10, 0
    %p51 = por %p49, %p50
    %p52 = scmp.ne.s32.totalorder %s44, %s46
    %p53 = scmp.eq.s32.totalorder %s15, 1
    %p54 = por %p52, %p53
    %p55 = scmp.ne.s32.totalorder %s46, %s47
    %p56 = scmp.eq.s32.totalorder %s15, 0
    %p57 = por %p55, %p56
    %p58 = scmp.ne.s32.totalorder %s46, %s47
    %p59 = scmp.eq.s32.totalorder %s16, 1
    %p60 = por %p58, %p59
    %p62 = scmp.ne.s32.totalorder %s47, %s61
    %p63 = scmp.eq.s32.totalorder %s16, 0
    %p64 = por %p62, %p63
    %s66 = sadd.s32 %s65, 1
    %p69 = scmp.eq.s32.totalorder %s10, 1
    %p70 = scmp.ne.s32.totalorder %s65, %s67
    %p71 = scmp.eq.s32.totalorder %s10, 0
    %p72 = por %p70, %p71
    %p73 = scmp.ne.s32.totalorder %s65, %s67
    %p74 = scmp.eq.s32.totalorder %s15, 1
    %p75 = por %p73, %p74
    %p76 = scmp.ne.s32.totalorder %s67, %s68
    %p77 = scmp.eq.s32.totalorder %s15, 0
    %p78 = por %p76, %p77
    %p79 = scmp.ne.s32.totalorder %s67, %s68
    %p80 = scmp.eq.s32.totalorder %s16, 1
    %p81 = por %p79, %p80
    %p83 = scmp.ne.s32.totalorder %s68, %s82
    %p84 = scmp.eq.s32.totalorder %s16, 0
    %p85 = por %p83, %p84
    %s87 = sadd.s32 %s86, 1
    %p90 = scmp.eq.s32.totalorder %s10, 1
    %p91 = scmp.ne.s32.totalorder %s86, %s88
    %p92 = scmp.eq.s32.totalorder %s10, 0
    %p93 = por %p91, %p92
    %p94 = scmp.ne.s32.totalorder %s86, %s88
    %p95 = scmp.eq.s32.totalorder %s15, 1
    %p96 = por %p94, %p95
    %p97 = scmp.ne.s32.totalorder %s88, %s89
    %p98 = scmp.eq.s32.totalorder %s15, 0
    %p99 = por %p97, %p98
    %p100 = scmp.ne.s32.totalorder %s88, %s89
    %p101 = scmp.eq.s32.totalorder %s16, 1
    %p102 = por %p100, %p101
    %p104 = scmp.ne.s32.totalorder %s89, %s103
    %p105 = scmp.eq.s32.totalorder %s16, 0
    %p106 = por %p104, %p105
    %s107 = ssub.s32 %s10, %s17
    %p108 = scmp.eq.s32.totalorder %s107, 0
    %s110 = sadd.s32 %s109, 1
    %s111 = scalar_select %p108, %s109, %s110
    %p114 = pneg %p108
    %p115 = scmp.eq.s32.totalorder %s10, 1
    %p116 = por %p114, %p115
    %p117 = scmp.ne.s32.totalorder %s109, %s112
    %p118 = scmp.eq.s32.totalorder %s10, 0
    %p119 = por %p117, %p118
    %p120 = scmp.ne.s32.totalorder %s109, %s112
    %p121 = scmp.eq.s32.totalorder %s15, 1
    %p122 = por %p120, %p121
    %p123 = scmp.ne.s32.totalorder %s112, %s113
    %p124 = scmp.eq.s32.totalorder %s15, 0
    %p125 = por %p123, %p124
    %p126 = scmp.ne.s32.totalorder %s112, %s113
    %p127 = scmp.eq.s32.totalorder %s16, 1
    %p128 = por %p126, %p127
    %p130 = scmp.ne.s32.totalorder %s113, %s129
    %p131 = scmp.eq.s32.totalorder %s16, 0
    %p132 = por %p130, %p131
    %p133 = scmp.le.s32.totalorder 1, %s10
    %p134 = scmp.lt.s32.totalorder %s10, 3
    %p135 = pnand %p133, %p134
    %p136 = pneg %p135
    // Predicated region
    $region9: #{residual_upsample_block.2} parent=5 // pred_check
      _
    $region10: #{residual_upsample_block.2} parent=5 // pred_check_branch
      %138 = sbr.rel (%p135) target = $region12
    $region11: #{residual_upsample_block.2} parent=5 // pred_region
      %s139 = ssub.s32 %s10, 1
      // Predicated region
      $region13: #{residual_upsample_block.2} parent=11 // pred_check
        %p140 = pneg %p57
      $region14: #{residual_upsample_block.2} parent=11 // pred_check_branch
        %142 = sbr.rel (%p140) target = $region16
      $region15: #{residual_upsample_block.2} parent=11 // pred_region
        _
      $region16: #{residual_upsample_block.2} parent=11 // pred_fallthru
        _
      // Predicated region
      $region17: #{residual_upsample_block.2} parent=11 // pred_check
        %p143 = pneg %p78
      $region18: #{residual_upsample_block.2} parent=11 // pred_check_branch
        %145 = sbr.rel (%p143) target = $region20
      $region19: #{residual_upsample_block.2} parent=11 // pred_region
        _
      $region20: #{residual_upsample_block.2} parent=11 // pred_fallthru
        _
      // Predicated region
      $region21: #{residual_upsample_block.2} parent=11 // pred_check
        %p146 = pneg %p99
      $region22: #{residual_upsample_block.2} parent=11 // pred_check_branch
        %148 = sbr.rel (%p146) target = $region24
      $region23: #{residual_upsample_block.2} parent=11 // pred_region
        _
      $region24: #{residual_upsample_block.2} parent=11 // pred_fallthru
        _
    $region12: #{residual_upsample_block.2} parent=5 // pred_fallthru
      _
    %p149 = scmp.lt.s32.totalorder %s10, 2
    // Predicated region
    $region25: #{residual_upsample_block.2} parent=5 // pred_check
      %p150 = pneg %p149
    $region26: #{residual_upsample_block.2} parent=5 // pred_check_branch
      %152 = sbr.rel (%p150) target = $region28
    $region27: #{residual_upsample_block.2} parent=5 // pred_region
      // Predicated region
      $region29: #{residual_upsample_block.2} parent=27 // pred_check
        %p153 = pneg %p30
      $region30: #{residual_upsample_block.2} parent=27 // pred_check_branch
        %155 = sbr.rel (%p153) target = $region32
      $region31: #{residual_upsample_block.2} parent=27 // pred_region
        %s156 = smul.u32 32, %s10
        %p157 = scmp.lt.s32.totalorder %s156, 63
        %s158 = scalar_select %p157, %s156, 63
        %s159 = smul.addr %s158, 8
        %s160 = scalar_lea.vmem %s0, %s159
        %s161 = smul.u32 32, %s10
      $region32: #{residual_upsample_block.2} parent=27 // pred_fallthru
        _
    $region28: #{residual_upsample_block.2} parent=5 // pred_fallthru
      _
    %p162 = scmp.le.s32.totalorder 1, %s10
    %p163 = scmp.lt.s32.totalorder %s10, 3
    %p164 = pnand %p162, %p163
    %p165 = pneg %p164
    // Predicated region
    $region33: #{residual_upsample_block.2} parent=5 // pred_check
      _
    $region34: #{residual_upsample_block.2} parent=5 // pred_check_branch
      %167 = sbr.rel (%p164) target = $region36
    $region35: #{residual_upsample_block.2} parent=5 // pred_region
      %s168 = ssub.s32 %s10, 1
      %s169 = smul.u32 32, %s15
      %p170 = scmp.lt.s32.totalorder %s169, 63
      %s171 = scalar_select %p170, %s169, 63
      %s172 = smul.addr %s171, 8
      %s173 = scalar_lea.vmem %s0, %s172
      %p174 = pneg %p36
      %p175 = pneg %p33
      %p176 = pneg %p57
      %p177 = pneg %p54
      %p178 = pneg %p78
      %p179 = pneg %p75
      %p180 = pneg %p99
      %p181 = pneg %p96
      %p182 = pneg %p125
      %p183 = pneg %p122
      %s184 = smul.u32 32, %s15
      %p185 = scmp.lt.s32.totalorder %s184, 63
      %s186 = scalar_select %p185, %s184, 63
      %s187 = smul.addr %s186, 8
      %s188 = scalar_lea.vmem %s4, %s187
      %s189 = smul.u32 32, %s15
      %p190 = scmp.lt.s32.totalorder %s189, 63
      %s191 = scalar_select %p190, %s189, 63
      %s192 = smul.addr %s191, 8
      %s193 = scalar_lea.vmem %s0, %s192
      %s194 = smul.u32 32, %s15
      %s195 = smul.u32 32, %s15
      %p196 = scmp.lt.s32.totalorder %s195, 63
      %s197 = scalar_select %p196, %s195, 63
      %s198 = smul.addr %s197, 8
      %s199 = scalar_lea.vmem %s4, %s198
      %s200 = smul.u32 32, %s15
      %v201 = vld [vmem:[%s193] sm:$0xff]
      %v202 = vld [vmem:[%s193 + $0x8] sm:$0xff]
      %v203 = vld [vmem:[%s193 + $0x10] sm:$0xff]
      %v204 = vld [vmem:[%s193 + $0x18] sm:$0xff]
      %v205 = vld [vmem:[%s193 + $0x20] sm:$0xff]
      %v206 = vld [vmem:[%s193 + $0x28] sm:$0xff]
      %v207 = vld [vmem:[%s193 + $0x30] sm:$0xff]
      %v208 = vld [vmem:[%s193 + $0x38] sm:$0xff]
      %v209 = vld [vmem:[%s193 + $0x40] sm:$0xff]
      %v210 = vld [vmem:[%s193 + $0x48] sm:$0xff]
      %v211 = vld [vmem:[%s193 + $0x50] sm:$0xff]
      %v212 = vld [vmem:[%s193 + $0x58] sm:$0xff]
      %v213 = vld [vmem:[%s193 + $0x60] sm:$0xff]
      %v214 = vld [vmem:[%s193 + $0x68] sm:$0xff]
      %v215 = vld [vmem:[%s193 + $0x70] sm:$0xff]
      %v216 = vld [vmem:[%s193 + $0x78] sm:$0xff]
      %v217 = vld [vmem:[%s193 + $0x80] sm:$0xff]
      %v218 = vld [vmem:[%s193 + $0x88] sm:$0xff]
      %v219 = vld [vmem:[%s193 + $0x90] sm:$0xff]
      %v220 = vld [vmem:[%s193 + $0x98] sm:$0xff]
      %v221 = vld [vmem:[%s193 + $0xa0] sm:$0xff]
      %v222 = vld [vmem:[%s193 + $0xa8] sm:$0xff]
      %v223 = vld [vmem:[%s193 + $0xb0] sm:$0xff]
      %v224 = vld [vmem:[%s193 + $0xb8] sm:$0xff]
      %v225 = vld [vmem:[%s193 + $0xc0] sm:$0xff]
      %v226 = vld [vmem:[%s193 + $0xc8] sm:$0xff]
      %v227 = vld [vmem:[%s193 + $0xd0] sm:$0xff]
      %v228 = vld [vmem:[%s193 + $0xd8] sm:$0xff]
      %v229 = vld [vmem:[%s193 + $0xe0] sm:$0xff]
      %v230 = vld [vmem:[%s193 + $0xe8] sm:$0xff]
      %v231 = vld [vmem:[%s193 + $0xf0] sm:$0xff]
      %v232 = vld [vmem:[%s193 + $0xf8] sm:$0xff]
      %v233 = vld [vmem:[%s1] sm:$0xff]
      %v234 = vld [vmem:[%s1 + $0x8] sm:$0xff]
      %v235 = vld [vmem:[%s1 + $0x10] sm:$0xff]
      %v236 = vld [vmem:[%s1 + $0x18] sm:$0xff]
      %v237 = vld [vmem:[%s1 + $0x20] sm:$0xf]
      %v238 = vld [vmem:[%s2] sm:$0x1]
      %v240 = vlaneseq
      %v241 = vshrl.u32 %v240, 7
      %v242 = vsub.s32 0, %v241
      %v243 = vrot.slane %v238, %v242
      %vm245 = vcmask 293888
      %v247 = vsel %vm245, %v201, 0
      %v250 = vsel %vm245, %v202, 0
      %v253 = vsel %vm245, %v203, 0
      %v256 = vsel %vm245, %v204, 0
      %v259 = vsel %vm245, %v205, 0
      %v262 = vsel %vm245, %v206, 0
      %v265 = vsel %vm245, %v207, 0
      %v268 = vsel %vm245, %v208, 0
      %v271 = vsel %vm245, %v209, 0
      %v274 = vsel %vm245, %v210, 0
      %v277 = vsel %vm245, %v211, 0
      %v280 = vsel %vm245, %v212, 0
      %v283 = vsel %vm245, %v213, 0
      %v286 = vsel %vm245, %v214, 0
      %v289 = vsel %vm245, %v215, 0
      %v292 = vsel %vm245, %v216, 0
      %v295 = vsel %vm245, %v217, 0
      %v298 = vsel %vm245, %v218, 0
      %v301 = vsel %vm245, %v219, 0
      %v304 = vsel %vm245, %v220, 0
      %v307 = vsel %vm245, %v221, 0
      %v310 = vsel %vm245, %v222, 0
      %v313 = vsel %vm245, %v223, 0
      %v316 = vsel %vm245, %v224, 0
      %v319 = vsel %vm245, %v225, 0
      %v322 = vsel %vm245, %v226, 0
      %v325 = vsel %vm245, %v227, 0
      %v328 = vsel %vm245, %v228, 0
      %v331 = vsel %vm245, %v229, 0
      %v334 = vsel %vm245, %v230, 0
      %v337 = vsel %vm245, %v231, 0
      %v340 = vsel %vm245, %v232, 0
      %vm342 = vcmask 1043456
      %v344 = vsel %vm342, %v237, 0
      %346 = vmatprep.subr.mxu0 0.0
      %347 = vmatpush1.msra.mxu0 %v233
      %348 = vmatprep.subr.mxu0 0.0
      %349 = vmatpush1.msra.mxu0 %v234
      %350 = vmatprep.subr.mxu0 0.0
      %351 = vmatpush1.msra.mxu0 %v235
      %352 = vmatprep.subr.mxu0 0.0
      %353 = vmatpush1.msra.mxu0 %v236
      %354 = vmatprep.subr.mxu0 0.0
      %355 = vmatpush1.msra.mxu0 %v344
      %356 = vmatprep.subr.mxu0 0.0
      %357 = vmatpush1.msra.mxu0 0.0
      %358 = vmatprep.subr.mxu0 0.0
      %359 = vmatpush1.msra.mxu0 0.0
      %360 = vmatprep.subr.mxu0 0.0
      %361 = vmatpush1.msra.mxu0 0.0
      %362 = vmatprep.subr.mxu0 0.0
      %363 = vmatpush1.msra.mxu0 0.0
      %364 = vmatprep.subr.mxu0 0.0
      %365 = vmatpush1.msra.mxu0 0.0
      %366 = vmatprep.subr.mxu0 0.0
      %367 = vmatpush1.msra.mxu0 0.0
      %368 = vmatprep.subr.mxu0 0.0
      %369 = vmatpush1.msra.mxu0 0.0
      %370 = vmatprep.subr.mxu0 0.0
      %371 = vmatpush1.msra.mxu0 0.0
      %372 = vmatprep.subr.mxu0 0.0
      %373 = vmatpush1.msra.mxu0 0.0
      %374 = vmatprep.subr.mxu0 0.0
      %375 = vmatpush1.msra.mxu0 0.0
      %376 = vmatprep.subr.mxu0 0.0
      %377 = vmatpush1.msra.mxu0 0.0
      %378 = vmatprep.subr.mxu0 0.0
      %379 = vmatpush1.msra.mxu0 0.0
      %380 = vmatprep.subr.mxu0 0.0
      %381 = vmatpush1.msra.mxu0 0.0
      %382 = vmatprep.subr.mxu0 0.0
      %383 = vmatpush1.msra.mxu0 0.0
      %384 = vmatprep.subr.mxu0 0.0
      %385 = vmatpush1.msra.mxu0 0.0
      %386 = vmatprep.subr.mxu0 0.0
      %387 = vmatpush1.msra.mxu0 0.0
      %388 = vmatprep.subr.mxu0 0.0
      %389 = vmatpush1.msra.mxu0 0.0
      %390 = vmatprep.subr.mxu0 0.0
      %391 = vmatpush1.msra.mxu0 0.0
      %392 = vmatprep.subr.mxu0 0.0
      %393 = vmatpush1.msra.mxu0 0.0
      %394 = vmatprep.subr.mxu0 0.0
      %395 = vmatpush1.msra.mxu0 0.0
      %396 = vmatprep.subr.mxu0 0.0
      %397 = vmatpush1.msra.mxu0 0.0
      %398 = vmatprep.subr.mxu0 0.0
      %399 = vmatpush1.msra.mxu0 0.0
      %400 = vmatprep.subr.mxu0 0.0
      %401 = vmatpush1.msra.mxu0 0.0
      %402 = vmatprep.subr.mxu0 0.0
      %403 = vmatpush1.msra.mxu0 0.0
      %404 = vmatprep.subr.mxu0 0.0
      %405 = vmatpush1.msra.mxu0 0.0
      %406 = vmatprep.subr.mxu0 0.0
      %407 = vmatpush1.msra.mxu0 0.0
      %408 = vmatprep.subr.mxu0 0.0
      %409 = vmatpush1.msra.mxu0 0.0
      %410 = vmatprep.mubr.f32.mxu0 0.0
      %411 = vmatmul.mubr.f32.gmra.mrb[0].mxu0 %v247
      %v412 = vpop.f32.mrb[0].mxu0
      %v413 = vadd.f32 %v243, %v412
      %v414 = vpop.f32.mrb[0].mxu0
      %415 = vmatprep.mubr.f32.mxu0 0.0
      %416 = vmatmul.mubr.f32.gmra.mrb[0].mxu0 %v250
      %v417 = vpop.f32.mrb[0].mxu0
      %v418 = vadd.f32 %v243, %v417
      %v419 = vpop.f32.mrb[0].mxu0
      %420 = vmatprep.mubr.f32.mxu0 0.0
      %421 = vmatmul.mubr.f32.gmra.mrb[0].mxu0 %v253
      %v422 = vpop.f32.mrb[0].mxu0
      %v423 = vadd.f32 %v243, %v422
      %v424 = vpop.f32.mrb[0].mxu0
      %425 = vmatprep.mubr.f32.mxu0 0.0
      %426 = vmatmul.mubr.f32.gmra.mrb[0].mxu0 %v256
      %v427 = vpop.f32.mrb[0].mxu0
      %v428 = vadd.f32 %v243, %v427
      %v429 = vpop.f32.mrb[0].mxu0
      %430 = vmatprep.mubr.f32.mxu0 0.0
      %431 = vmatmul.mubr.f32.gmra.mrb[0].mxu0 %v259
      %v432 = vpop.f32.mrb[0].mxu0
      %v433 = vadd.f32 %v243, %v432
      %v434 = vpop.f32.mrb[0].mxu0
      %435 = vmatprep.mubr.f32.mxu0 0.0
      %436 = vmatmul.mubr.f32.gmra.mrb[0].mxu0 %v262
      %v437 = vpop.f32.mrb[0].mxu0
      %v438 = vadd.f32 %v243, %v437
      %v439 = vpop.f32.mrb[0].mxu0
      %440 = vmatprep.mubr.f32.mxu0 0.0
      %441 = vmatmul.mubr.f32.gmra.mrb[0].mxu0 %v265
      %v442 = vpop.f32.mrb[0].mxu0
      %v443 = vadd.f32 %v243, %v442
      %v444 = vpop.f32.mrb[0].mxu0
      %445 = vmatprep.mubr.f32.mxu0 0.0
      %446 = vmatmul.mubr.f32.gmra.mrb[0].mxu0 %v268
      %v447 = vpop.f32.mrb[0].mxu0
      %v448 = vadd.f32 %v243, %v447
      %v449 = vpop.f32.mrb[0].mxu0
      %450 = vmatprep.mubr.f32.mxu0 0.0
      %451 = vmatmul.mubr.f32.gmra.mrb[0].mxu0 %v271
      %v452 = vpop.f32.mrb[0].mxu0
      %v453 = vadd.f32 %v243, %v452
      %v454 = vpop.f32.mrb[0].mxu0
      %455 = vmatprep.mubr.f32.mxu0 0.0
      %456 = vmatmul.mubr.f32.gmra.mrb[0].mxu0 %v274
      %v457 = vpop.f32.mrb[0].mxu0
      %v458 = vadd.f32 %v243, %v457
      %v459 = vpop.f32.mrb[0].mxu0
      %460 = vmatprep.mubr.f32.mxu0 0.0
      %461 = vmatmul.mubr.f32.gmra.mrb[0].mxu0 %v277
      %v462 = vpop.f32.mrb[0].mxu0
      %v463 = vadd.f32 %v243, %v462
      %v464 = vpop.f32.mrb[0].mxu0
      %465 = vmatprep.mubr.f32.mxu0 0.0
      %466 = vmatmul.mubr.f32.gmra.mrb[0].mxu0 %v280
      %v467 = vpop.f32.mrb[0].mxu0
      %v468 = vadd.f32 %v243, %v467
      %v469 = vpop.f32.mrb[0].mxu0
      %470 = vmatprep.mubr.f32.mxu0 0.0
      %471 = vmatmul.mubr.f32.gmra.mrb[0].mxu0 %v283
      %v472 = vpop.f32.mrb[0].mxu0
      %v473 = vadd.f32 %v243, %v472
      %v474 = vpop.f32.mrb[0].mxu0
      %475 = vmatprep.mubr.f32.mxu0 0.0
      %476 = vmatmul.mubr.f32.gmra.mrb[0].mxu0 %v286
      %v477 = vpop.f32.mrb[0].mxu0
      %v478 = vadd.f32 %v243, %v477
      %v479 = vpop.f32.mrb[0].mxu0
      %480 = vmatprep.mubr.f32.mxu0 0.0
      %481 = vmatmul.mubr.f32.gmra.mrb[0].mxu0 %v289
      %v482 = vpop.f32.mrb[0].mxu0
      %v483 = vadd.f32 %v243, %v482
      %v484 = vpop.f32.mrb[0].mxu0
      %485 = vmatprep.mubr.f32.mxu0 0.0
      %486 = vmatmul.mubr.f32.gmra.mrb[0].mxu0 %v292
      %v487 = vpop.f32.mrb[0].mxu0
      %v488 = vadd.f32 %v243, %v487
      %v489 = vpop.f32.mrb[0].mxu0
      %490 = vmatprep.mubr.f32.mxu0 0.0
      %491 = vmatmul.mubr.f32.gmra.mrb[0].mxu0 %v295
      %v492 = vpop.f32.mrb[0].mxu0
      %v493 = vadd.f32 %v243, %v492
      %v494 = vpop.f32.mrb[0].mxu0
      %495 = vmatprep.mubr.f32.mxu0 0.0
      %496 = vmatmul.mubr.f32.gmra.mrb[0].mxu0 %v298
      %v497 = vpop.f32.mrb[0].mxu0
      %v498 = vadd.f32 %v243, %v497
      %v499 = vpop.f32.mrb[0].mxu0
      %500 = vmatprep.mubr.f32.mxu0 0.0
      %501 = vmatmul.mubr.f32.gmra.mrb[0].mxu0 %v301
      %v502 = vpop.f32.mrb[0].mxu0
      %v503 = vadd.f32 %v243, %v502
      %v504 = vpop.f32.mrb[0].mxu0
      %505 = vmatprep.mubr.f32.mxu0 0.0
      %506 = vmatmul.mubr.f32.gmra.mrb[0].mxu0 %v304
      %v507 = vpop.f32.mrb[0].mxu0
      %v508 = vadd.f32 %v243, %v507
      %v509 = vpop.f32.mrb[0].mxu0
      %510 = vmatprep.mubr.f32.mxu0 0.0
      %511 = vmatmul.mubr.f32.gmra.mrb[0].mxu0 %v307
      %v512 = vpop.f32.mrb[0].mxu0
      %v513 = vadd.f32 %v243, %v512
      %v514 = vpop.f32.mrb[0].mxu0
      %515 = vmatprep.mubr.f32.mxu0 0.0
      %516 = vmatmul.mubr.f32.gmra.mrb[0].mxu0 %v310
      %v517 = vpop.f32.mrb[0].mxu0
      %v518 = vadd.f32 %v243, %v517
      %v519 = vpop.f32.mrb[0].mxu0
      %520 = vmatprep.mubr.f32.mxu0 0.0
      %521 = vmatmul.mubr.f32.gmra.mrb[0].mxu0 %v313
      %v522 = vpop.f32.mrb[0].mxu0
      %v523 = vadd.f32 %v243, %v522
      %v524 = vpop.f32.mrb[0].mxu0
      %525 = vmatprep.mubr.f32.mxu0 0.0
      %526 = vmatmul.mubr.f32.gmra.mrb[0].mxu0 %v316
      %v527 = vpop.f32.mrb[0].mxu0
      %v528 = vadd.f32 %v243, %v527
      %v529 = vpop.f32.mrb[0].mxu0
      %530 = vmatprep.mubr.f32.mxu0 0.0
      %531 = vmatmul.mubr.f32.gmra.mrb[0].mxu0 %v319
      %v532 = vpop.f32.mrb[0].mxu0
      %v533 = vadd.f32 %v243, %v532
      %v534 = vpop.f32.mrb[0].mxu0
      %535 = vmatprep.mubr.f32.mxu0 0.0
      %536 = vmatmul.mubr.f32.gmra.mrb[0].mxu0 %v322
      %v537 = vpop.f32.mrb[0].mxu0
      %v538 = vadd.f32 %v243, %v537
      %v539 = vpop.f32.mrb[0].mxu0
      %540 = vmatprep.mubr.f32.mxu0 0.0
      %541 = vmatmul.mubr.f32.gmra.mrb[0].mxu0 %v325
      %v542 = vpop.f32.mrb[0].mxu0
      %v543 = vadd.f32 %v243, %v542
      %v544 = vpop.f32.mrb[0].mxu0
      %545 = vmatprep.mubr.f32.mxu0 0.0
      %546 = vmatmul.mubr.f32.gmra.mrb[0].mxu0 %v328
      %v547 = vpop.f32.mrb[0].mxu0
      %v548 = vadd.f32 %v243, %v547
      %v549 = vpop.f32.mrb[0].mxu0
      %550 = vmatprep.mubr.f32.mxu0 0.0
      %551 = vmatmul.mubr.f32.gmra.mrb[0].mxu0 %v331
      %v552 = vpop.f32.mrb[0].mxu0
      %v553 = vadd.f32 %v243, %v552
      %v554 = vpop.f32.mrb[0].mxu0
      %555 = vmatprep.mubr.f32.mxu0 0.0
      %556 = vmatmul.mubr.f32.gmra.mrb[0].mxu0 %v334
      %v557 = vpop.f32.mrb[0].mxu0
      %v558 = vadd.f32 %v243, %v557
      %v559 = vpop.f32.mrb[0].mxu0
      %560 = vmatprep.mubr.f32.mxu0 0.0
      %561 = vmatmul.mubr.f32.gmra.mrb[0].mxu0 %v337
      %v562 = vpop.f32.mrb[0].mxu0
      %v563 = vadd.f32 %v243, %v562
      %v564 = vpop.f32.mrb[0].mxu0
      %565 = vmatprep.mubr.f32.mxu0 0.0
      %566 = vmatmul.mubr.f32.gmra.mrb[0].mxu0 %v340
      %v567 = vpop.f32.mrb[0].mxu0
      %v568 = vadd.f32 %v243, %v567
      %v569 = vpop.f32.mrb[0].mxu0
      %570 = vdwg.mxu0
      %v571 = vld [vmem:[%s3] sm:$0x1]
      %v573 = vlaneseq
      %v574 = vshrl.u32 %v573, 7
      %v575 = vsub.s32 0, %v574
      %v576 = vrot.slane %v571, %v575
      %v578 = vmax.f32 %v413, %v576
      %v579 = vmax.f32 %v418, %v576
      %v580 = vmax.f32 %v423, %v576
      %v581 = vmax.f32 %v428, %v576
      %v582 = vmax.f32 %v433, %v576
      %v583 = vmax.f32 %v438, %v576
      %v584 = vmax.f32 %v443, %v576
      %v585 = vmax.f32 %v448, %v576
      %v586 = vmax.f32 %v453, %v576
      %v587 = vmax.f32 %v458, %v576
      %v588 = vmax.f32 %v463, %v576
      %v589 = vmax.f32 %v468, %v576
      %v590 = vmax.f32 %v473, %v576
      %v591 = vmax.f32 %v478, %v576
      %v592 = vmax.f32 %v483, %v576
      %v593 = vmax.f32 %v488, %v576
      %v594 = vmax.f32 %v493, %v576
      %v595 = vmax.f32 %v498, %v576
      %v596 = vmax.f32 %v503, %v576
      %v597 = vmax.f32 %v508, %v576
      %v598 = vmax.f32 %v513, %v576
      %v599 = vmax.f32 %v518, %v576
      %v600 = vmax.f32 %v523, %v576
      %v601 = vmax.f32 %v528, %v576
      %v602 = vmax.f32 %v533, %v576
      %v603 = vmax.f32 %v538, %v576
      %v604 = vmax.f32 %v543, %v576
      %v605 = vmax.f32 %v548, %v576
      %v606 = vmax.f32 %v553, %v576
      %v607 = vmax.f32 %v558, %v576
      %v608 = vmax.f32 %v563, %v576
      %v609 = vmax.f32 %v568, %v576
      %vm610 = vcmask 523264
      %611 = vst.msk [vmem:[%s199] sm:$0xff] %vm610, %v578
      %612 = vst.msk [vmem:[%s199 + $0x8] sm:$0xff] %vm610, %v579
      %613 = vst.msk [vmem:[%s199 + $0x10] sm:$0xff] %vm610, %v580
      %614 = vst.msk [vmem:[%s199 + $0x18] sm:$0xff] %vm610, %v581
      %615 = vst.msk [vmem:[%s199 + $0x20] sm:$0xff] %vm610, %v582
      %616 = vst.msk [vmem:[%s199 + $0x28] sm:$0xff] %vm610, %v583
      %617 = vst.msk [vmem:[%s199 + $0x30] sm:$0xff] %vm610, %v584
      %618 = vst.msk [vmem:[%s199 + $0x38] sm:$0xff] %vm610, %v585
      %619 = vst.msk [vmem:[%s199 + $0x40] sm:$0xff] %vm610, %v586
      %620 = vst.msk [vmem:[%s199 + $0x48] sm:$0xff] %vm610, %v587
      %621 = vst.msk [vmem:[%s199 + $0x50] sm:$0xff] %vm610, %v588
      %622 = vst.msk [vmem:[%s199 + $0x58] sm:$0xff] %vm610, %v589
      %623 = vst.msk [vmem:[%s199 + $0x60] sm:$0xff] %vm610, %v590
      %624 = vst.msk [vmem:[%s199 + $0x68] sm:$0xff] %vm610, %v591
      %625 = vst.msk [vmem:[%s199 + $0x70] sm:$0xff] %vm610, %v592
      %626 = vst.msk [vmem:[%s199 + $0x78] sm:$0xff] %vm610, %v593
      %627 = vst.msk [vmem:[%s199 + $0x80] sm:$0xff] %vm610, %v594
      %628 = vst.msk [vmem:[%s199 + $0x88] sm:$0xff] %vm610, %v595
      %629 = vst.msk [vmem:[%s199 + $0x90] sm:$0xff] %vm610, %v596
      %630 = vst.msk [vmem:[%s199 + $0x98] sm:$0xff] %vm610, %v597
      %631 = vst.msk [vmem:[%s199 + $0xa0] sm:$0xff] %vm610, %v598
      %632 = vst.msk [vmem:[%s199 + $0xa8] sm:$0xff] %vm610, %v599
      %633 = vst.msk [vmem:[%s199 + $0xb0] sm:$0xff] %vm610, %v600
      %634 = vst.msk [vmem:[%s199 + $0xb8] sm:$0xff] %vm610, %v601
      %635 = vst.msk [vmem:[%s199 + $0xc0] sm:$0xff] %vm610, %v602
      %636 = vst.msk [vmem:[%s199 + $0xc8] sm:$0xff] %vm610, %v603
      %637 = vst.msk [vmem:[%s199 + $0xd0] sm:$0xff] %vm610, %v604
      %638 = vst.msk [vmem:[%s199 + $0xd8] sm:$0xff] %vm610, %v605
      %639 = vst.msk [vmem:[%s199 + $0xe0] sm:$0xff] %vm610, %v606
      %640 = vst.msk [vmem:[%s199 + $0xe8] sm:$0xff] %vm610, %v607
      %641 = vst.msk [vmem:[%s199 + $0xf0] sm:$0xff] %vm610, %v608
      %642 = vst.msk [vmem:[%s199 + $0xf8] sm:$0xff] %vm610, %v609
      %s643 = smul.u32 32, %s15
      %p644 = scmp.lt.s32.totalorder %s643, 63
      %s645 = scalar_select %p644, %s643, 63
      %s646 = smul.addr %s645, 8
      %s647 = scalar_lea.vmem %s4, %s646
      // Predicated region
      $region37: #{residual_upsample_block.2} parent=35 // pred_check
        %p648 = pneg %p122
      $region38: #{residual_upsample_block.2} parent=35 // pred_check_branch
        %650 = sbr.rel (%p648) target = $region40
      $region39: #{residual_upsample_block.2} parent=35 // pred_region
        %s651 = smul.u32 32, %s15
      $region40: #{residual_upsample_block.2} parent=35 // pred_fallthru
        _
    $region36: #{residual_upsample_block.2} parent=5 // pred_fallthru
      _
    %p652 = scmp.le.s32.totalorder 2, %s10
    // Predicated region
    $region41: #{residual_upsample_block.2} parent=5 // pred_check
      %p653 = pneg %p652
    $region42: #{residual_upsample_block.2} parent=5 // pred_check_branch
      %655 = sbr.rel (%p653) target = $region44
    $region43: #{residual_upsample_block.2} parent=5 // pred_region
      %s656 = ssub.s32 %s10, 2
      // Predicated region
      $region45: #{residual_upsample_block.2} parent=43 // pred_check
        %p657 = pneg %p128
      $region46: #{residual_upsample_block.2} parent=43 // pred_check_branch
        %659 = sbr.rel (%p657) target = $region48
      $region47: #{residual_upsample_block.2} parent=43 // pred_region
        %s660 = smul.u32 32, %s16
        %p661 = scmp.lt.s32.totalorder %s660, 63
        %s662 = scalar_select %p661, %s660, 63
        %s663 = smul.addr %s662, 8
        %s664 = scalar_lea.vmem %s4, %s663
      $region48: #{residual_upsample_block.2} parent=43 // pred_fallthru
        _
    $region44: #{residual_upsample_block.2} parent=5 // pred_fallthru
      _
  $region6: #{residual_upsample_block.2} parent=0 // loop_footer
    %s14 = sadd.s32 1, %s10
  $region7: #{residual_upsample_block.2} parent=0 // loop_footer_branch
    %9 = sbr.rel target = $region3
  $region8: #{residual_upsample_block.2} parent=0 // loop_exit
    _

// kernel: residual_upsample_block.3
$region0: #{residual_upsample_block.3}
  #allocation0 [shape = 'u32[]', space=smem, size = 0x4, offset = 0x4, fixed_abs, tag = 'smem constant byte address 0x4 - core index']
  #allocation1 [shape = 'u32[144,128]{1,0:T(1,128)}', space=vmem, size = 0x12000, scoped, tag = 'internal scratch']
  %s0 = inlined_call_operand.vmem [shape: f32[2,8,1190], index: 0, kind: input, shape index: {}]
  %s1 = inlined_call_operand.vmem [shape: f32[9,8,8], index: 1, kind: input, shape index: {}]
  %s2 = inlined_call_operand.vmem [shape: f32[8,1], index: 2, kind: input, shape index: {}]
  %s3 = inlined_call_operand.vmem [shape: f32[2,8,1088], index: 3, kind: input, shape index: {}]
  %s4 = inlined_call_operand.vmem [shape: f32[2,8,1088], index: 4, kind: output, shape index: {}]
  %s5 = sld [smem:[#allocation0]]
  $region49: #{residual_upsample_block.3} parent=0
    _
  %s7 = ssub.s32 1, %s5
  %s8 = scalar_select 0, %s7, %s5
  loop: start=0, step=1, limit=4
  $region2: #{residual_upsample_block.3} parent=0 // loop_pre_header
    _
  $region3: #{residual_upsample_block.3} parent=0 // loop_header
    %s10 = sphi 0, %s14
    %p11 = scmp.ge.s32.totalorder %s10, 4
    %s20 = sphi 0, %s22
    %s23 = sphi 0, %s20
    %s24 = sphi 0, %s23
    %s40 = sphi 0, %s24
    %s44 = sphi 0, %s44
    %s46 = sphi 0, %s44
    %s47 = sphi 0, %s46
    %s61 = sphi 0, %s47
    %s65 = sphi 0, %s65
    %s67 = sphi 0, %s65
    %s68 = sphi 0, %s67
    %s82 = sphi 0, %s68
    %s88 = sphi 0, %s90
    %s91 = sphi 0, %s88
    %s92 = sphi 0, %s91
    %s108 = sphi 0, %s92
    %s114 = sphi 0, %s116
    %s117 = sphi 0, %s114
    %s118 = sphi 0, %s117
    %s134 = sphi 0, %s118
  $region4: #{residual_upsample_block.3} parent=0 // loop_header_branch
    %13 = sbr.rel (%p11) target = $region8
  $region5: #{residual_upsample_block.3} parent=0 // loop_body
    %s15 = ssub.s32 %s10, 1
    %s16 = ssub.s32 %s10, 2
    %s17 = sadd.s32 %s10, 1
    %s18 = ssub.s32 %s10, %s17
    %p19 = scmp.eq.s32.totalorder %s18, 0
    %s21 = sadd.s32 %s20, 1
    %s22 = scalar_select %p19, %s20, %s21
    %p25 = pneg %p19
    %p26 = scmp.eq.s32.totalorder %s10, 1
    %p27 = por %p25, %p26
    %p28 = scmp.ne.s32.totalorder %s20, %s23
    %p29 = scmp.eq.s32.totalorder %s10, 0
    %p30 = por %p28, %p29
    %p31 = scmp.ne.s32.totalorder %s20, %s23
    %p32 = scmp.eq.s32.totalorder %s15, 1
    %p33 = por %p31, %p32
    %p34 = scmp.ne.s32.totalorder %s23, %s24
    %p35 = scmp.eq.s32.totalorder %s15, 0
    %p36 = por %p34, %p35
    %p37 = scmp.ne.s32.totalorder %s23, %s24
    %p38 = scmp.eq.s32.totalorder %s16, 1
    %p39 = por %p37, %p38
    %p41 = scmp.ne.s32.totalorder %s24, %s40
    %p42 = scmp.eq.s32.totalorder %s16, 0
    %p43 = por %p41, %p42
    %s45 = sadd.s32 %s44, 1
    %p48 = scmp.eq.s32.totalorder %s10, 1
    %p49 = scmp.ne.s32.totalorder %s44, %s46
    %p50 = scmp.eq.s32.totalorder %s10, 0
    %p51 = por %p49, %p50
    %p52 = scmp.ne.s32.totalorder %s44, %s46
    %p53 = scmp.eq.s32.totalorder %s15, 1
    %p54 = por %p52, %p53
    %p55 = scmp.ne.s32.totalorder %s46, %s47
    %p56 = scmp.eq.s32.totalorder %s15, 0
    %p57 = por %p55, %p56
    %p58 = scmp.ne.s32.totalorder %s46, %s47
    %p59 = scmp.eq.s32.totalorder %s16, 1
    %p60 = por %p58, %p59
    %p62 = scmp.ne.s32.totalorder %s47, %s61
    %p63 = scmp.eq.s32.totalorder %s16, 0
    %p64 = por %p62, %p63
    %s66 = sadd.s32 %s65, 1
    %p69 = scmp.eq.s32.totalorder %s10, 1
    %p70 = scmp.ne.s32.totalorder %s65, %s67
    %p71 = scmp.eq.s32.totalorder %s10, 0
    %p72 = por %p70, %p71
    %p73 = scmp.ne.s32.totalorder %s65, %s67
    %p74 = scmp.eq.s32.totalorder %s15, 1
    %p75 = por %p73, %p74
    %p76 = scmp.ne.s32.totalorder %s67, %s68
    %p77 = scmp.eq.s32.totalorder %s15, 0
    %p78 = por %p76, %p77
    %p79 = scmp.ne.s32.totalorder %s67, %s68
    %p80 = scmp.eq.s32.totalorder %s16, 1
    %p81 = por %p79, %p80
    %p83 = scmp.ne.s32.totalorder %s68, %s82
    %p84 = scmp.eq.s32.totalorder %s16, 0
    %p85 = por %p83, %p84
    %s86 = ssub.s32 %s10, %s17
    %p87 = scmp.eq.s32.totalorder %s86, 0
    %s89 = sadd.s32 %s88, 1
    %s90 = scalar_select %p87, %s88, %s89
    %p93 = pneg %p87
    %p94 = scmp.eq.s32.totalorder %s10, 1
    %p95 = por %p93, %p94
    %p96 = scmp.ne.s32.totalorder %s88, %s91
    %p97 = scmp.eq.s32.totalorder %s10, 0
    %p98 = por %p96, %p97
    %p99 = scmp.ne.s32.totalorder %s88, %s91
    %p100 = scmp.eq.s32.totalorder %s15, 1
    %p101 = por %p99, %p100
    %p102 = scmp.ne.s32.totalorder %s91, %s92
    %p103 = scmp.eq.s32.totalorder %s15, 0
    %p104 = por %p102, %p103
    %p105 = scmp.ne.s32.totalorder %s91, %s92
    %p106 = scmp.eq.s32.totalorder %s16, 1
    %p107 = por %p105, %p106
    %p109 = scmp.ne.s32.totalorder %s92, %s108
    %p110 = scmp.eq.s32.totalorder %s16, 0
    %p111 = por %p109, %p110
    %s112 = ssub.s32 %s10, %s17
    %p113 = scmp.eq.s32.totalorder %s112, 0
    %s115 = sadd.s32 %s114, 1
    %s116 = scalar_select %p113, %s114, %s115
    %p119 = pneg %p113
    %p120 = scmp.eq.s32.totalorder %s10, 1
    %p121 = por %p119, %p120
    %p122 = scmp.ne.s32.totalorder %s114, %s117
    %p123 = scmp.eq.s32.totalorder %s10, 0
    %p124 = por %p122, %p123
    %p125 = scmp.ne.s32.totalorder %s114, %s117
    %p126 = scmp.eq.s32.totalorder %s15, 1
    %p127 = por %p125, %p126
    %p128 = scmp.ne.s32.totalorder %s117, %s118
    %p129 = scmp.eq.s32.totalorder %s15, 0
    %p130 = por %p128, %p129
    %p131 = scmp.ne.s32.totalorder %s117, %s118
    %p132 = scmp.eq.s32.totalorder %s16, 1
    %p133 = por %p131, %p132
    %p135 = scmp.ne.s32.totalorder %s118, %s134
    %p136 = scmp.eq.s32.totalorder %s16, 0
    %p137 = por %p135, %p136
    %p138 = scmp.le.s32.totalorder 1, %s10
    %p139 = scmp.lt.s32.totalorder %s10, 3
    %p140 = pnand %p138, %p139
    %p141 = pneg %p140
    // Predicated region
    $region9: #{residual_upsample_block.3} parent=5 // pred_check
      _
    $region10: #{residual_upsample_block.3} parent=5 // pred_check_branch
      %143 = sbr.rel (%p140) target = $region12
    $region11: #{residual_upsample_block.3} parent=5 // pred_region
      %s144 = ssub.s32 %s10, 1
      // Predicated region
      $region13: #{residual_upsample_block.3} parent=11 // pred_check
        %p145 = pneg %p57
      $region14: #{residual_upsample_block.3} parent=11 // pred_check_branch
        %147 = sbr.rel (%p145) target = $region16
      $region15: #{residual_upsample_block.3} parent=11 // pred_region
        _
      $region16: #{residual_upsample_block.3} parent=11 // pred_fallthru
        _
      // Predicated region
      $region17: #{residual_upsample_block.3} parent=11 // pred_check
        %p148 = pneg %p78
      $region18: #{residual_upsample_block.3} parent=11 // pred_check_branch
        %150 = sbr.rel (%p148) target = $region20
      $region19: #{residual_upsample_block.3} parent=11 // pred_region
        _
      $region20: #{residual_upsample_block.3} parent=11 // pred_fallthru
        _
    $region12: #{residual_upsample_block.3} parent=5 // pred_fallthru
      _
    %p151 = scmp.lt.s32.totalorder %s10, 2
    // Predicated region
    $region21: #{residual_upsample_block.3} parent=5 // pred_check
      %p152 = pneg %p151
    $region22: #{residual_upsample_block.3} parent=5 // pred_check_branch
      %154 = sbr.rel (%p152) target = $region24
    $region23: #{residual_upsample_block.3} parent=5 // pred_region
      // Predicated region
      $region25: #{residual_upsample_block.3} parent=23 // pred_check
        %p155 = pneg %p30
      $region26: #{residual_upsample_block.3} parent=23 // pred_check_branch
        %157 = sbr.rel (%p155) target = $region28
      $region27: #{residual_upsample_block.3} parent=23 // pred_region
        %p158 = scmp.lt.s32.totalorder %s10, 1
        %s159 = scalar_select %p158, %s10, 1
        %s160 = smul.addr %s159, 10
        %s161 = smul.addr %s160, 8
        %s162 = scalar_lea.vmem %s0, %s161
      $region28: #{residual_upsample_block.3} parent=23 // pred_fallthru
        _
      // Predicated region
      $region29: #{residual_upsample_block.3} parent=23 // pred_check
        %p163 = pneg %p98
      $region30: #{residual_upsample_block.3} parent=23 // pred_check_branch
        %165 = sbr.rel (%p163) target = $region32
      $region31: #{residual_upsample_block.3} parent=23 // pred_region
        %p166 = scmp.lt.s32.totalorder %s10, 1
        %s167 = scalar_select %p166, %s10, 1
        %s168 = smul.addr %s167, 9
        %s169 = smul.addr %s168, 8
        %s170 = scalar_lea.vmem %s3, %s169
      $region32: #{residual_upsample_block.3} parent=23 // pred_fallthru
        _
    $region24: #{residual_upsample_block.3} parent=5 // pred_fallthru
      _
    %p171 = scmp.le.s32.totalorder 1, %s10
    %p172 = scmp.lt.s32.totalorder %s10, 3
    %p173 = pnand %p171, %p172
    %p174 = pneg %p173
    // Predicated region
    $region33: #{residual_upsample_block.3} parent=5 // pred_check
      _
    $region34: #{residual_upsample_block.3} parent=5 // pred_check_branch
      %176 = sbr.rel (%p173) target = $region36
    $region35: #{residual_upsample_block.3} parent=5 // pred_region
      %s177 = ssub.s32 %s10, 1
      %p178 = scmp.lt.s32.totalorder %s15, 1
      %s179 = scalar_select %p178, %s15, 1
      %s180 = smul.addr %s179, 10
      %s181 = smul.addr %s180, 8
      %s182 = scalar_lea.vmem %s0, %s181
      %p183 = pneg %p36
      %p184 = pneg %p33
      %p185 = pneg %p57
      %p186 = pneg %p54
      %p187 = pneg %p78
      %p188 = pneg %p75
      %p189 = scmp.lt.s32.totalorder %s15, 1
      %s190 = scalar_select %p189, %s15, 1
      %s191 = smul.addr %s190, 9
      %s192 = smul.addr %s191, 8
      %s193 = scalar_lea.vmem %s3, %s192
      %p194 = pneg %p104
      %p195 = pneg %p101
      %p196 = pneg %p130
      %p197 = pneg %p127
      %p198 = scmp.lt.s32.totalorder %s15, 1
      %s199 = scalar_select %p198, %s15, 1
      %s200 = smul.addr %s199, 9
      %s201 = smul.addr %s200, 8
      %s202 = scalar_lea.vmem %s4, %s201
      %p203 = scmp.lt.s32.totalorder %s15, 1
      %s204 = scalar_select %p203, %s15, 1
      %s205 = smul.addr %s204, 10
      %s206 = smul.addr %s205, 8
      %s207 = scalar_lea.vmem %s0, %s206
      %p208 = scmp.lt.s32.totalorder %s15, 1
      %s209 = scalar_select %p208, %s15, 1
      %s210 = smul.addr %s209, 9
      %s211 = smul.addr %s210, 8
      %s212 = scalar_lea.vmem %s3, %s211
      %p213 = scmp.lt.s32.totalorder %s15, 1
      %s214 = scalar_select %p213, %s15, 1
      %s215 = smul.addr %s214, 9
      %s216 = smul.addr %s215, 8
      %s217 = scalar_lea.vmem %s4, %s216
      %v218 = vld [vmem:[%s1] sm:$0xff]
      %v219 = vld [vmem:[%s207] sm:$0xff]
      %v220 = vld [vmem:[%s207 + $0x8] sm:$0xff]
      %v221 = vld [vmem:[%s207 + $0x10] sm:$0xff]
      %v222 = vld [vmem:[%s207 + $0x18] sm:$0xff]
      %v223 = vld [vmem:[%s207 + $0x20] sm:$0xff]
      %v224 = vld [vmem:[%s207 + $0x28] sm:$0xff]
      %v225 = vld [vmem:[%s207 + $0x30] sm:$0xff]
      %v226 = vld [vmem:[%s207 + $0x38] sm:$0xff]
      %v227 = vld [vmem:[%s207 + $0x40] sm:$0xff]
      %s228 = scalar_lea.vmem %s1, 8
      %v229 = vld [vmem:[%s228] sm:$0xff]
      %239 = vrot.lane.b32.xlu0 %v219, 127
      %v240 = vpop.permute.xlu0 %239
      %241 = vrot.lane.b32.xlu0 %v220, 127
      %v242 = vpop.permute.xlu0 %241
      %243 = vrot.lane.b32.xlu0 %v221, 127
      %v244 = vpop.permute.xlu0 %243
      %245 = vrot.lane.b32.xlu0 %v222, 127
      %v246 = vpop.permute.xlu0 %245
      %247 = vrot.lane.b32.xlu0 %v223, 127
      %v248 = vpop.permute.xlu0 %247
      %249 = vrot.lane.b32.xlu0 %v224, 127
      %v250 = vpop.permute.xlu0 %249
      %251 = vrot.lane.b32.xlu0 %v225, 127
      %v252 = vpop.permute.xlu0 %251
      %253 = vrot.lane.b32.xlu0 %v226, 127
      %v254 = vpop.permute.xlu0 %253
      %255 = vrot.lane.b32.xlu0 %v227, 127
      %v256 = vpop.permute.xlu0 %255
      %vm257 = vcmask 1039360
      %v258 = vsel %vm257, %v240, %v242
      %v259 = vsel %vm257, %v242, %v244
      %v260 = vsel %vm257, %v244, %v246
      %v261 = vsel %vm257, %v246, %v248
      %v262 = vsel %vm257, %v248, %v250
      %v263 = vsel %vm257, %v250, %v252
      %v264 = vsel %vm257, %v252, %v254
      %v265 = vsel %vm257, %v254, %v256
      %vm275 = vcmask 64512
      %v277 = vsel %vm275, %v229, 0
      %279 = vmatprep.subr.mxu0 %v259
      %280 = vmatpush1.msra.mxu0 %v258
      %281 = vmatprep.subr.mxu0 0.0
      %282 = vmatpush1.msra.mxu0 0.0
      %283 = vmatprep.subr.mxu0 0.0
      %284 = vmatpush1.msra.mxu0 0.0
      %285 = vmatprep.subr.mxu0 0.0
      %286 = vmatpush1.msra.mxu0 0.0
      %287 = vmatprep.subr.mxu0 0.0
      %288 = vmatpush1.msra.mxu0 0.0
      %289 = vmatprep.subr.mxu0 0.0
      %290 = vmatpush1.msra.mxu0 0.0
      %291 = vmatprep.subr.mxu0 0.0
      %292 = vmatpush1.msra.mxu0 0.0
      %293 = vmatprep.subr.mxu0 0.0
      %294 = vmatpush1.msra.mxu0 0.0
      %295 = vmatprep.subr.mxu0 0.0
      %296 = vmatpush1.msra.mxu0 0.0
      %297 = vmatprep.subr.mxu0 0.0
      %298 = vmatpush1.msra.mxu0 0.0
      %299 = vmatprep.subr.mxu0 0.0
      %300 = vmatpush1.msra.mxu0 0.0
      %301 = vmatprep.subr.mxu0 0.0
      %302 = vmatpush1.msra.mxu0 0.0
      %303 = vmatprep.subr.mxu0 0.0
      %304 = vmatpush1.msra.mxu0 0.0
      %305 = vmatprep.subr.mxu0 0.0
      %306 = vmatpush1.msra.mxu0 0.0
      %307 = vmatprep.subr.mxu0 0.0
      %308 = vmatpush1.msra.mxu0 0.0
      %309 = vmatprep.subr.mxu0 0.0
      %310 = vmatpush1.msra.mxu0 0.0
      %311 = vmatprep.subr.mxu0 0.0
      %312 = vmatpush1.msra.mxu0 0.0
      %313 = vmatprep.subr.mxu0 0.0
      %314 = vmatpush1.msra.mxu0 0.0
      %315 = vmatprep.subr.mxu0 0.0
      %316 = vmatpush1.msra.mxu0 0.0
      %317 = vmatprep.subr.mxu0 0.0
      %318 = vmatpush1.msra.mxu0 0.0
      %319 = vmatprep.subr.mxu0 0.0
      %320 = vmatpush1.msra.mxu0 0.0
      %321 = vmatprep.subr.mxu0 0.0
      %322 = vmatpush1.msra.mxu0 0.0
      %323 = vmatprep.subr.mxu0 0.0
      %324 = vmatpush1.msra.mxu0 0.0
      %325 = vmatprep.subr.mxu0 0.0
      %326 = vmatpush1.msra.mxu0 0.0
      %327 = vmatprep.subr.mxu0 0.0
      %328 = vmatpush1.msra.mxu0 0.0
      %329 = vmatprep.subr.mxu0 0.0
      %330 = vmatpush1.msra.mxu0 0.0
      %331 = vmatprep.subr.mxu0 0.0
      %332 = vmatpush1.msra.mxu0 0.0
      %333 = vmatprep.subr.mxu0 0.0
      %334 = vmatpush1.msra.mxu0 0.0
      %335 = vmatprep.subr.mxu0 0.0
      %336 = vmatpush1.msra.mxu0 0.0
      %337 = vmatprep.subr.mxu0 0.0
      %338 = vmatpush1.msra.mxu0 0.0
      %339 = vmatprep.subr.mxu0 0.0
      %340 = vmatpush1.msra.mxu0 0.0
      %341 = vmatprep.subr.mxu0 0.0
      %342 = vmatpush1.msra.mxu0 0.0
      %343 = vmatprep.mubr.f32.mxu0 0.0
      %344 = vmatmul.mubr.f32.gmra.mrb[0].mxu0 %v277
      %v345 = vpop.f32.mrb[0].mxu0
      %v346 = vadd.f32 0.0, %v345
      %v347 = vpop.f32.mrb[0].mxu0
      %v348 = vadd.f32 0.0, %v347
      %349 = vdwg.mxu0
      %350 = vmatprep.subr.mxu0 %v261
      %351 = vmatpush1.msra.mxu0 %v260
      %352 = vmatprep.subr.mxu0 0.0
      %353 = vmatpush1.msra.mxu0 0.0
      %354 = vmatprep.subr.mxu0 0.0
      %355 = vmatpush1.msra.mxu0 0.0
      %356 = vmatprep.subr.mxu0 0.0
      %357 = vmatpush1.msra.mxu0 0.0
      %358 = vmatprep.subr.mxu0 0.0
      %359 = vmatpush1.msra.mxu0 0.0
      %360 = vmatprep.subr.mxu0 0.0
      %361 = vmatpush1.msra.mxu0 0.0
      %362 = vmatprep.subr.mxu0 0.0
      %363 = vmatpush1.msra.mxu0 0.0
      %364 = vmatprep.subr.mxu0 0.0
      %365 = vmatpush1.msra.mxu0 0.0
      %366 = vmatprep.subr.mxu0 0.0
      %367 = vmatpush1.msra.mxu0 0.0
      %368 = vmatprep.subr.mxu0 0.0
      %369 = vmatpush1.msra.mxu0 0.0
      %370 = vmatprep.subr.mxu0 0.0
      %371 = vmatpush1.msra.mxu0 0.0
      %372 = vmatprep.subr.mxu0 0.0
      %373 = vmatpush1.msra.mxu0 0.0
      %374 = vmatprep.subr.mxu0 0.0
      %375 = vmatpush1.msra.mxu0 0.0
      %376 = vmatprep.subr.mxu0 0.0
      %377 = vmatpush1.msra.mxu0 0.0
      %378 = vmatprep.subr.mxu0 0.0
      %379 = vmatpush1.msra.mxu0 0.0
      %380 = vmatprep.subr.mxu0 0.0
      %381 = vmatpush1.msra.mxu0 0.0
      %382 = vmatprep.subr.mxu0 0.0
      %383 = vmatpush1.msra.mxu0 0.0
      %384 = vmatprep.subr.mxu0 0.0
      %385 = vmatpush1.msra.mxu0 0.0
      %386 = vmatprep.subr.mxu0 0.0
      %387 = vmatpush1.msra.mxu0 0.0
      %388 = vmatprep.subr.mxu0 0.0
      %389 = vmatpush1.msra.mxu0 0.0
      %390 = vmatprep.subr.mxu0 0.0
      %391 = vmatpush1.msra.mxu0 0.0
      %392 = vmatprep.subr.mxu0 0.0
      %393 = vmatpush1.msra.mxu0 0.0
      %394 = vmatprep.subr.mxu0 0.0
      %395 = vmatpush1.msra.mxu0 0.0
      %396 = vmatprep.subr.mxu0 0.0
      %397 = vmatpush1.msra.mxu0 0.0
      %398 = vmatprep.subr.mxu0 0.0
      %399 = vmatpush1.msra.mxu0 0.0
      %400 = vmatprep.subr.mxu0 0.0
      %401 = vmatpush1.msra.mxu0 0.0
      %402 = vmatprep.subr.mxu0 0.0
      %403 = vmatpush1.msra.mxu0 0.0
      %404 = vmatprep.subr.mxu0 0.0
      %405 = vmatpush1.msra.mxu0 0.0
      %406 = vmatprep.subr.mxu0 0.0
      %407 = vmatpush1.msra.mxu0 0.0
      %408 = vmatprep.subr.mxu0 0.0
      %409 = vmatpush1.msra.mxu0 0.0
      %410 = vmatprep.subr.mxu0 0.0
      %411 = vmatpush1.msra.mxu0 0.0
      %412 = vmatprep.subr.mxu0 0.0
      %413 = vmatpush1.msra.mxu0 0.0
      %414 = vmatprep.mubr.f32.mxu0 0.0
      %415 = vmatmul.mubr.f32.gmra.mrb[0].mxu0 %v277
      %v416 = vpop.f32.mrb[0].mxu0
      %v417 = vadd.f32 0.0, %v416
      %v418 = vpop.f32.mrb[0].mxu0
      %v419 = vadd.f32 0.0, %v418
      %420 = vdwg.mxu0
      %421 = vmatprep.subr.mxu0 %v263
      %422 = vmatpush1.msra.mxu0 %v262
      %423 = vmatprep.subr.mxu0 0.0
      %424 = vmatpush1.msra.mxu0 0.0
      %425 = vmatprep.subr.mxu0 0.0
      %426 = vmatpush1.msra.mxu0 0.0
      %427 = vmatprep.subr.mxu0 0.0
      %428 = vmatpush1.msra.mxu0 0.0
      %429 = vmatprep.subr.mxu0 0.0
      %430 = vmatpush1.msra.mxu0 0.0
      %431 = vmatprep.subr.mxu0 0.0
      %432 = vmatpush1.msra.mxu0 0.0
      %433 = vmatprep.subr.mxu0 0.0
      %434 = vmatpush1.msra.mxu0 0.0
      %435 = vmatprep.subr.mxu0 0.0
      %436 = vmatpush1.msra.mxu0 0.0
      %437 = vmatprep.subr.mxu0 0.0
      %438 = vmatpush1.msra.mxu0 0.0
      %439 = vmatprep.subr.mxu0 0.0
      %440 = vmatpush1.msra.mxu0 0.0
      %441 = vmatprep.subr.mxu0 0.0
      %442 = vmatpush1.msra.mxu0 0.0
      %443 = vmatprep.subr.mxu0 0.0
      %444 = vmatpush1.msra.mxu0 0.0
      %445 = vmatprep.subr.mxu0 0.0
      %446 = vmatpush1.msra.mxu0 0.0
      %447 = vmatprep.subr.mxu0 0.0
      %448 = vmatpush1.msra.mxu0 0.0
      %449 = vmatprep.subr.mxu0 0.0
      %450 = vmatpush1.msra.mxu0 0.0
      %451 = vmatprep.subr.mxu0 0.0
      %452 = vmatpush1.msra.mxu0 0.0
      %453 = vmatprep.subr.mxu0 0.0
      %454 = vmatpush1.msra.mxu0 0.0
      %455 = vmatprep.subr.mxu0 0.0
      %456 = vmatpush1.msra.mxu0 0.0
      %457 = vmatprep.subr.mxu0 0.0
      %458 = vmatpush1.msra.mxu0 0.0
      %459 = vmatprep.subr.mxu0 0.0
      %460 = vmatpush1.msra.mxu0 0.0
      %461 = vmatprep.subr.mxu0 0.0
      %462 = vmatpush1.msra.mxu0 0.0
      %463 = vmatprep.subr.mxu0 0.0
      %464 = vmatpush1.msra.mxu0 0.0
      %465 = vmatprep.subr.mxu0 0.0
      %466 = vmatpush1.msra.mxu0 0.0
      %467 = vmatprep.subr.mxu0 0.0
      %468 = vmatpush1.msra.mxu0 0.0
      %469 = vmatprep.subr.mxu0 0.0
      %470 = vmatpush1.msra.mxu0 0.0
      %471 = vmatprep.subr.mxu0 0.0
      %472 = vmatpush1.msra.mxu0 0.0
      %473 = vmatprep.subr.mxu0 0.0
      %474 = vmatpush1.msra.mxu0 0.0
      %475 = vmatprep.subr.mxu0 0.0
      %476 = vmatpush1.msra.mxu0 0.0
      %477 = vmatprep.subr.mxu0 0.0
      %478 = vmatpush1.msra.mxu0 0.0
      %479 = vmatprep.subr.mxu0 0.0
      %480 = vmatpush1.msra.mxu0 0.0
      %481 = vmatprep.subr.mxu0 0.0
      %482 = vmatpush1.msra.mxu0 0.0
      %483 = vmatprep.subr.mxu0 0.0
      %484 = vmatpush1.msra.mxu0 0.0
      %485 = vmatprep.mubr.f32.mxu0 0.0
      %486 = vmatmul.mubr.f32.gmra.mrb[0].mxu0 %v277
      %v487 = vpop.f32.mrb[0].mxu0
      %v488 = vadd.f32 0.0, %v487
      %v489 = vpop.f32.mrb[0].mxu0
      %v490 = vadd.f32 0.0, %v489
      %491 = vdwg.mxu0
      %492 = vmatprep.subr.mxu0 %v265
      %493 = vmatpush1.msra.mxu0 %v264
      %494 = vmatprep.subr.mxu0 0.0
      %495 = vmatpush1.msra.mxu0 0.0
      %496 = vmatprep.subr.mxu0 0.0
      %497 = vmatpush1.msra.mxu0 0.0
      %498 = vmatprep.subr.mxu0 0.0
      %499 = vmatpush1.msra.mxu0 0.0
      %500 = vmatprep.subr.mxu0 0.0
      %501 = vmatpush1.msra.mxu0 0.0
      %502 = vmatprep.subr.mxu0 0.0
      %503 = vmatpush1.msra.mxu0 0.0
      %504 = vmatprep.subr.mxu0 0.0
      %505 = vmatpush1.msra.mxu0 0.0
      %506 = vmatprep.subr.mxu0 0.0
      %507 = vmatpush1.msra.mxu0 0.0
      %508 = vmatprep.subr.mxu0 0.0
      %509 = vmatpush1.msra.mxu0 0.0
      %510 = vmatprep.subr.mxu0 0.0
      %511 = vmatpush1.msra.mxu0 0.0
      %512 = vmatprep.subr.mxu0 0.0
      %513 = vmatpush1.msra.mxu0 0.0
      %514 = vmatprep.subr.mxu0 0.0
      %515 = vmatpush1.msra.mxu0 0.0
      %516 = vmatprep.subr.mxu0 0.0
      %517 = vmatpush1.msra.mxu0 0.0
      %518 = vmatprep.subr.mxu0 0.0
      %519 = vmatpush1.msra.mxu0 0.0
      %520 = vmatprep.subr.mxu0 0.0
      %521 = vmatpush1.msra.mxu0 0.0
      %522 = vmatprep.subr.mxu0 0.0
      %523 = vmatpush1.msra.mxu0 0.0
      %524 = vmatprep.subr.mxu0 0.0
      %525 = vmatpush1.msra.mxu0 0.0
      %526 = vmatprep.subr.mxu0 0.0
      %527 = vmatpush1.msra.mxu0 0.0
      %528 = vmatprep.subr.mxu0 0.0
      %529 = vmatpush1.msra.mxu0 0.0
      %530 = vmatprep.subr.mxu0 0.0
      %531 = vmatpush1.msra.mxu0 0.0
      %532 = vmatprep.subr.mxu0 0.0
      %533 = vmatpush1.msra.mxu0 0.0
      %534 = vmatprep.subr.mxu0 0.0
      %535 = vmatpush1.msra.mxu0 0.0
      %536 = vmatprep.subr.mxu0 0.0
      %537 = vmatpush1.msra.mxu0 0.0
      %538 = vmatprep.subr.mxu0 0.0
      %539 = vmatpush1.msra.mxu0 0.0
      %540 = vmatprep.subr.mxu0 0.0
      %541 = vmatpush1.msra.mxu0 0.0
      %542 = vmatprep.subr.mxu0 0.0
      %543 = vmatpush1.msra.mxu0 0.0
      %544 = vmatprep.subr.mxu0 0.0
      %545 = vmatpush1.msra.mxu0 0.0
      %546 = vmatprep.subr.mxu0 0.0
      %547 = vmatpush1.msra.mxu0 0.0
      %548 = vmatprep.subr.mxu0 0.0
      %549 = vmatpush1.msra.mxu0 0.0
      %550 = vmatprep.subr.mxu0 0.0
      %551 = vmatpush1.msra.mxu0 0.0
      %552 = vmatprep.subr.mxu0 0.0
      %553 = vmatpush1.msra.mxu0 0.0
      %554 = vmatprep.subr.mxu0 0.0
      %555 = vmatpush1.msra.mxu0 0.0
      %556 = vmatprep.mubr.f32.mxu0 0.0
      %557 = vmatmul.mubr.f32.gmra.mrb[0].mxu0 %v277
      %v558 = vpop.f32.mrb[0].mxu0
      %v559 = vadd.f32 0.0, %v558
      %v560 = vpop.f32.mrb[0].mxu0
      %v561 = vadd.f32 0.0, %v560
      %562 = vdwg.mxu0
      %563 = vmatprep.subr.mxu0 0.0
      %564 = vmatpush1.msra.mxu0 %v256
      %565 = vmatprep.subr.mxu0 0.0
      %566 = vmatpush1.msra.mxu0 0.0
      %567 = vmatprep.subr.mxu0 0.0
      %568 = vmatpush1.msra.mxu0 0.0
      %569 = vmatprep.subr.mxu0 0.0
      %570 = vmatpush1.msra.mxu0 0.0
      %571 = vmatprep.subr.mxu0 0.0
      %572 = vmatpush1.msra.mxu0 0.0
      %573 = vmatprep.subr.mxu0 0.0
      %574 = vmatpush1.msra.mxu0 0.0
      %575 = vmatprep.subr.mxu0 0.0
      %576 = vmatpush1.msra.mxu0 0.0
      %577 = vmatprep.subr.mxu0 0.0
      %578 = vmatpush1.msra.mxu0 0.0
      %579 = vmatprep.subr.mxu0 0.0
      %580 = vmatpush1.msra.mxu0 0.0
      %581 = vmatprep.subr.mxu0 0.0
      %582 = vmatpush1.msra.mxu0 0.0
      %583 = vmatprep.subr.mxu0 0.0
      %584 = vmatpush1.msra.mxu0 0.0
      %585 = vmatprep.subr.mxu0 0.0
      %586 = vmatpush1.msra.mxu0 0.0
      %587 = vmatprep.subr.mxu0 0.0
      %588 = vmatpush1.msra.mxu0 0.0
      %589 = vmatprep.subr.mxu0 0.0
      %590 = vmatpush1.msra.mxu0 0.0
      %591 = vmatprep.subr.mxu0 0.0
      %592 = vmatpush1.msra.mxu0 0.0
      %593 = vmatprep.subr.mxu0 0.0
      %594 = vmatpush1.msra.mxu0 0.0
      %595 = vmatprep.subr.mxu0 0.0
      %596 = vmatpush1.msra.mxu0 0.0
      %597 = vmatprep.subr.mxu0 0.0
      %598 = vmatpush1.msra.mxu0 0.0
      %599 = vmatprep.subr.mxu0 0.0
      %600 = vmatpush1.msra.mxu0 0.0
      %601 = vmatprep.subr.mxu0 0.0
      %602 = vmatpush1.msra.mxu0 0.0
      %603 = vmatprep.subr.mxu0 0.0
      %604 = vmatpush1.msra.mxu0 0.0
      %605 = vmatprep.subr.mxu0 0.0
      %606 = vmatpush1.msra.mxu0 0.0
      %607 = vmatprep.subr.mxu0 0.0
      %608 = vmatpush1.msra.mxu0 0.0
      %609 = vmatprep.subr.mxu0 0.0
      %610 = vmatpush1.msra.mxu0 0.0
      %611 = vmatprep.subr.mxu0 0.0
      %612 = vmatpush1.msra.mxu0 0.0
      %613 = vmatprep.subr.mxu0 0.0
      %614 = vmatpush1.msra.mxu0 0.0
      %615 = vmatprep.subr.mxu0 0.0
      %616 = vmatpush1.msra.mxu0 0.0
      %617 = vmatprep.subr.mxu0 0.0
      %618 = vmatpush1.msra.mxu0 0.0
      %619 = vmatprep.subr.mxu0 0.0
      %620 = vmatpush1.msra.mxu0 0.0
      %621 = vmatprep.subr.mxu0 0.0
      %622 = vmatpush1.msra.mxu0 0.0
      %623 = vmatprep.subr.mxu0 0.0
      %624 = vmatpush1.msra.mxu0 0.0
      %625 = vmatprep.subr.mxu0 0.0
      %626 = vmatpush1.msra.mxu0 0.0
      %627 = vmatprep.mubr.f32.mxu0 0.0
      %628 = vmatmul.mubr.f32.gmra.mrb[0].mxu0 %v277
      %v629 = vpop.f32.mrb[0].mxu0
      %v630 = vadd.f32 0.0, %v629
      %v631 = vpop.f32.mrb[0].mxu0
      %632 = vdwg.mxu0
      %v634 = vsel %vm275, %v218, 0
      %636 = vmatprep.subr.mxu0 %v220
      %637 = vmatpush1.msra.mxu0 %v219
      %638 = vmatprep.subr.mxu0 0.0
      %639 = vmatpush1.msra.mxu0 0.0
      %640 = vmatprep.subr.mxu0 0.0
      %641 = vmatpush1.msra.mxu0 0.0
      %642 = vmatprep.subr.mxu0 0.0
      %643 = vmatpush1.msra.mxu0 0.0
      %644 = vmatprep.subr.mxu0 0.0
      %645 = vmatpush1.msra.mxu0 0.0
      %646 = vmatprep.subr.mxu0 0.0
      %647 = vmatpush1.msra.mxu0 0.0
      %648 = vmatprep.subr.mxu0 0.0
      %649 = vmatpush1.msra.mxu0 0.0
      %650 = vmatprep.subr.mxu0 0.0
      %651 = vmatpush1.msra.mxu0 0.0
      %652 = vmatprep.subr.mxu0 0.0
      %653 = vmatpush1.msra.mxu0 0.0
      %654 = vmatprep.subr.mxu0 0.0
      %655 = vmatpush1.msra.mxu0 0.0
      %656 = vmatprep.subr.mxu0 0.0
      %657 = vmatpush1.msra.mxu0 0.0
      %658 = vmatprep.subr.mxu0 0.0
      %659 = vmatpush1.msra.mxu0 0.0
      %660 = vmatprep.subr.mxu0 0.0
      %661 = vmatpush1.msra.mxu0 0.0
      %662 = vmatprep.subr.mxu0 0.0
      %663 = vmatpush1.msra.mxu0 0.0
      %664 = vmatprep.subr.mxu0 0.0
      %665 = vmatpush1.msra.mxu0 0.0
      %666 = vmatprep.subr.mxu0 0.0
      %667 = vmatpush1.msra.mxu0 0.0
      %668 = vmatprep.subr.mxu0 0.0
      %669 = vmatpush1.msra.mxu0 0.0
      %670 = vmatprep.subr.mxu0 0.0
      %671 = vmatpush1.msra.mxu0 0.0
      %672 = vmatprep.subr.mxu0 0.0
      %673 = vmatpush1.msra.mxu0 0.0
      %674 = vmatprep.subr.mxu0 0.0
      %675 = vmatpush1.msra.mxu0 0.0
      %676 = vmatprep.subr.mxu0 0.0
      %677 = vmatpush1.msra.mxu0 0.0
      %678 = vmatprep.subr.mxu0 0.0
      %679 = vmatpush1.msra.mxu0 0.0
      %680 = vmatprep.subr.mxu0 0.0
      %681 = vmatpush1.msra.mxu0 0.0
      %682 = vmatprep.subr.mxu0 0.0
      %683 = vmatpush1.msra.mxu0 0.0
      %684 = vmatprep.subr.mxu0 0.0
      %685 = vmatpush1.msra.mxu0 0.0
      %686 = vmatprep.subr.mxu0 0.0
      %687 = vmatpush1.msra.mxu0 0.0
      %688 = vmatprep.subr.mxu0 0.0
      %689 = vmatpush1.msra.mxu0 0.0
      %690 = vmatprep.subr.mxu0 0.0
      %691 = vmatpush1.msra.mxu0 0.0
      %692 = vmatprep.subr.mxu0 0.0
      %693 = vmatpush1.msra.mxu0 0.0
      %694 = vmatprep.subr.mxu0 0.0
      %695 = vmatpush1.msra.mxu0 0.0
      %696 = vmatprep.subr.mxu0 0.0
      %697 = vmatpush1.msra.mxu0 0.0
      %698 = vmatprep.subr.mxu0 0.0
      %699 = vmatpush1.msra.mxu0 0.0
      %700 = vmatprep.mubr.f32.mxu0 0.0
      %701 = vmatmul.mubr.f32.gmra.mrb[0].mxu0 %v634
      %v702 = vpop.f32.mrb[0].mxu0
      %v703 = vadd.f32 %v346, %v702
      %v704 = vpop.f32.mrb[0].mxu0
      %v705 = vadd.f32 %v348, %v704
      %706 = vdwg.mxu0
      %707 = vmatprep.subr.mxu0 %v222
      %708 = vmatpush1.msra.mxu0 %v221
      %709 = vmatprep.subr.mxu0 0.0
      %710 = vmatpush1.msra.mxu0 0.0
      %711 = vmatprep.subr.mxu0 0.0
      %712 = vmatpush1.msra.mxu0 0.0
      %713 = vmatprep.subr.mxu0 0.0
      %714 = vmatpush1.msra.mxu0 0.0
      %715 = vmatprep.subr.mxu0 0.0
      %716 = vmatpush1.msra.mxu0 0.0
      %717 = vmatprep.subr.mxu0 0.0
      %718 = vmatpush1.msra.mxu0 0.0
      %719 = vmatprep.subr.mxu0 0.0
      %720 = vmatpush1.msra.mxu0 0.0
      %721 = vmatprep.subr.mxu0 0.0
      %722 = vmatpush1.msra.mxu0 0.0
      %723 = vmatprep.subr.mxu0 0.0
      %724 = vmatpush1.msra.mxu0 0.0
      %725 = vmatprep.subr.mxu0 0.0
      %726 = vmatpush1.msra.mxu0 0.0
      %727 = vmatprep.subr.mxu0 0.0
      %728 = vmatpush1.msra.mxu0 0.0
      %729 = vmatprep.subr.mxu0 0.0
      %730 = vmatpush1.msra.mxu0 0.0
      %731 = vmatprep.subr.mxu0 0.0
      %732 = vmatpush1.msra.mxu0 0.0
      %733 = vmatprep.subr.mxu0 0.0
      %734 = vmatpush1.msra.mxu0 0.0
      %735 = vmatprep.subr.mxu0 0.0
      %736 = vmatpush1.msra.mxu0 0.0
      %737 = vmatprep.subr.mxu0 0.0
      %738 = vmatpush1.msra.mxu0 0.0
      %739 = vmatprep.subr.mxu0 0.0
      %740 = vmatpush1.msra.mxu0 0.0
      %741 = vmatprep.subr.mxu0 0.0
      %742 = vmatpush1.msra.mxu0 0.0
      %743 = vmatprep.subr.mxu0 0.0
      %744 = vmatpush1.msra.mxu0 0.0
      %745 = vmatprep.subr.mxu0 0.0
      %746 = vmatpush1.msra.mxu0 0.0
      %747 = vmatprep.subr.mxu0 0.0
      %748 = vmatpush1.msra.mxu0 0.0
      %749 = vmatprep.subr.mxu0 0.0
      %750 = vmatpush1.msra.mxu0 0.0
      %751 = vmatprep.subr.mxu0 0.0
      %752 = vmatpush1.msra.mxu0 0.0
      %753 = vmatprep.subr.mxu0 0.0
      %754 = vmatpush1.msra.mxu0 0.0
      %755 = vmatprep.subr.mxu0 0.0
      %756 = vmatpush1.msra.mxu0 0.0
      %757 = vmatprep.subr.mxu0 0.0
      %758 = vmatpush1.msra.mxu0 0.0
      %759 = vmatprep.subr.mxu0 0.0
      %760 = vmatpush1.msra.mxu0 0.0
      %761 = vmatprep.subr.mxu0 0.0
      %762 = vmatpush1.msra.mxu0 0.0
      %763 = vmatprep.subr.mxu0 0.0
      %764 = vmatpush1.msra.mxu0 0.0
      %765 = vmatprep.subr.mxu0 0.0
      %766 = vmatpush1.msra.mxu0 0.0
      %767 = vmatprep.subr.mxu0 0.0
      %768 = vmatpush1.msra.mxu0 0.0
      %769 = vmatprep.subr.mxu0 0.0
      %770 = vmatpush1.msra.mxu0 0.0
      %771 = vmatprep.mubr.f32.mxu0 0.0
      %772 = vmatmul.mubr.f32.gmra.mrb[0].mxu0 %v634
      %v773 = vpop.f32.mrb[0].mxu0
      %v774 = vadd.f32 %v417, %v773
      %v775 = vpop.f32.mrb[0].mxu0
      %v776 = vadd.f32 %v419, %v775
      %777 = vdwg.mxu0
      %778 = vmatprep.subr.mxu0 %v224
      %779 = vmatpush1.msra.mxu0 %v223
      %780 = vmatprep.subr.mxu0 0.0
      %781 = vmatpush1.msra.mxu0 0.0
      %782 = vmatprep.subr.mxu0 0.0
      %783 = vmatpush1.msra.mxu0 0.0
      %784 = vmatprep.subr.mxu0 0.0
      %785 = vmatpush1.msra.mxu0 0.0
      %786 = vmatprep.subr.mxu0 0.0
      %787 = vmatpush1.msra.mxu0 0.0
      %788 = vmatprep.subr.mxu0 0.0
      %789 = vmatpush1.msra.mxu0 0.0
      %790 = vmatprep.subr.mxu0 0.0
      %791 = vmatpush1.msra.mxu0 0.0
      %792 = vmatprep.subr.mxu0 0.0
      %793 = vmatpush1.msra.mxu0 0.0
      %794 = vmatprep.subr.mxu0 0.0
      %795 = vmatpush1.msra.mxu0 0.0
      %796 = vmatprep.subr.mxu0 0.0
      %797 = vmatpush1.msra.mxu0 0.0
      %798 = vmatprep.subr.mxu0 0.0
      %799 = vmatpush1.msra.mxu0 0.0
      %800 = vmatprep.subr.mxu0 0.0
      %801 = vmatpush1.msra.mxu0 0.0
      %802 = vmatprep.subr.mxu0 0.0
      %803 = vmatpush1.msra.mxu0 0.0
      %804 = vmatprep.subr.mxu0 0.0
      %805 = vmatpush1.msra.mxu0 0.0
      %806 = vmatprep.subr.mxu0 0.0
      %807 = vmatpush1.msra.mxu0 0.0
      %808 = vmatprep.subr.mxu0 0.0
      %809 = vmatpush1.msra.mxu0 0.0
      %810 = vmatprep.subr.mxu0 0.0
      %811 = vmatpush1.msra.mxu0 0.0
      %812 = vmatprep.subr.mxu0 0.0
      %813 = vmatpush1.msra.mxu0 0.0
      %814 = vmatprep.subr.mxu0 0.0
      %815 = vmatpush1.msra.mxu0 0.0
      %816 = vmatprep.subr.mxu0 0.0
      %817 = vmatpush1.msra.mxu0 0.0
      %818 = vmatprep.subr.mxu0 0.0
      %819 = vmatpush1.msra.mxu0 0.0
      %820 = vmatprep.subr.mxu0 0.0
      %821 = vmatpush1.msra.mxu0 0.0
      %822 = vmatprep.subr.mxu0 0.0
      %823 = vmatpush1.msra.mxu0 0.0
      %824 = vmatprep.subr.mxu0 0.0
      %825 = vmatpush1.msra.mxu0 0.0
      %826 = vmatprep.subr.mxu0 0.0
      %827 = vmatpush1.msra.mxu0 0.0
      %828 = vmatprep.subr.mxu0 0.0
      %829 = vmatpush1.msra.mxu0 0.0
      %830 = vmatprep.subr.mxu0 0.0
      %831 = vmatpush1.msra.mxu0 0.0
      %832 = vmatprep.subr.mxu0 0.0
      %833 = vmatpush1.msra.mxu0 0.0
      %834 = vmatprep.subr.mxu0 0.0
      %835 = vmatpush1.msra.mxu0 0.0
      %836 = vmatprep.subr.mxu0 0.0
      %837 = vmatpush1.msra.mxu0 0.0
      %838 = vmatprep.subr.mxu0 0.0
      %839 = vmatpush1.msra.mxu0 0.0
      %840 = vmatprep.subr.mxu0 0.0
      %841 = vmatpush1.msra.mxu0 0.0
      %842 = vmatprep.mubr.f32.mxu0 0.0
      %843 = vmatmul.mubr.f32.gmra.mrb[0].mxu0 %v634
      %v844 = vpop.f32.mrb[0].mxu0
      %v845 = vadd.f32 %v488, %v844
      %v846 = vpop.f32.mrb[0].mxu0
      %v847 = vadd.f32 %v490, %v846
      %848 = vdwg.mxu0
      %849 = vmatprep.subr.mxu0 %v226
      %850 = vmatpush1.msra.mxu0 %v225
      %851 = vmatprep.subr.mxu0 0.0
      %852 = vmatpush1.msra.mxu0 0.0
      %853 = vmatprep.subr.mxu0 0.0
      %854 = vmatpush1.msra.mxu0 0.0
      %855 = vmatprep.subr.mxu0 0.0
      %856 = vmatpush1.msra.mxu0 0.0
      %857 = vmatprep.subr.mxu0 0.0
      %858 = vmatpush1.msra.mxu0 0.0
      %859 = vmatprep.subr.mxu0 0.0
      %860 = vmatpush1.msra.mxu0 0.0
      %861 = vmatprep.subr.mxu0 0.0
      %862 = vmatpush1.msra.mxu0 0.0
      %863 = vmatprep.subr.mxu0 0.0
      %864 = vmatpush1.msra.mxu0 0.0
      %865 = vmatprep.subr.mxu0 0.0
      %866 = vmatpush1.msra.mxu0 0.0
      %867 = vmatprep.subr.mxu0 0.0
      %868 = vmatpush1.msra.mxu0 0.0
      %869 = vmatprep.subr.mxu0 0.0
      %870 = vmatpush1.msra.mxu0 0.0
      %871 = vmatprep.subr.mxu0 0.0
      %872 = vmatpush1.msra.mxu0 0.0
      %873 = vmatprep.subr.mxu0 0.0
      %874 = vmatpush1.msra.mxu0 0.0
      %875 = vmatprep.subr.mxu0 0.0
      %876 = vmatpush1.msra.mxu0 0.0
      %877 = vmatprep.subr.mxu0 0.0
      %878 = vmatpush1.msra.mxu0 0.0
      %879 = vmatprep.subr.mxu0 0.0
      %880 = vmatpush1.msra.mxu0 0.0
      %881 = vmatprep.subr.mxu0 0.0
      %882 = vmatpush1.msra.mxu0 0.0
      %883 = vmatprep.subr.mxu0 0.0
      %884 = vmatpush1.msra.mxu0 0.0
      %885 = vmatprep.subr.mxu0 0.0
      %886 = vmatpush1.msra.mxu0 0.0
      %887 = vmatprep.subr.mxu0 0.0
      %888 = vmatpush1.msra.mxu0 0.0
      %889 = vmatprep.subr.mxu0 0.0
      %890 = vmatpush1.msra.mxu0 0.0
      %891 = vmatprep.subr.mxu0 0.0
      %892 = vmatpush1.msra.mxu0 0.0
      %893 = vmatprep.subr.mxu0 0.0
      %894 = vmatpush1.msra.mxu0 0.0
      %895 = vmatprep.subr.mxu0 0.0
      %896 = vmatpush1.msra.mxu0 0.0
      %897 = vmatprep.subr.mxu0 0.0
      %898 = vmatpush1.msra.mxu0 0.0
      %899 = vmatprep.subr.mxu0 0.0
      %900 = vmatpush1.msra.mxu0 0.0
      %901 = vmatprep.subr.mxu0 0.0
      %902 = vmatpush1.msra.mxu0 0.0
      %903 = vmatprep.subr.mxu0 0.0
      %904 = vmatpush1.msra.mxu0 0.0
      %905 = vmatprep.subr.mxu0 0.0
      %906 = vmatpush1.msra.mxu0 0.0
      %907 = vmatprep.subr.mxu0 0.0
      %908 = vmatpush1.msra.mxu0 0.0
      %909 = vmatprep.subr.mxu0 0.0
      %910 = vmatpush1.msra.mxu0 0.0
      %911 = vmatprep.subr.mxu0 0.0
      %912 = vmatpush1.msra.mxu0 0.0
      %913 = vmatprep.mubr.f32.mxu0 0.0
      %914 = vmatmul.mubr.f32.gmra.mrb[0].mxu0 %v634
      %v915 = vpop.f32.mrb[0].mxu0
      %v916 = vadd.f32 %v559, %v915
      %v917 = vpop.f32.mrb[0].mxu0
      %v918 = vadd.f32 %v561, %v917
      %919 = vdwg.mxu0
      %920 = vmatprep.subr.mxu0 0.0
      %921 = vmatpush1.msra.mxu0 %v227
      %922 = vmatprep.subr.mxu0 0.0
      %923 = vmatpush1.msra.mxu0 0.0
      %924 = vmatprep.subr.mxu0 0.0
      %925 = vmatpush1.msra.mxu0 0.0
      %926 = vmatprep.subr.mxu0 0.0
      %927 = vmatpush1.msra.mxu0 0.0
      %928 = vmatprep.subr.mxu0 0.0
      %929 = vmatpush1.msra.mxu0 0.0
      %930 = vmatprep.subr.mxu0 0.0
      %931 = vmatpush1.msra.mxu0 0.0
      %932 = vmatprep.subr.mxu0 0.0
      %933 = vmatpush1.msra.mxu0 0.0
      %934 = vmatprep.subr.mxu0 0.0
      %935 = vmatpush1.msra.mxu0 0.0
      %936 = vmatprep.subr.mxu0 0.0
      %937 = vmatpush1.msra.mxu0 0.0
      %938 = vmatprep.subr.mxu0 0.0
      %939 = vmatpush1.msra.mxu0 0.0
      %940 = vmatprep.subr.mxu0 0.0
      %941 = vmatpush1.msra.mxu0 0.0
      %942 = vmatprep.subr.mxu0 0.0
      %943 = vmatpush1.msra.mxu0 0.0
      %944 = vmatprep.subr.mxu0 0.0
      %945 = vmatpush1.msra.mxu0 0.0
      %946 = vmatprep.subr.mxu0 0.0
      %947 = vmatpush1.msra.mxu0 0.0
      %948 = vmatprep.subr.mxu0 0.0
      %949 = vmatpush1.msra.mxu0 0.0
      %950 = vmatprep.subr.mxu0 0.0
      %951 = vmatpush1.msra.mxu0 0.0
      %952 = vmatprep.subr.mxu0 0.0
      %953 = vmatpush1.msra.mxu0 0.0
      %954 = vmatprep.subr.mxu0 0.0
      %955 = vmatpush1.msra.mxu0 0.0
      %956 = vmatprep.subr.mxu0 0.0
      %957 = vmatpush1.msra.mxu0 0.0
      %958 = vmatprep.subr.mxu0 0.0
      %959 = vmatpush1.msra.mxu0 0.0
      %960 = vmatprep.subr.mxu0 0.0
      %961 = vmatpush1.msra.mxu0 0.0
      %962 = vmatprep.subr.mxu0 0.0
      %963 = vmatpush1.msra.mxu0 0.0
      %964 = vmatprep.subr.mxu0 0.0
      %965 = vmatpush1.msra.mxu0 0.0
      %966 = vmatprep.subr.mxu0 0.0
      %967 = vmatpush1.msra.mxu0 0.0
      %968 = vmatprep.subr.mxu0 0.0
      %969 = vmatpush1.msra.mxu0 0.0
      %970 = vmatprep.subr.mxu0 0.0
      %971 = vmatpush1.msra.mxu0 0.0
      %972 = vmatprep.subr.mxu0 0.0
      %973 = vmatpush1.msra.mxu0 0.0
      %974 = vmatprep.subr.mxu0 0.0
      %975 = vmatpush1.msra.mxu0 0.0
      %976 = vmatprep.subr.mxu0 0.0
      %977 = vmatpush1.msra.mxu0 0.0
      %978 = vmatprep.subr.mxu0 0.0
      %979 = vmatpush1.msra.mxu0 0.0
      %980 = vmatprep.subr.mxu0 0.0
      %981 = vmatpush1.msra.mxu0 0.0
      %982 = vmatprep.subr.mxu0 0.0
      %983 = vmatpush1.msra.mxu0 0.0
      %984 = vmatprep.mubr.f32.mxu0 0.0
      %985 = vmatmul.mubr.f32.gmra.mrb[0].mxu0 %v634
      %v986 = vpop.f32.mrb[0].mxu0
      %v987 = vadd.f32 %v630, %v986
      %v988 = vpop.f32.mrb[0].mxu0
      %989 = vdwg.mxu0
      %s990 = scalar_lea.vmem %s1, 16
      %v991 = vld [vmem:[%s990] sm:$0xff]
      %992 = vrot.lane.b32.xlu0 %v219, 126
      %v993 = vpop.permute.xlu0 %992
      %994 = vrot.lane.b32.xlu0 %v220, 126
      %v995 = vpop.permute.xlu0 %994
      %996 = vrot.lane.b32.xlu0 %v221, 126
      %v997 = vpop.permute.xlu0 %996
      %998 = vrot.lane.b32.xlu0 %v222, 126
      %v999 = vpop.permute.xlu0 %998
      %1000 = vrot.lane.b32.xlu0 %v223, 126
      %v1001 = vpop.permute.xlu0 %1000
      %1002 = vrot.lane.b32.xlu0 %v224, 126
      %v1003 = vpop.permute.xlu0 %1002
      %1004 = vrot.lane.b32.xlu0 %v225, 126
      %v1005 = vpop.permute.xlu0 %1004
      %1006 = vrot.lane.b32.xlu0 %v226, 126
      %v1007 = vpop.permute.xlu0 %1006
      %1008 = vrot.lane.b32.xlu0 %v227, 126
      %v1009 = vpop.permute.xlu0 %1008
      %vm1010 = vcmask 1031168
      %v1011 = vsel %vm1010, %v993, %v995
      %v1012 = vsel %vm1010, %v995, %v997
      %v1013 = vsel %vm1010, %v997, %v999
      %v1014 = vsel %vm1010, %v999, %v1001
      %v1015 = vsel %vm1010, %v1001, %v1003
      %v1016 = vsel %vm1010, %v1003, %v1005
      %v1017 = vsel %vm1010, %v1005, %v1007
      %v1018 = vsel %vm1010, %v1007, %v1009
      %v1029 = vsel %vm275, %v991, 0
      %1031 = vmatprep.subr.mxu0 %v1012
      %1032 = vmatpush1.msra.mxu0 %v1011
      %1033 = vmatprep.subr.mxu0 0.0
      %1034 = vmatpush1.msra.mxu0 0.0
      %1035 = vmatprep.subr.mxu0 0.0
      %1036 = vmatpush1.msra.mxu0 0.0
      %1037 = vmatprep.subr.mxu0 0.0
      %1038 = vmatpush1.msra.mxu0 0.0
      %1039 = vmatprep.subr.mxu0 0.0
      %1040 = vmatpush1.msra.mxu0 0.0
      %1041 = vmatprep.subr.mxu0 0.0
      %1042 = vmatpush1.msra.mxu0 0.0
      %1043 = vmatprep.subr.mxu0 0.0
      %1044 = vmatpush1.msra.mxu0 0.0
      %1045 = vmatprep.subr.mxu0 0.0
      %1046 = vmatpush1.msra.mxu0 0.0
      %1047 = vmatprep.subr.mxu0 0.0
      %1048 = vmatpush1.msra.mxu0 0.0
      %1049 = vmatprep.subr.mxu0 0.0
      %1050 = vmatpush1.msra.mxu0 0.0
      %1051 = vmatprep.subr.mxu0 0.0
      %1052 = vmatpush1.msra.mxu0 0.0
      %1053 = vmatprep.subr.mxu0 0.0
      %1054 = vmatpush1.msra.mxu0 0.0
      %1055 = vmatprep.subr.mxu0 0.0
      %1056 = vmatpush1.msra.mxu0 0.0
      %1057 = vmatprep.subr.mxu0 0.0
      %1058 = vmatpush1.msra.mxu0 0.0
      %1059 = vmatprep.subr.mxu0 0.0
      %1060 = vmatpush1.msra.mxu0 0.0
      %1061 = vmatprep.subr.mxu0 0.0
      %1062 = vmatpush1.msra.mxu0 0.0
      %1063 = vmatprep.subr.mxu0 0.0
      %1064 = vmatpush1.msra.mxu0 0.0
      %1065 = vmatprep.subr.mxu0 0.0
      %1066 = vmatpush1.msra.mxu0 0.0
      %1067 = vmatprep.subr.mxu0 0.0
      %1068 = vmatpush1.msra.mxu0 0.0
      %1069 = vmatprep.subr.mxu0 0.0
      %1070 = vmatpush1.msra.mxu0 0.0
      %1071 = vmatprep.subr.mxu0 0.0
      %1072 = vmatpush1.msra.mxu0 0.0
      %1073 = vmatprep.subr.mxu0 0.0
      %1074 = vmatpush1.msra.mxu0 0.0
      %1075 = vmatprep.subr.mxu0 0.0
      %1076 = vmatpush1.msra.mxu0 0.0
      %1077 = vmatprep.subr.mxu0 0.0
      %1078 = vmatpush1.msra.mxu0 0.0
      %1079 = vmatprep.subr.mxu0 0.0
      %1080 = vmatpush1.msra.mxu0 0.0
      %1081 = vmatprep.subr.mxu0 0.0
      %1082 = vmatpush1.msra.mxu0 0.0
      %1083 = vmatprep.subr.mxu0 0.0
      %1084 = vmatpush1.msra.mxu0 0.0
      %1085 = vmatprep.subr.mxu0 0.0
      %1086 = vmatpush1.msra.mxu0 0.0
      %1087 = vmatprep.subr.mxu0 0.0
      %1088 = vmatpush1.msra.mxu0 0.0
      %1089 = vmatprep.subr.mxu0 0.0
      %1090 = vmatpush1.msra.mxu0 0.0
      %1091 = vmatprep.subr.mxu0 0.0
      %1092 = vmatpush1.msra.mxu0 0.0
      %1093 = vmatprep.subr.mxu0 0.0
      %1094 = vmatpush1.msra.mxu0 0.0
      %1095 = vmatprep.mubr.f32.mxu0 0.0
      %1096 = vmatmul.mubr.f32.gmra.mrb[0].mxu0 %v1029
      %v1097 = vpop.f32.mrb[0].mxu0
      %v1098 = vadd.f32 0.0, %v1097
      %v1099 = vpop.f32.mrb[0].mxu0
      %v1100 = vadd.f32 0.0, %v1099
      %1101 = vdwg.mxu0
      %1102 = vmatprep.subr.mxu0 %v1014
      %1103 = vmatpush1.msra.mxu0 %v1013
      %1104 = vmatprep.subr.mxu0 0.0
      %1105 = vmatpush1.msra.mxu0 0.0
      %1106 = vmatprep.subr.mxu0 0.0
      %1107 = vmatpush1.msra.mxu0 0.0
      %1108 = vmatprep.subr.mxu0 0.0
      %1109 = vmatpush1.msra.mxu0 0.0
      %1110 = vmatprep.subr.mxu0 0.0
      %1111 = vmatpush1.msra.mxu0 0.0
      %1112 = vmatprep.subr.mxu0 0.0
      %1113 = vmatpush1.msra.mxu0 0.0
      %1114 = vmatprep.subr.mxu0 0.0
      %1115 = vmatpush1.msra.mxu0 0.0
      %1116 = vmatprep.subr.mxu0 0.0
      %1117 = vmatpush1.msra.mxu0 0.0
      %1118 = vmatprep.subr.mxu0 0.0
      %1119 = vmatpush1.msra.mxu0 0.0
      %1120 = vmatprep.subr.mxu0 0.0
      %1121 = vmatpush1.msra.mxu0 0.0
      %1122 = vmatprep.subr.mxu0 0.0
      %1123 = vmatpush1.msra.mxu0 0.0
      %1124 = vmatprep.subr.mxu0 0.0
      %1125 = vmatpush1.msra.mxu0 0.0
      %1126 = vmatprep.subr.mxu0 0.0
      %1127 = vmatpush1.msra.mxu0 0.0
      %1128 = vmatprep.subr.mxu0 0.0
      %1129 = vmatpush1.msra.mxu0 0.0
      %1130 = vmatprep.subr.mxu0 0.0
      %1131 = vmatpush1.msra.mxu0 0.0
      %1132 = vmatprep.subr.mxu0 0.0
      %1133 = vmatpush1.msra.mxu0 0.0
      %1134 = vmatprep.subr.mxu0 0.0
      %1135 = vmatpush1.msra.mxu0 0.0
      %1136 = vmatprep.subr.mxu0 0.0
      %1137 = vmatpush1.msra.mxu0 0.0
      %1138 = vmatprep.subr.mxu0 0.0
      %1139 = vmatpush1.msra.mxu0 0.0
      %1140 = vmatprep.subr.mxu0 0.0
      %1141 = vmatpush1.msra.mxu0 0.0
      %1142 = vmatprep.subr.mxu0 0.0
      %1143 = vmatpush1.msra.mxu0 0.0
      %1144 = vmatprep.subr.mxu0 0.0
      %1145 = vmatpush1.msra.mxu0 0.0
      %1146 = vmatprep.subr.mxu0 0.0
      %1147 = vmatpush1.msra.mxu0 0.0
      %1148 = vmatprep.subr.mxu0 0.0
      %1149 = vmatpush1.msra.mxu0 0.0
      %1150 = vmatprep.subr.mxu0 0.0
      %1151 = vmatpush1.msra.mxu0 0.0
      %1152 = vmatprep.subr.mxu0 0.0
      %1153 = vmatpush1.msra.mxu0 0.0
      %1154 = vmatprep.subr.mxu0 0.0
      %1155 = vmatpush1.msra.mxu0 0.0
      %1156 = vmatprep.subr.mxu0 0.0
      %1157 = vmatpush1.msra.mxu0 0.0
      %1158 = vmatprep.subr.mxu0 0.0
      %1159 = vmatpush1.msra.mxu0 0.0
      %1160 = vmatprep.subr.mxu0 0.0
      %1161 = vmatpush1.msra.mxu0 0.0
      %1162 = vmatprep.subr.mxu0 0.0
      %1163 = vmatpush1.msra.mxu0 0.0
      %1164 = vmatprep.subr.mxu0 0.0
      %1165 = vmatpush1.msra.mxu0 0.0
      %1166 = vmatprep.mubr.f32.mxu0 0.0
      %1167 = vmatmul.mubr.f32.gmra.mrb[0].mxu0 %v1029
      %v1168 = vpop.f32.mrb[0].mxu0
      %v1169 = vadd.f32 0.0, %v1168
      %v1170 = vpop.f32.mrb[0].mxu0
      %v1171 = vadd.f32 0.0, %v1170
      %1172 = vdwg.mxu0
      %1173 = vmatprep.subr.mxu0 %v1016
      %1174 = vmatpush1.msra.mxu0 %v1015
      %1175 = vmatprep.subr.mxu0 0.0
      %1176 = vmatpush1.msra.mxu0 0.0
      %1177 = vmatprep.subr.mxu0 0.0
      %1178 = vmatpush1.msra.mxu0 0.0
      %1179 = vmatprep.subr.mxu0 0.0
      %1180 = vmatpush1.msra.mxu0 0.0
      %1181 = vmatprep.subr.mxu0 0.0
      %1182 = vmatpush1.msra.mxu0 0.0
      %1183 = vmatprep.subr.mxu0 0.0
      %1184 = vmatpush1.msra.mxu0 0.0
      %1185 = vmatprep.subr.mxu0 0.0
      %1186 = vmatpush1.msra.mxu0 0.0
      %1187 = vmatprep.subr.mxu0 0.0
      %1188 = vmatpush1.msra.mxu0 0.0
      %1189 = vmatprep.subr.mxu0 0.0
      %1190 = vmatpush1.msra.mxu0 0.0
      %1191 = vmatprep.subr.mxu0 0.0
      %1192 = vmatpush1.msra.mxu0 0.0
      %1193 = vmatprep.subr.mxu0 0.0
      %1194 = vmatpush1.msra.mxu0 0.0
      %1195 = vmatprep.subr.mxu0 0.0
      %1196 = vmatpush1.msra.mxu0 0.0
      %1197 = vmatprep.subr.mxu0 0.0
      %1198 = vmatpush1.msra.mxu0 0.0
      %1199 = vmatprep.subr.mxu0 0.0
      %1200 = vmatpush1.msra.mxu0 0.0
      %1201 = vmatprep.subr.mxu0 0.0
      %1202 = vmatpush1.msra.mxu0 0.0
      %1203 = vmatprep.subr.mxu0 0.0
      %1204 = vmatpush1.msra.mxu0 0.0
      %1205 = vmatprep.subr.mxu0 0.0
      %1206 = vmatpush1.msra.mxu0 0.0
      %1207 = vmatprep.subr.mxu0 0.0
      %1208 = vmatpush1.msra.mxu0 0.0
      %1209 = vmatprep.subr.mxu0 0.0
      %1210 = vmatpush1.msra.mxu0 0.0
      %1211 = vmatprep.subr.mxu0 0.0
      %1212 = vmatpush1.msra.mxu0 0.0
      %1213 = vmatprep.subr.mxu0 0.0
      %1214 = vmatpush1.msra.mxu0 0.0
      %1215 = vmatprep.subr.mxu0 0.0
      %1216 = vmatpush1.msra.mxu0 0.0
      %1217 = vmatprep.subr.mxu0 0.0
      %1218 = vmatpush1.msra.mxu0 0.0
      %1219 = vmatprep.subr.mxu0 0.0
      %1220 = vmatpush1.msra.mxu0 0.0
      %1221 = vmatprep.subr.mxu0 0.0
      %1222 = vmatpush1.msra.mxu0 0.0
      %1223 = vmatprep.subr.mxu0 0.0
      %1224 = vmatpush1.msra.mxu0 0.0
      %1225 = vmatprep.subr.mxu0 0.0
      %1226 = vmatpush1.msra.mxu0 0.0
      %1227 = vmatprep.subr.mxu0 0.0
      %1228 = vmatpush1.msra.mxu0 0.0
      %1229 = vmatprep.subr.mxu0 0.0
      %1230 = vmatpush1.msra.mxu0 0.0
      %1231 = vmatprep.subr.mxu0 0.0
      %1232 = vmatpush1.msra.mxu0 0.0
      %1233 = vmatprep.subr.mxu0 0.0
      %1234 = vmatpush1.msra.mxu0 0.0
      %1235 = vmatprep.subr.mxu0 0.0
      %1236 = vmatpush1.msra.mxu0 0.0
      %1237 = vmatprep.mubr.f32.mxu0 0.0
      %1238 = vmatmul.mubr.f32.gmra.mrb[0].mxu0 %v1029
      %v1239 = vpop.f32.mrb[0].mxu0
      %v1240 = vadd.f32 0.0, %v1239
      %v1241 = vpop.f32.mrb[0].mxu0
      %v1242 = vadd.f32 0.0, %v1241
      %1243 = vdwg.mxu0
      %1244 = vmatprep.subr.mxu0 %v1018
      %1245 = vmatpush1.msra.mxu0 %v1017
      %1246 = vmatprep.subr.mxu0 0.0
      %1247 = vmatpush1.msra.mxu0 0.0
      %1248 = vmatprep.subr.mxu0 0.0
      %1249 = vmatpush1.msra.mxu0 0.0
      %1250 = vmatprep.subr.mxu0 0.0
      %1251 = vmatpush1.msra.mxu0 0.0
      %1252 = vmatprep.subr.mxu0 0.0
      %1253 = vmatpush1.msra.mxu0 0.0
      %1254 = vmatprep.subr.mxu0 0.0
      %1255 = vmatpush1.msra.mxu0 0.0
      %1256 = vmatprep.subr.mxu0 0.0
      %1257 = vmatpush1.msra.mxu0 0.0
      %1258 = vmatprep.subr.mxu0 0.0
      %1259 = vmatpush1.msra.mxu0 0.0
      %1260 = vmatprep.subr.mxu0 0.0
      %1261 = vmatpush1.msra.mxu0 0.0
      %1262 = vmatprep.subr.mxu0 0.0
      %1263 = vmatpush1.msra.mxu0 0.0
      %1264 = vmatprep.subr.mxu0 0.0
      %1265 = vmatpush1.msra.mxu0 0.0
      %1266 = vmatprep.subr.mxu0 0.0
      %1267 = vmatpush1.msra.mxu0 0.0
      %1268 = vmatprep.subr.mxu0 0.0
      %1269 = vmatpush1.msra.mxu0 0.0
      %1270 = vmatprep.subr.mxu0 0.0
      %1271 = vmatpush1.msra.mxu0 0.0
      %1272 = vmatprep.subr.mxu0 0.0
      %1273 = vmatpush1.msra.mxu0 0.0
      %1274 = vmatprep.subr.mxu0 0.0
      %1275 = vmatpush1.msra.mxu0 0.0
      %1276 = vmatprep.subr.mxu0 0.0
      %1277 = vmatpush1.msra.mxu0 0.0
      %1278 = vmatprep.subr.mxu0 0.0
      %1279 = vmatpush1.msra.mxu0 0.0
      %1280 = vmatprep.subr.mxu0 0.0
      %1281 = vmatpush1.msra.mxu0 0.0
      %1282 = vmatprep.subr.mxu0 0.0
      %1283 = vmatpush1.msra.mxu0 0.0
      %1284 = vmatprep.subr.mxu0 0.0
      %1285 = vmatpush1.msra.mxu0 0.0
      %1286 = vmatprep.subr.mxu0 0.0
      %1287 = vmatpush1.msra.mxu0 0.0
      %1288 = vmatprep.subr.mxu0 0.0
      %1289 = vmatpush1.msra.mxu0 0.0
      %1290 = vmatprep.subr.mxu0 0.0
      %1291 = vmatpush1.msra.mxu0 0.0
      %1292 = vmatprep.subr.mxu0 0.0
      %1293 = vmatpush1.msra.mxu0 0.0
      %1294 = vmatprep.subr.mxu0 0.0
      %1295 = vmatpush1.msra.mxu0 0.0
      %1296 = vmatprep.subr.mxu0 0.0
      %1297 = vmatpush1.msra.mxu0 0.0
      %1298 = vmatprep.subr.mxu0 0.0
      %1299 = vmatpush1.msra.mxu0 0.0
      %1300 = vmatprep.subr.mxu0 0.0
      %1301 = vmatpush1.msra.mxu0 0.0
      %1302 = vmatprep.subr.mxu0 0.0
      %1303 = vmatpush1.msra.mxu0 0.0
      %1304 = vmatprep.subr.mxu0 0.0
      %1305 = vmatpush1.msra.mxu0 0.0
      %1306 = vmatprep.subr.mxu0 0.0
      %1307 = vmatpush1.msra.mxu0 0.0
      %1308 = vmatprep.mubr.f32.mxu0 0.0
      %1309 = vmatmul.mubr.f32.gmra.mrb[0].mxu0 %v1029
      %v1310 = vpop.f32.mrb[0].mxu0
      %v1311 = vadd.f32 0.0, %v1310
      %v1312 = vpop.f32.mrb[0].mxu0
      %v1313 = vadd.f32 0.0, %v1312
      %1314 = vdwg.mxu0
      %1315 = vmatprep.subr.mxu0 0.0
      %1316 = vmatpush1.msra.mxu0 %v1009
      %1317 = vmatprep.subr.mxu0 0.0
      %1318 = vmatpush1.msra.mxu0 0.0
      %1319 = vmatprep.subr.mxu0 0.0
      %1320 = vmatpush1.msra.mxu0 0.0
      %1321 = vmatprep.subr.mxu0 0.0
      %1322 = vmatpush1.msra.mxu0 0.0
      %1323 = vmatprep.subr.mxu0 0.0
      %1324 = vmatpush1.msra.mxu0 0.0
      %1325 = vmatprep.subr.mxu0 0.0
      %1326 = vmatpush1.msra.mxu0 0.0
      %1327 = vmatprep.subr.mxu0 0.0
      %1328 = vmatpush1.msra.mxu0 0.0
      %1329 = vmatprep.subr.mxu0 0.0
      %1330 = vmatpush1.msra.mxu0 0.0
      %1331 = vmatprep.subr.mxu0 0.0
      %1332 = vmatpush1.msra.mxu0 0.0
      %1333 = vmatprep.subr.mxu0 0.0
      %1334 = vmatpush1.msra.mxu0 0.0
      %1335 = vmatprep.subr.mxu0 0.0
      %1336 = vmatpush1.msra.mxu0 0.0
      %1337 = vmatprep.subr.mxu0 0.0
      %1338 = vmatpush1.msra.mxu0 0.0
      %1339 = vmatprep.subr.mxu0 0.0
      %1340 = vmatpush1.msra.mxu0 0.0
      %1341 = vmatprep.subr.mxu0 0.0
      %1342 = vmatpush1.msra.mxu0 0.0
      %1343 = vmatprep.subr.mxu0 0.0
      %1344 = vmatpush1.msra.mxu0 0.0
      %1345 = vmatprep.subr.mxu0 0.0
      %1346 = vmatpush1.msra.mxu0 0.0
      %1347 = vmatprep.subr.mxu0 0.0
      %1348 = vmatpush1.msra.mxu0 0.0
      %1349 = vmatprep.subr.mxu0 0.0
      %1350 = vmatpush1.msra.mxu0 0.0
      %1351 = vmatprep.subr.mxu0 0.0
      %1352 = vmatpush1.msra.mxu0 0.0
      %1353 = vmatprep.subr.mxu0 0.0
      %1354 = vmatpush1.msra.mxu0 0.0
      %1355 = vmatprep.subr.mxu0 0.0
      %1356 = vmatpush1.msra.mxu0 0.0
      %1357 = vmatprep.subr.mxu0 0.0
      %1358 = vmatpush1.msra.mxu0 0.0
      %1359 = vmatprep.subr.mxu0 0.0
      %1360 = vmatpush1.msra.mxu0 0.0
      %1361 = vmatprep.subr.mxu0 0.0
      %1362 = vmatpush1.msra.mxu0 0.0
      %1363 = vmatprep.subr.mxu0 0.0
      %1364 = vmatpush1.msra.mxu0 0.0
      %1365 = vmatprep.subr.mxu0 0.0
      %1366 = vmatpush1.msra.mxu0 0.0
      %1367 = vmatprep.subr.mxu0 0.0
      %1368 = vmatpush1.msra.mxu0 0.0
      %1369 = vmatprep.subr.mxu0 0.0
      %1370 = vmatpush1.msra.mxu0 0.0
      %1371 = vmatprep.subr.mxu0 0.0
      %1372 = vmatpush1.msra.mxu0 0.0
      %1373 = vmatprep.subr.mxu0 0.0
      %1374 = vmatpush1.msra.mxu0 0.0
      %1375 = vmatprep.subr.mxu0 0.0
      %1376 = vmatpush1.msra.mxu0 0.0
      %1377 = vmatprep.subr.mxu0 0.0
      %1378 = vmatpush1.msra.mxu0 0.0
      %1379 = vmatprep.mubr.f32.mxu0 0.0
      %1380 = vmatmul.mubr.f32.gmra.mrb[0].mxu0 %v1029
      %v1381 = vpop.f32.mrb[0].mxu0
      %v1382 = vadd.f32 0.0, %v1381
      %v1383 = vpop.f32.mrb[0].mxu0
      %1384 = vdwg.mxu0
      %v1385 = vadd.f32 %v703, %v1098
      %v1386 = vadd.f32 %v705, %v1100
      %v1387 = vadd.f32 %v774, %v1169
      %v1388 = vadd.f32 %v776, %v1171
      %v1389 = vadd.f32 %v845, %v1240
      %v1390 = vadd.f32 %v847, %v1242
      %v1391 = vadd.f32 %v916, %v1311
      %v1392 = vadd.f32 %v918, %v1313
      %v1393 = vadd.f32 %v987, %v1382
      %s1394 = scalar_lea.vmem %s1, 24
      %v1395 = vld [vmem:[%s1394] sm:$0xff]
      %1396 = vrot.lane.b32.xlu0 %v219, 94
      %v1397 = vpop.permute.xlu0 %1396
      %1398 = vrot.lane.b32.xlu0 %v220, 94
      %v1399 = vpop.permute.xlu0 %1398
      %1400 = vrot.lane.b32.xlu0 %v221, 94
      %v1401 = vpop.permute.xlu0 %1400
      %1402 = vrot.lane.b32.xlu0 %v222, 94
      %v1403 = vpop.permute.xlu0 %1402
      %1404 = vrot.lane.b32.xlu0 %v223, 94
      %v1405 = vpop.permute.xlu0 %1404
      %1406 = vrot.lane.b32.xlu0 %v224, 94
      %v1407 = vpop.permute.xlu0 %1406
      %1408 = vrot.lane.b32.xlu0 %v225, 94
      %v1409 = vpop.permute.xlu0 %1408
      %1410 = vrot.lane.b32.xlu0 %v226, 94
      %v1411 = vpop.permute.xlu0 %1410
      %1412 = vrot.lane.b32.xlu0 %v227, 94
      %v1413 = vpop.permute.xlu0 %1412
      %vm1414 = vcmask 769024
      %v1415 = vsel %vm1414, %v1397, %v1399
      %v1416 = vsel %vm1414, %v1399, %v1401
      %v1417 = vsel %vm1414, %v1401, %v1403
      %v1418 = vsel %vm1414, %v1403, %v1405
      %v1419 = vsel %vm1414, %v1405, %v1407
      %v1420 = vsel %vm1414, %v1407, %v1409
      %v1421 = vsel %vm1414, %v1409, %v1411
      %v1422 = vsel %vm1414, %v1411, %v1413
      %v1433 = vsel %vm275, %v1395, 0
      %1435 = vmatprep.subr.mxu0 %v1416
      %1436 = vmatpush1.msra.mxu0 %v1415
      %1437 = vmatprep.subr.mxu0 0.0
      %1438 = vmatpush1.msra.mxu0 0.0
      %1439 = vmatprep.subr.mxu0 0.0
      %1440 = vmatpush1.msra.mxu0 0.0
      %1441 = vmatprep.subr.mxu0 0.0
      %1442 = vmatpush1.msra.mxu0 0.0
      %1443 = vmatprep.subr.mxu0 0.0
      %1444 = vmatpush1.msra.mxu0 0.0
      %1445 = vmatprep.subr.mxu0 0.0
      %1446 = vmatpush1.msra.mxu0 0.0
      %1447 = vmatprep.subr.mxu0 0.0
      %1448 = vmatpush1.msra.mxu0 0.0
      %1449 = vmatprep.subr.mxu0 0.0
      %1450 = vmatpush1.msra.mxu0 0.0
      %1451 = vmatprep.subr.mxu0 0.0
      %1452 = vmatpush1.msra.mxu0 0.0
      %1453 = vmatprep.subr.mxu0 0.0
      %1454 = vmatpush1.msra.mxu0 0.0
      %1455 = vmatprep.subr.mxu0 0.0
      %1456 = vmatpush1.msra.mxu0 0.0
      %1457 = vmatprep.subr.mxu0 0.0
      %1458 = vmatpush1.msra.mxu0 0.0
      %1459 = vmatprep.subr.mxu0 0.0
      %1460 = vmatpush1.msra.mxu0 0.0
      %1461 = vmatprep.subr.mxu0 0.0
      %1462 = vmatpush1.msra.mxu0 0.0
      %1463 = vmatprep.subr.mxu0 0.0
      %1464 = vmatpush1.msra.mxu0 0.0
      %1465 = vmatprep.subr.mxu0 0.0
      %1466 = vmatpush1.msra.mxu0 0.0
      %1467 = vmatprep.subr.mxu0 0.0
      %1468 = vmatpush1.msra.mxu0 0.0
      %1469 = vmatprep.subr.mxu0 0.0
      %1470 = vmatpush1.msra.mxu0 0.0
      %1471 = vmatprep.subr.mxu0 0.0
      %1472 = vmatpush1.msra.mxu0 0.0
      %1473 = vmatprep.subr.mxu0 0.0
      %1474 = vmatpush1.msra.mxu0 0.0
      %1475 = vmatprep.subr.mxu0 0.0
      %1476 = vmatpush1.msra.mxu0 0.0
      %1477 = vmatprep.subr.mxu0 0.0
      %1478 = vmatpush1.msra.mxu0 0.0
      %1479 = vmatprep.subr.mxu0 0.0
      %1480 = vmatpush1.msra.mxu0 0.0
      %1481 = vmatprep.subr.mxu0 0.0
      %1482 = vmatpush1.msra.mxu0 0.0
      %1483 = vmatprep.subr.mxu0 0.0
      %1484 = vmatpush1.msra.mxu0 0.0
      %1485 = vmatprep.subr.mxu0 0.0
      %1486 = vmatpush1.msra.mxu0 0.0
      %1487 = vmatprep.subr.mxu0 0.0
      %1488 = vmatpush1.msra.mxu0 0.0
      %1489 = vmatprep.subr.mxu0 0.0
      %1490 = vmatpush1.msra.mxu0 0.0
      %1491 = vmatprep.subr.mxu0 0.0
      %1492 = vmatpush1.msra.mxu0 0.0
      %1493 = vmatprep.subr.mxu0 0.0
      %1494 = vmatpush1.msra.mxu0 0.0
      %1495 = vmatprep.subr.mxu0 0.0
      %1496 = vmatpush1.msra.mxu0 0.0
      %1497 = vmatprep.subr.mxu0 0.0
      %1498 = vmatpush1.msra.mxu0 0.0
      %1499 = vmatprep.mubr.f32.mxu0 0.0
      %1500 = vmatmul.mubr.f32.gmra.mrb[0].mxu0 %v1433
      %v1501 = vpop.f32.mrb[0].mxu0
      %v1502 = vadd.f32 0.0, %v1501
      %v1503 = vpop.f32.mrb[0].mxu0
      %v1504 = vadd.f32 0.0, %v1503
      %1505 = vdwg.mxu0
      %1506 = vmatprep.subr.mxu0 %v1418
      %1507 = vmatpush1.msra.mxu0 %v1417
      %1508 = vmatprep.subr.mxu0 0.0
      %1509 = vmatpush1.msra.mxu0 0.0
      %1510 = vmatprep.subr.mxu0 0.0
      %1511 = vmatpush1.msra.mxu0 0.0
      %1512 = vmatprep.subr.mxu0 0.0
      %1513 = vmatpush1.msra.mxu0 0.0
      %1514 = vmatprep.subr.mxu0 0.0
      %1515 = vmatpush1.msra.mxu0 0.0
      %1516 = vmatprep.subr.mxu0 0.0
      %1517 = vmatpush1.msra.mxu0 0.0
      %1518 = vmatprep.subr.mxu0 0.0
      %1519 = vmatpush1.msra.mxu0 0.0
      %1520 = vmatprep.subr.mxu0 0.0
      %1521 = vmatpush1.msra.mxu0 0.0
      %1522 = vmatprep.subr.mxu0 0.0
      %1523 = vmatpush1.msra.mxu0 0.0
      %1524 = vmatprep.subr.mxu0 0.0
      %1525 = vmatpush1.msra.mxu0 0.0
      %1526 = vmatprep.subr.mxu0 0.0
      %1527 = vmatpush1.msra.mxu0 0.0
      %1528 = vmatprep.subr.mxu0 0.0
      %1529 = vmatpush1.msra.mxu0 0.0
      %1530 = vmatprep.subr.mxu0 0.0
      %1531 = vmatpush1.msra.mxu0 0.0
      %1532 = vmatprep.subr.mxu0 0.0
      %1533 = vmatpush1.msra.mxu0 0.0
      %1534 = vmatprep.subr.mxu0 0.0
      %1535 = vmatpush1.msra.mxu0 0.0
      %1536 = vmatprep.subr.mxu0 0.0
      %1537 = vmatpush1.msra.mxu0 0.0
      %1538 = vmatprep.subr.mxu0 0.0
      %1539 = vmatpush1.msra.mxu0 0.0
      %1540 = vmatprep.subr.mxu0 0.0
      %1541 = vmatpush1.msra.mxu0 0.0
      %1542 = vmatprep.subr.mxu0 0.0
      %1543 = vmatpush1.msra.mxu0 0.0
      %1544 = vmatprep.subr.mxu0 0.0
      %1545 = vmatpush1.msra.mxu0 0.0
      %1546 = vmatprep.subr.mxu0 0.0
      %1547 = vmatpush1.msra.mxu0 0.0
      %1548 = vmatprep.subr.mxu0 0.0
      %1549 = vmatpush1.msra.mxu0 0.0
      %1550 = vmatprep.subr.mxu0 0.0
      %1551 = vmatpush1.msra.mxu0 0.0
      %1552 = vmatprep.subr.mxu0 0.0
      %1553 = vmatpush1.msra.mxu0 0.0
      %1554 = vmatprep.subr.mxu0 0.0
      %1555 = vmatpush1.msra.mxu0 0.0
      %1556 = vmatprep.subr.mxu0 0.0
      %1557 = vmatpush1.msra.mxu0 0.0
      %1558 = vmatprep.subr.mxu0 0.0
      %1559 = vmatpush1.msra.mxu0 0.0
      %1560 = vmatprep.subr.mxu0 0.0
      %1561 = vmatpush1.msra.mxu0 0.0
      %1562 = vmatprep.subr.mxu0 0.0
      %1563 = vmatpush1.msra.mxu0 0.0
      %1564 = vmatprep.subr.mxu0 0.0
      %1565 = vmatpush1.msra.mxu0 0.0
      %1566 = vmatprep.subr.mxu0 0.0
      %1567 = vmatpush1.msra.mxu0 0.0
      %1568 = vmatprep.subr.mxu0 0.0
      %1569 = vmatpush1.msra.mxu0 0.0
      %1570 = vmatprep.mubr.f32.mxu0 0.0
      %1571 = vmatmul.mubr.f32.gmra.mrb[0].mxu0 %v1433
      %v1572 = vpop.f32.mrb[0].mxu0
      %v1573 = vadd.f32 0.0, %v1572
      %v1574 = vpop.f32.mrb[0].mxu0
      %v1575 = vadd.f32 0.0, %v1574
      %1576 = vdwg.mxu0
      %1577 = vmatprep.subr.mxu0 %v1420
      %1578 = vmatpush1.msra.mxu0 %v1419
      %1579 = vmatprep.subr.mxu0 0.0
      %1580 = vmatpush1.msra.mxu0 0.0
      %1581 = vmatprep.subr.mxu0 0.0
      %1582 = vmatpush1.msra.mxu0 0.0
      %1583 = vmatprep.subr.mxu0 0.0
      %1584 = vmatpush1.msra.mxu0 0.0
      %1585 = vmatprep.subr.mxu0 0.0
      %1586 = vmatpush1.msra.mxu0 0.0
      %1587 = vmatprep.subr.mxu0 0.0
      %1588 = vmatpush1.msra.mxu0 0.0
      %1589 = vmatprep.subr.mxu0 0.0
      %1590 = vmatpush1.msra.mxu0 0.0
      %1591 = vmatprep.subr.mxu0 0.0
      %1592 = vmatpush1.msra.mxu0 0.0
      %1593 = vmatprep.subr.mxu0 0.0
      %1594 = vmatpush1.msra.mxu0 0.0
      %1595 = vmatprep.subr.mxu0 0.0
      %1596 = vmatpush1.msra.mxu0 0.0
      %1597 = vmatprep.subr.mxu0 0.0
      %1598 = vmatpush1.msra.mxu0 0.0
      %1599 = vmatprep.subr.mxu0 0.0
      %1600 = vmatpush1.msra.mxu0 0.0
      %1601 = vmatprep.subr.mxu0 0.0
      %1602 = vmatpush1.msra.mxu0 0.0
      %1603 = vmatprep.subr.mxu0 0.0
      %1604 = vmatpush1.msra.mxu0 0.0
      %1605 = vmatprep.subr.mxu0 0.0
      %1606 = vmatpush1.msra.mxu0 0.0
      %1607 = vmatprep.subr.mxu0 0.0
      %1608 = vmatpush1.msra.mxu0 0.0
      %1609 = vmatprep.subr.mxu0 0.0
      %1610 = vmatpush1.msra.mxu0 0.0
      %1611 = vmatprep.subr.mxu0 0.0
      %1612 = vmatpush1.msra.mxu0 0.0
      %1613 = vmatprep.subr.mxu0 0.0
      %1614 = vmatpush1.msra.mxu0 0.0
      %1615 = vmatprep.subr.mxu0 0.0
      %1616 = vmatpush1.msra.mxu0 0.0
      %1617 = vmatprep.subr.mxu0 0.0
      %1618 = vmatpush1.msra.mxu0 0.0
      %1619 = vmatprep.subr.mxu0 0.0
      %1620 = vmatpush1.msra.mxu0 0.0
      %1621 = vmatprep.subr.mxu0 0.0
      %1622 = vmatpush1.msra.mxu0 0.0
      %1623 = vmatprep.subr.mxu0 0.0
      %1624 = vmatpush1.msra.mxu0 0.0
      %1625 = vmatprep.subr.mxu0 0.0
      %1626 = vmatpush1.msra.mxu0 0.0
      %1627 = vmatprep.subr.mxu0 0.0
      %1628 = vmatpush1.msra.mxu0 0.0
      %1629 = vmatprep.subr.mxu0 0.0
      %1630 = vmatpush1.msra.mxu0 0.0
      %1631 = vmatprep.subr.mxu0 0.0
      %1632 = vmatpush1.msra.mxu0 0.0
      %1633 = vmatprep.subr.mxu0 0.0
      %1634 = vmatpush1.msra.mxu0 0.0
      %1635 = vmatprep.subr.mxu0 0.0
      %1636 = vmatpush1.msra.mxu0 0.0
      %1637 = vmatprep.subr.mxu0 0.0
      %1638 = vmatpush1.msra.mxu0 0.0
      %1639 = vmatprep.subr.mxu0 0.0
      %1640 = vmatpush1.msra.mxu0 0.0
      %1641 = vmatprep.mubr.f32.mxu0 0.0
      %1642 = vmatmul.mubr.f32.gmra.mrb[0].mxu0 %v1433
      %v1643 = vpop.f32.mrb[0].mxu0
      %v1644 = vadd.f32 0.0, %v1643
      %v1645 = vpop.f32.mrb[0].mxu0
      %v1646 = vadd.f32 0.0, %v1645
      %1647 = vdwg.mxu0
      %1648 = vmatprep.subr.mxu0 %v1422
      %1649 = vmatpush1.msra.mxu0 %v1421
      %1650 = vmatprep.subr.mxu0 0.0
      %1651 = vmatpush1.msra.mxu0 0.0
      %1652 = vmatprep.subr.mxu0 0.0
      %1653 = vmatpush1.msra.mxu0 0.0
      %1654 = vmatprep.subr.mxu0 0.0
      %1655 = vmatpush1.msra.mxu0 0.0
      %1656 = vmatprep.subr.mxu0 0.0
      %1657 = vmatpush1.msra.mxu0 0.0
      %1658 = vmatprep.subr.mxu0 0.0
      %1659 = vmatpush1.msra.mxu0 0.0
      %1660 = vmatprep.subr.mxu0 0.0
      %1661 = vmatpush1.msra.mxu0 0.0
      %1662 = vmatprep.subr.mxu0 0.0
      %1663 = vmatpush1.msra.mxu0 0.0
      %1664 = vmatprep.subr.mxu0 0.0
      %1665 = vmatpush1.msra.mxu0 0.0
      %1666 = vmatprep.subr.mxu0 0.0
      %1667 = vmatpush1.msra.mxu0 0.0
      %1668 = vmatprep.subr.mxu0 0.0
      %1669 = vmatpush1.msra.mxu0 0.0
      %1670 = vmatprep.subr.mxu0 0.0
      %1671 = vmatpush1.msra.mxu0 0.0
      %1672 = vmatprep.subr.mxu0 0.0
      %1673 = vmatpush1.msra.mxu0 0.0
      %1674 = vmatprep.subr.mxu0 0.0
      %1675 = vmatpush1.msra.mxu0 0.0
      %1676 = vmatprep.subr.mxu0 0.0
      %1677 = vmatpush1.msra.mxu0 0.0
      %1678 = vmatprep.subr.mxu0 0.0
      %1679 = vmatpush1.msra.mxu0 0.0
      %1680 = vmatprep.subr.mxu0 0.0
      %1681 = vmatpush1.msra.mxu0 0.0
      %1682 = vmatprep.subr.mxu0 0.0
      %1683 = vmatpush1.msra.mxu0 0.0
      %1684 = vmatprep.subr.mxu0 0.0
      %1685 = vmatpush1.msra.mxu0 0.0
      %1686 = vmatprep.subr.mxu0 0.0
      %1687 = vmatpush1.msra.mxu0 0.0
      %1688 = vmatprep.subr.mxu0 0.0
      %1689 = vmatpush1.msra.mxu0 0.0
      %1690 = vmatprep.subr.mxu0 0.0
      %1691 = vmatpush1.msra.mxu0 0.0
      %1692 = vmatprep.subr.mxu0 0.0
      %1693 = vmatpush1.msra.mxu0 0.0
      %1694 = vmatprep.subr.mxu0 0.0
      %1695 = vmatpush1.msra.mxu0 0.0
      %1696 = vmatprep.subr.mxu0 0.0
      %1697 = vmatpush1.msra.mxu0 0.0
      %1698 = vmatprep.subr.mxu0 0.0
      %1699 = vmatpush1.msra.mxu0 0.0
      %1700 = vmatprep.subr.mxu0 0.0
      %1701 = vmatpush1.msra.mxu0 0.0
      %1702 = vmatprep.subr.mxu0 0.0
      %1703 = vmatpush1.msra.mxu0 0.0
      %1704 = vmatprep.subr.mxu0 0.0
      %1705 = vmatpush1.msra.mxu0 0.0
      %1706 = vmatprep.subr.mxu0 0.0
      %1707 = vmatpush1.msra.mxu0 0.0
      %1708 = vmatprep.subr.mxu0 0.0
      %1709 = vmatpush1.msra.mxu0 0.0
      %1710 = vmatprep.subr.mxu0 0.0
      %1711 = vmatpush1.msra.mxu0 0.0
      %1712 = vmatprep.mubr.f32.mxu0 0.0
      %1713 = vmatmul.mubr.f32.gmra.mrb[0].mxu0 %v1433
      %v1714 = vpop.f32.mrb[0].mxu0
      %v1715 = vadd.f32 0.0, %v1714
      %v1716 = vpop.f32.mrb[0].mxu0
      %v1717 = vadd.f32 0.0, %v1716
      %1718 = vdwg.mxu0
      %1719 = vmatprep.subr.mxu0 0.0
      %1720 = vmatpush1.msra.mxu0 %v1413
      %1721 = vmatprep.subr.mxu0 0.0
      %1722 = vmatpush1.msra.mxu0 0.0
      %1723 = vmatprep.subr.mxu0 0.0
      %1724 = vmatpush1.msra.mxu0 0.0
      %1725 = vmatprep.subr.mxu0 0.0
      %1726 = vmatpush1.msra.mxu0 0.0
      %1727 = vmatprep.subr.mxu0 0.0
      %1728 = vmatpush1.msra.mxu0 0.0
      %1729 = vmatprep.subr.mxu0 0.0
      %1730 = vmatpush1.msra.mxu0 0.0
      %1731 = vmatprep.subr.mxu0 0.0
      %1732 = vmatpush1.msra.mxu0 0.0
      %1733 = vmatprep.subr.mxu0 0.0
      %1734 = vmatpush1.msra.mxu0 0.0
      %1735 = vmatprep.subr.mxu0 0.0
      %1736 = vmatpush1.msra.mxu0 0.0
      %1737 = vmatprep.subr.mxu0 0.0
      %1738 = vmatpush1.msra.mxu0 0.0
      %1739 = vmatprep.subr.mxu0 0.0
      %1740 = vmatpush1.msra.mxu0 0.0
      %1741 = vmatprep.subr.mxu0 0.0
      %1742 = vmatpush1.msra.mxu0 0.0
      %1743 = vmatprep.subr.mxu0 0.0
      %1744 = vmatpush1.msra.mxu0 0.0
      %1745 = vmatprep.subr.mxu0 0.0
      %1746 = vmatpush1.msra.mxu0 0.0
      %1747 = vmatprep.subr.mxu0 0.0
      %1748 = vmatpush1.msra.mxu0 0.0
      %1749 = vmatprep.subr.mxu0 0.0
      %1750 = vmatpush1.msra.mxu0 0.0
      %1751 = vmatprep.subr.mxu0 0.0
      %1752 = vmatpush1.msra.mxu0 0.0
      %1753 = vmatprep.subr.mxu0 0.0
      %1754 = vmatpush1.msra.mxu0 0.0
      %1755 = vmatprep.subr.mxu0 0.0
      %1756 = vmatpush1.msra.mxu0 0.0
      %1757 = vmatprep.subr.mxu0 0.0
      %1758 = vmatpush1.msra.mxu0 0.0
      %1759 = vmatprep.subr.mxu0 0.0
      %1760 = vmatpush1.msra.mxu0 0.0
      %1761 = vmatprep.subr.mxu0 0.0
      %1762 = vmatpush1.msra.mxu0 0.0
      %1763 = vmatprep.subr.mxu0 0.0
      %1764 = vmatpush1.msra.mxu0 0.0
      %1765 = vmatprep.subr.mxu0 0.0
      %1766 = vmatpush1.msra.mxu0 0.0
      %1767 = vmatprep.subr.mxu0 0.0
      %1768 = vmatpush1.msra.mxu0 0.0
      %1769 = vmatprep.subr.mxu0 0.0
      %1770 = vmatpush1.msra.mxu0 0.0
      %1771 = vmatprep.subr.mxu0 0.0
      %1772 = vmatpush1.msra.mxu0 0.0
      %1773 = vmatprep.subr.mxu0 0.0
      %1774 = vmatpush1.msra.mxu0 0.0
      %1775 = vmatprep.subr.mxu0 0.0
      %1776 = vmatpush1.msra.mxu0 0.0
      %1777 = vmatprep.subr.mxu0 0.0
      %1778 = vmatpush1.msra.mxu0 0.0
      %1779 = vmatprep.subr.mxu0 0.0
      %1780 = vmatpush1.msra.mxu0 0.0
      %1781 = vmatprep.subr.mxu0 0.0
      %1782 = vmatpush1.msra.mxu0 0.0
      %1783 = vmatprep.mubr.f32.mxu0 0.0
      %1784 = vmatmul.mubr.f32.gmra.mrb[0].mxu0 %v1433
      %v1785 = vpop.f32.mrb[0].mxu0
      %v1786 = vadd.f32 0.0, %v1785
      %v1787 = vpop.f32.mrb[0].mxu0
      %1788 = vdwg.mxu0
      %v1789 = vadd.f32 %v1385, %v1502
      %v1790 = vadd.f32 %v1386, %v1504
      %v1791 = vadd.f32 %v1387, %v1573
      %v1792 = vadd.f32 %v1388, %v1575
      %v1793 = vadd.f32 %v1389, %v1644
      %v1794 = vadd.f32 %v1390, %v1646
      %v1795 = vadd.f32 %v1391, %v1715
      %v1796 = vadd.f32 %v1392, %v1717
      %v1797 = vadd.f32 %v1393, %v1786
      %s1798 = scalar_lea.vmem %s1, 32
      %v1799 = vld [vmem:[%s1798] sm:$0xff]
      %1800 = vrot.lane.b32.xlu0 %v219, 93
      %v1801 = vpop.permute.xlu0 %1800
      %1802 = vrot.lane.b32.xlu0 %v220, 93
      %v1803 = vpop.permute.xlu0 %1802
      %1804 = vrot.lane.b32.xlu0 %v221, 93
      %v1805 = vpop.permute.xlu0 %1804
      %1806 = vrot.lane.b32.xlu0 %v222, 93
      %v1807 = vpop.permute.xlu0 %1806
      %1808 = vrot.lane.b32.xlu0 %v223, 93
      %v1809 = vpop.permute.xlu0 %1808
      %1810 = vrot.lane.b32.xlu0 %v224, 93
      %v1811 = vpop.permute.xlu0 %1810
      %1812 = vrot.lane.b32.xlu0 %v225, 93
      %v1813 = vpop.permute.xlu0 %1812
      %1814 = vrot.lane.b32.xlu0 %v226, 93
      %v1815 = vpop.permute.xlu0 %1814
      %1816 = vrot.lane.b32.xlu0 %v227, 93
      %v1817 = vpop.permute.xlu0 %1816
      %vm1818 = vcmask 760832
      %v1819 = vsel %vm1818, %v1801, %v1803
      %v1820 = vsel %vm1818, %v1803, %v1805
      %v1821 = vsel %vm1818, %v1805, %v1807
      %v1822 = vsel %vm1818, %v1807, %v1809
      %v1823 = vsel %vm1818, %v1809, %v1811
      %v1824 = vsel %vm1818, %v1811, %v1813
      %v1825 = vsel %vm1818, %v1813, %v1815
      %v1826 = vsel %vm1818, %v1815, %v1817
      %v1837 = vsel %vm275, %v1799, 0
      %1839 = vmatprep.subr.mxu0 %v1820
      %1840 = vmatpush1.msra.mxu0 %v1819
      %1841 = vmatprep.subr.mxu0 0.0
      %1842 = vmatpush1.msra.mxu0 0.0
      %1843 = vmatprep.subr.mxu0 0.0
      %1844 = vmatpush1.msra.mxu0 0.0
      %1845 = vmatprep.subr.mxu0 0.0
      %1846 = vmatpush1.msra.mxu0 0.0
      %1847 = vmatprep.subr.mxu0 0.0
      %1848 = vmatpush1.msra.mxu0 0.0
      %1849 = vmatprep.subr.mxu0 0.0
      %1850 = vmatpush1.msra.mxu0 0.0
      %1851 = vmatprep.subr.mxu0 0.0
      %1852 = vmatpush1.msra.mxu0 0.0
      %1853 = vmatprep.subr.mxu0 0.0
      %1854 = vmatpush1.msra.mxu0 0.0
      %1855 = vmatprep.subr.mxu0 0.0
      %1856 = vmatpush1.msra.mxu0 0.0
      %1857 = vmatprep.subr.mxu0 0.0
      %1858 = vmatpush1.msra.mxu0 0.0
      %1859 = vmatprep.subr.mxu0 0.0
      %1860 = vmatpush1.msra.mxu0 0.0
      %1861 = vmatprep.subr.mxu0 0.0
      %1862 = vmatpush1.msra.mxu0 0.0
      %1863 = vmatprep.subr.mxu0 0.0
      %1864 = vmatpush1.msra.mxu0 0.0
      %1865 = vmatprep.subr.mxu0 0.0
      %1866 = vmatpush1.msra.mxu0 0.0
      %1867 = vmatprep.subr.mxu0 0.0
      %1868 = vmatpush1.msra.mxu0 0.0
      %1869 = vmatprep.subr.mxu0 0.0
      %1870 = vmatpush1.msra.mxu0 0.0
      %1871 = vmatprep.subr.mxu0 0.0
      %1872 = vmatpush1.msra.mxu0 0.0
      %1873 = vmatprep.subr.mxu0 0.0
      %1874 = vmatpush1.msra.mxu0 0.0
      %1875 = vmatprep.subr.mxu0 0.0
      %1876 = vmatpush1.msra.mxu0 0.0
      %1877 = vmatprep.subr.mxu0 0.0
      %1878 = vmatpush1.msra.mxu0 0.0
      %1879 = vmatprep.subr.mxu0 0.0
      %1880 = vmatpush1.msra.mxu0 0.0
      %1881 = vmatprep.subr.mxu0 0.0
      %1882 = vmatpush1.msra.mxu0 0.0
      %1883 = vmatprep.subr.mxu0 0.0
      %1884 = vmatpush1.msra.mxu0 0.0
      %1885 = vmatprep.subr.mxu0 0.0
      %1886 = vmatpush1.msra.mxu0 0.0
      %1887 = vmatprep.subr.mxu0 0.0
      %1888 = vmatpush1.msra.mxu0 0.0
      %1889 = vmatprep.subr.mxu0 0.0
      %1890 = vmatpush1.msra.mxu0 0.0
      %1891 = vmatprep.subr.mxu0 0.0
      %1892 = vmatpush1.msra.mxu0 0.0
      %1893 = vmatprep.subr.mxu0 0.0
      %1894 = vmatpush1.msra.mxu0 0.0
      %1895 = vmatprep.subr.mxu0 0.0
      %1896 = vmatpush1.msra.mxu0 0.0
      %1897 = vmatprep.subr.mxu0 0.0
      %1898 = vmatpush1.msra.mxu0 0.0
      %1899 = vmatprep.subr.mxu0 0.0
      %1900 = vmatpush1.msra.mxu0 0.0
      %1901 = vmatprep.subr.mxu0 0.0
      %1902 = vmatpush1.msra.mxu0 0.0
      %1903 = vmatprep.mubr.f32.mxu0 0.0
      %1904 = vmatmul.mubr.f32.gmra.mrb[0].mxu0 %v1837
      %v1905 = vpop.f32.mrb[0].mxu0
      %v1906 = vadd.f32 0.0, %v1905
      %v1907 = vpop.f32.mrb[0].mxu0
      %v1908 = vadd.f32 0.0, %v1907
      %1909 = vdwg.mxu0
      %1910 = vmatprep.subr.mxu0 %v1822
      %1911 = vmatpush1.msra.mxu0 %v1821
      %1912 = vmatprep.subr.mxu0 0.0
      %1913 = vmatpush1.msra.mxu0 0.0
      %1914 = vmatprep.subr.mxu0 0.0
      %1915 = vmatpush1.msra.mxu0 0.0
      %1916 = vmatprep.subr.mxu0 0.0
      %1917 = vmatpush1.msra.mxu0 0.0
      %1918 = vmatprep.subr.mxu0 0.0
      %1919 = vmatpush1.msra.mxu0 0.0
      %1920 = vmatprep.subr.mxu0 0.0
      %1921 = vmatpush1.msra.mxu0 0.0
      %1922 = vmatprep.subr.mxu0 0.0
      %1923 = vmatpush1.msra.mxu0 0.0
      %1924 = vmatprep.subr.mxu0 0.0
      %1925 = vmatpush1.msra.mxu0 0.0
      %1926 = vmatprep.subr.mxu0 0.0
      %1927 = vmatpush1.msra.mxu0 0.0
      %1928 = vmatprep.subr.mxu0 0.0
      %1929 = vmatpush1.msra.mxu0 0.0
      %1930 = vmatprep.subr.mxu0 0.0
      %1931 = vmatpush1.msra.mxu0 0.0
      %1932 = vmatprep.subr.mxu0 0.0
      %1933 = vmatpush1.msra.mxu0 0.0
      %1934 = vmatprep.subr.mxu0 0.0
      %1935 = vmatpush1.msra.mxu0 0.0
      %1936 = vmatprep.subr.mxu0 0.0
      %1937 = vmatpush1.msra.mxu0 0.0
      %1938 = vmatprep.subr.mxu0 0.0
      %1939 = vmatpush1.msra.mxu0 0.0
      %1940 = vmatprep.subr.mxu0 0.0
      %1941 = vmatpush1.msra.mxu0 0.0
      %1942 = vmatprep.subr.mxu0 0.0
      %1943 = vmatpush1.msra.mxu0 0.0
      %1944 = vmatprep.subr.mxu0 0.0
      %1945 = vmatpush1.msra.mxu0 0.0
      %1946 = vmatprep.subr.mxu0 0.0
      %1947 = vmatpush1.msra.mxu0 0.0
      %1948 = vmatprep.subr.mxu0 0.0
      %1949 = vmatpush1.msra.mxu0 0.0
      %1950 = vmatprep.subr.mxu0 0.0
      %1951 = vmatpush1.msra.mxu0 0.0
      %1952 = vmatprep.subr.mxu0 0.0
      %1953 = vmatpush1.msra.mxu0 0.0
      %1954 = vmatprep.subr.mxu0 0.0
      %1955 = vmatpush1.msra.mxu0 0.0
      %1956 = vmatprep.subr.mxu0 0.0
      %1957 = vmatpush1.msra.mxu0 0.0
      %1958 = vmatprep.subr.mxu0 0.0
      %1959 = vmatpush1.msra.mxu0 0.0
      %1960 = vmatprep.subr.mxu0 0.0
      %1961 = vmatpush1.msra.mxu0 0.0
      %1962 = vmatprep.subr.mxu0 0.0
      %1963 = vmatpush1.msra.mxu0 0.0
      %1964 = vmatprep.subr.mxu0 0.0
      %1965 = vmatpush1.msra.mxu0 0.0
      %1966 = vmatprep.subr.mxu0 0.0
      %1967 = vmatpush1.msra.mxu0 0.0
      %1968 = vmatprep.subr.mxu0 0.0
      %1969 = vmatpush1.msra.mxu0 0.0
      %1970 = vmatprep.subr.mxu0 0.0
      %1971 = vmatpush1.msra.mxu0 0.0
      %1972 = vmatprep.subr.mxu0 0.0
      %1973 = vmatpush1.msra.mxu0 0.0
      %1974 = vmatprep.mubr.f32.mxu0 0.0
      %1975 = vmatmul.mubr.f32.gmra.mrb[0].mxu0 %v1837
      %v1976 = vpop.f32.mrb[0].mxu0
      %v1977 = vadd.f32 0.0, %v1976
      %v1978 = vpop.f32.mrb[0].mxu0
      %v1979 = vadd.f32 0.0, %v1978
      %1980 = vdwg.mxu0
      %1981 = vmatprep.subr.mxu0 %v1824
      %1982 = vmatpush1.msra.mxu0 %v1823
      %1983 = vmatprep.subr.mxu0 0.0
      %1984 = vmatpush1.msra.mxu0 0.0
      %1985 = vmatprep.subr.mxu0 0.0
      %1986 = vmatpush1.msra.mxu0 0.0
      %1987 = vmatprep.subr.mxu0 0.0
      %1988 = vmatpush1.msra.mxu0 0.0
      %1989 = vmatprep.subr.mxu0 0.0
      %1990 = vmatpush1.msra.mxu0 0.0
      %1991 = vmatprep.subr.mxu0 0.0
      %1992 = vmatpush1.msra.mxu0 0.0
      %1993 = vmatprep.subr.mxu0 0.0
      %1994 = vmatpush1.msra.mxu0 0.0
      %1995 = vmatprep.subr.mxu0 0.0
      %1996 = vmatpush1.msra.mxu0 0.0
      %1997 = vmatprep.subr.mxu0 0.0
      %1998 = vmatpush1.msra.mxu0 0.0
      %1999 = vmatprep.subr.mxu0 0.0
      %2000 = vmatpush1.msra.mxu0 0.0
      %2001 = vmatprep.subr.mxu0 0.0
      %2002 = vmatpush1.msra.mxu0 0.0
      %2003 = vmatprep.subr.mxu0 0.0
      %2004 = vmatpush1.msra.mxu0 0.0
      %2005 = vmatprep.subr.mxu0 0.0
      %2006 = vmatpush1.msra.mxu0 0.0
      %2007 = vmatprep.subr.mxu0 0.0
      %2008 = vmatpush1.msra.mxu0 0.0
      %2009 = vmatprep.subr.mxu0 0.0
      %2010 = vmatpush1.msra.mxu0 0.0
      %2011 = vmatprep.subr.mxu0 0.0
      %2012 = vmatpush1.msra.mxu0 0.0
      %2013 = vmatprep.subr.mxu0 0.0
      %2014 = vmatpush1.msra.mxu0 0.0
      %2015 = vmatprep.subr.mxu0 0.0
      %2016 = vmatpush1.msra.mxu0 0.0
      %2017 = vmatprep.subr.mxu0 0.0
      %2018 = vmatpush1.msra.mxu0 0.0
      %2019 = vmatprep.subr.mxu0 0.0
      %2020 = vmatpush1.msra.mxu0 0.0
      %2021 = vmatprep.subr.mxu0 0.0
      %2022 = vmatpush1.msra.mxu0 0.0
      %2023 = vmatprep.subr.mxu0 0.0
      %2024 = vmatpush1.msra.mxu0 0.0
      %2025 = vmatprep.subr.mxu0 0.0
      %2026 = vmatpush1.msra.mxu0 0.0
      %2027 = vmatprep.subr.mxu0 0.0
      %2028 = vmatpush1.msra.mxu0 0.0
      %2029 = vmatprep.subr.mxu0 0.0
      %2030 = vmatpush1.msra.mxu0 0.0
      %2031 = vmatprep.subr.mxu0 0.0
      %2032 = vmatpush1.msra.mxu0 0.0
      %2033 = vmatprep.subr.mxu0 0.0
      %2034 = vmatpush1.msra.mxu0 0.0
      %2035 = vmatprep.subr.mxu0 0.0
      %2036 = vmatpush1.msra.mxu0 0.0
      %2037 = vmatprep.subr.mxu0 0.0
      %2038 = vmatpush1.msra.mxu0 0.0
      %2039 = vmatprep.subr.mxu0 0.0
      %2040 = vmatpush1.msra.mxu0 0.0
      %2041 = vmatprep.subr.mxu0 0.0
      %2042 = vmatpush1.msra.mxu0 0.0
      %2043 = vmatprep.subr.mxu0 0.0
      %2044 = vmatpush1.msra.mxu0 0.0
      %2045 = vmatprep.mubr.f32.mxu0 0.0
      %2046 = vmatmul.mubr.f32.gmra.mrb[0].mxu0 %v1837
      %v2047 = vpop.f32.mrb[0].mxu0
      %v2048 = vadd.f32 0.0, %v2047
      %v2049 = vpop.f32.mrb[0].mxu0
      %v2050 = vadd.f32 0.0, %v2049
      %2051 = vdwg.mxu0
      %2052 = vmatprep.subr.mxu0 %v1826
      %2053 = vmatpush1.msra.mxu0 %v1825
      %2054 = vmatprep.subr.mxu0 0.0
      %2055 = vmatpush1.msra.mxu0 0.0
      %2056 = vmatprep.subr.mxu0 0.0
      %2057 = vmatpush1.msra.mxu0 0.0
      %2058 = vmatprep.subr.mxu0 0.0
      %2059 = vmatpush1.msra.mxu0 0.0
      %2060 = vmatprep.subr.mxu0 0.0
      %2061 = vmatpush1.msra.mxu0 0.0
      %2062 = vmatprep.subr.mxu0 0.0
      %2063 = vmatpush1.msra.mxu0 0.0
      %2064 = vmatprep.subr.mxu0 0.0
      %2065 = vmatpush1.msra.mxu0 0.0
      %2066 = vmatprep.subr.mxu0 0.0
      %2067 = vmatpush1.msra.mxu0 0.0
      %2068 = vmatprep.subr.mxu0 0.0
      %2069 = vmatpush1.msra.mxu0 0.0
      %2070 = vmatprep.subr.mxu0 0.0
      %2071 = vmatpush1.msra.mxu0 0.0
      %2072 = vmatprep.subr.mxu0 0.0
      %2073 = vmatpush1.msra.mxu0 0.0
      %2074 = vmatprep.subr.mxu0 0.0
      %2075 = vmatpush1.msra.mxu0 0.0
      %2076 = vmatprep.subr.mxu0 0.0
      %2077 = vmatpush1.msra.mxu0 0.0
      %2078 = vmatprep.subr.mxu0 0.0
      %2079 = vmatpush1.msra.mxu0 0.0
      %2080 = vmatprep.subr.mxu0 0.0
      %2081 = vmatpush1.msra.mxu0 0.0
      %2082 = vmatprep.subr.mxu0 0.0
      %2083 = vmatpush1.msra.mxu0 0.0
      %2084 = vmatprep.subr.mxu0 0.0
      %2085 = vmatpush1.msra.mxu0 0.0
      %2086 = vmatprep.subr.mxu0 0.0
      %2087 = vmatpush1.msra.mxu0 0.0
      %2088 = vmatprep.subr.mxu0 0.0
      %2089 = vmatpush1.msra.mxu0 0.0
      %2090 = vmatprep.subr.mxu0 0.0
      %2091 = vmatpush1.msra.mxu0 0.0
      %2092 = vmatprep.subr.mxu0 0.0
      %2093 = vmatpush1.msra.mxu0 0.0
      %2094 = vmatprep.subr.mxu0 0.0
      %2095 = vmatpush1.msra.mxu0 0.0
      %2096 = vmatprep.subr.mxu0 0.0
      %2097 = vmatpush1.msra.mxu0 0.0
      %2098 = vmatprep.subr.mxu0 0.0
      %2099 = vmatpush1.msra.mxu0 0.0
      %2100 = vmatprep.subr.mxu0 0.0
      %2101 = vmatpush1.msra.mxu0 0.0
      %2102 = vmatprep.subr.mxu0 0.0
      %2103 = vmatpush1.msra.mxu0 0.0
      %2104 = vmatprep.subr.mxu0 0.0
      %2105 = vmatpush1.msra.mxu0 0.0
      %2106 = vmatprep.subr.mxu0 0.0
      %2107 = vmatpush1.msra.mxu0 0.0
      %2108 = vmatprep.subr.mxu0 0.0
      %2109 = vmatpush1.msra.mxu0 0.0
      %2110 = vmatprep.subr.mxu0 0.0
      %2111 = vmatpush1.msra.mxu0 0.0
      %2112 = vmatprep.subr.mxu0 0.0
      %2113 = vmatpush1.msra.mxu0 0.0
      %2114 = vmatprep.subr.mxu0 0.0
      %2115 = vmatpush1.msra.mxu0 0.0
      %2116 = vmatprep.mubr.f32.mxu0 0.0
      %2117 = vmatmul.mubr.f32.gmra.mrb[0].mxu0 %v1837
      %v2118 = vpop.f32.mrb[0].mxu0
      %v2119 = vadd.f32 0.0, %v2118
      %v2120 = vpop.f32.mrb[0].mxu0
      %v2121 = vadd.f32 0.0, %v2120
      %2122 = vdwg.mxu0
      %2123 = vmatprep.subr.mxu0 0.0
      %2124 = vmatpush1.msra.mxu0 %v1817
      %2125 = vmatprep.subr.mxu0 0.0
      %2126 = vmatpush1.msra.mxu0 0.0
      %2127 = vmatprep.subr.mxu0 0.0
      %2128 = vmatpush1.msra.mxu0 0.0
      %2129 = vmatprep.subr.mxu0 0.0
      %2130 = vmatpush1.msra.mxu0 0.0
      %2131 = vmatprep.subr.mxu0 0.0
      %2132 = vmatpush1.msra.mxu0 0.0
      %2133 = vmatprep.subr.mxu0 0.0
      %2134 = vmatpush1.msra.mxu0 0.0
      %2135 = vmatprep.subr.mxu0 0.0
      %2136 = vmatpush1.msra.mxu0 0.0
      %2137 = vmatprep.subr.mxu0 0.0
      %2138 = vmatpush1.msra.mxu0 0.0
      %2139 = vmatprep.subr.mxu0 0.0
      %2140 = vmatpush1.msra.mxu0 0.0
      %2141 = vmatprep.subr.mxu0 0.0
      %2142 = vmatpush1.msra.mxu0 0.0
      %2143 = vmatprep.subr.mxu0 0.0
      %2144 = vmatpush1.msra.mxu0 0.0
      %2145 = vmatprep.subr.mxu0 0.0
      %2146 = vmatpush1.msra.mxu0 0.0
      %2147 = vmatprep.subr.mxu0 0.0
      %2148 = vmatpush1.msra.mxu0 0.0
      %2149 = vmatprep.subr.mxu0 0.0
      %2150 = vmatpush1.msra.mxu0 0.0
      %2151 = vmatprep.subr.mxu0 0.0
      %2152 = vmatpush1.msra.mxu0 0.0
      %2153 = vmatprep.subr.mxu0 0.0
      %2154 = vmatpush1.msra.mxu0 0.0
      %2155 = vmatprep.subr.mxu0 0.0
      %2156 = vmatpush1.msra.mxu0 0.0
      %2157 = vmatprep.subr.mxu0 0.0
      %2158 = vmatpush1.msra.mxu0 0.0
      %2159 = vmatprep.subr.mxu0 0.0
      %2160 = vmatpush1.msra.mxu0 0.0
      %2161 = vmatprep.subr.mxu0 0.0
      %2162 = vmatpush1.msra.mxu0 0.0
      %2163 = vmatprep.subr.mxu0 0.0
      %2164 = vmatpush1.msra.mxu0 0.0
      %2165 = vmatprep.subr.mxu0 0.0
      %2166 = vmatpush1.msra.mxu0 0.0
      %2167 = vmatprep.subr.mxu0 0.0
      %2168 = vmatpush1.msra.mxu0 0.0
      %2169 = vmatprep.subr.mxu0 0.0
      %2170 = vmatpush1.msra.mxu0 0.0
      %2171 = vmatprep.subr.mxu0 0.0
      %2172 = vmatpush1.msra.mxu0 0.0
      %2173 = vmatprep.subr.mxu0 0.0
      %2174 = vmatpush1.msra.mxu0 0.0
      %2175 = vmatprep.subr.mxu0 0.0
      %2176 = vmatpush1.msra.mxu0 0.0
      %2177 = vmatprep.subr.mxu0 0.0
      %2178 = vmatpush1.msra.mxu0 0.0
      %2179 = vmatprep.subr.mxu0 0.0
      %2180 = vmatpush1.msra.mxu0 0.0
      %2181 = vmatprep.subr.mxu0 0.0
      %2182 = vmatpush1.msra.mxu0 0.0
      %2183 = vmatprep.subr.mxu0 0.0
      %2184 = vmatpush1.msra.mxu0 0.0
      %2185 = vmatprep.subr.mxu0 0.0
      %2186 = vmatpush1.msra.mxu0 0.0
      %2187 = vmatprep.mubr.f32.mxu0 0.0
      %2188 = vmatmul.mubr.f32.gmra.mrb[0].mxu0 %v1837
      %v2189 = vpop.f32.mrb[0].mxu0
      %v2190 = vadd.f32 0.0, %v2189
      %v2191 = vpop.f32.mrb[0].mxu0
      %2192 = vdwg.mxu0
      %v2193 = vadd.f32 %v1789, %v1906
      %v2194 = vadd.f32 %v1790, %v1908
      %v2195 = vadd.f32 %v1791, %v1977
      %v2196 = vadd.f32 %v1792, %v1979
      %v2197 = vadd.f32 %v1793, %v2048
      %v2198 = vadd.f32 %v1794, %v2050
      %v2199 = vadd.f32 %v1795, %v2119
      %v2200 = vadd.f32 %v1796, %v2121
      %v2201 = vadd.f32 %v1797, %v2190
      %s2202 = scalar_lea.vmem %s1, 40
      %v2203 = vld [vmem:[%s2202] sm:$0xff]
      %2204 = vrot.lane.b32.xlu0 %v219, 92
      %v2205 = vpop.permute.xlu0 %2204
      %2206 = vrot.lane.b32.xlu0 %v220, 92
      %v2207 = vpop.permute.xlu0 %2206
      %2208 = vrot.lane.b32.xlu0 %v221, 92
      %v2209 = vpop.permute.xlu0 %2208
      %2210 = vrot.lane.b32.xlu0 %v222, 92
      %v2211 = vpop.permute.xlu0 %2210
      %2212 = vrot.lane.b32.xlu0 %v223, 92
      %v2213 = vpop.permute.xlu0 %2212
      %2214 = vrot.lane.b32.xlu0 %v224, 92
      %v2215 = vpop.permute.xlu0 %2214
      %2216 = vrot.lane.b32.xlu0 %v225, 92
      %v2217 = vpop.permute.xlu0 %2216
      %2218 = vrot.lane.b32.xlu0 %v226, 92
      %v2219 = vpop.permute.xlu0 %2218
      %2220 = vrot.lane.b32.xlu0 %v227, 92
      %v2221 = vpop.permute.xlu0 %2220
      %vm2222 = vcmask 752640
      %v2223 = vsel %vm2222, %v2205, %v2207
      %v2224 = vsel %vm2222, %v2207, %v2209
      %v2225 = vsel %vm2222, %v2209, %v2211
      %v2226 = vsel %vm2222, %v2211, %v2213
      %v2227 = vsel %vm2222, %v2213, %v2215
      %v2228 = vsel %vm2222, %v2215, %v2217
      %v2229 = vsel %vm2222, %v2217, %v2219
      %v2230 = vsel %vm2222, %v2219, %v2221
      %v2241 = vsel %vm275, %v2203, 0
      %2243 = vmatprep.subr.mxu0 %v2224
      %2244 = vmatpush1.msra.mxu0 %v2223
      %2245 = vmatprep.subr.mxu0 0.0
      %2246 = vmatpush1.msra.mxu0 0.0
      %2247 = vmatprep.subr.mxu0 0.0
      %2248 = vmatpush1.msra.mxu0 0.0
      %2249 = vmatprep.subr.mxu0 0.0
      %2250 = vmatpush1.msra.mxu0 0.0
      %2251 = vmatprep.subr.mxu0 0.0
      %2252 = vmatpush1.msra.mxu0 0.0
      %2253 = vmatprep.subr.mxu0 0.0
      %2254 = vmatpush1.msra.mxu0 0.0
      %2255 = vmatprep.subr.mxu0 0.0
      %2256 = vmatpush1.msra.mxu0 0.0
      %2257 = vmatprep.subr.mxu0 0.0
      %2258 = vmatpush1.msra.mxu0 0.0
      %2259 = vmatprep.subr.mxu0 0.0
      %2260 = vmatpush1.msra.mxu0 0.0
      %2261 = vmatprep.subr.mxu0 0.0
      %2262 = vmatpush1.msra.mxu0 0.0
      %2263 = vmatprep.subr.mxu0 0.0
      %2264 = vmatpush1.msra.mxu0 0.0
      %2265 = vmatprep.subr.mxu0 0.0
      %2266 = vmatpush1.msra.mxu0 0.0
      %2267 = vmatprep.subr.mxu0 0.0
      %2268 = vmatpush1.msra.mxu0 0.0
      %2269 = vmatprep.subr.mxu0 0.0
      %2270 = vmatpush1.msra.mxu0 0.0
      %2271 = vmatprep.subr.mxu0 0.0
      %2272 = vmatpush1.msra.mxu0 0.0
      %2273 = vmatprep.subr.mxu0 0.0
      %2274 = vmatpush1.msra.mxu0 0.0
      %2275 = vmatprep.subr.mxu0 0.0
      %2276 = vmatpush1.msra.mxu0 0.0
      %2277 = vmatprep.subr.mxu0 0.0
      %2278 = vmatpush1.msra.mxu0 0.0
      %2279 = vmatprep.subr.mxu0 0.0
      %2280 = vmatpush1.msra.mxu0 0.0
      %2281 = vmatprep.subr.mxu0 0.0
      %2282 = vmatpush1.msra.mxu0 0.0
      %2283 = vmatprep.subr.mxu0 0.0
      %2284 = vmatpush1.msra.mxu0 0.0
      %2285 = vmatprep.subr.mxu0 0.0
      %2286 = vmatpush1.msra.mxu0 0.0
      %2287 = vmatprep.subr.mxu0 0.0
      %2288 = vmatpush1.msra.mxu0 0.0
      %2289 = vmatprep.subr.mxu0 0.0
      %2290 = vmatpush1.msra.mxu0 0.0
      %2291 = vmatprep.subr.mxu0 0.0
      %2292 = vmatpush1.msra.mxu0 0.0
      %2293 = vmatprep.subr.mxu0 0.0
      %2294 = vmatpush1.msra.mxu0 0.0
      %2295 = vmatprep.subr.mxu0 0.0
      %2296 = vmatpush1.msra.mxu0 0.0
      %2297 = vmatprep.subr.mxu0 0.0
      %2298 = vmatpush1.msra.mxu0 0.0
      %2299 = vmatprep.subr.mxu0 0.0
      %2300 = vmatpush1.msra.mxu0 0.0
      %2301 = vmatprep.subr.mxu0 0.0
      %2302 = vmatpush1.msra.mxu0 0.0
      %2303 = vmatprep.subr.mxu0 0.0
      %2304 = vmatpush1.msra.mxu0 0.0
      %2305 = vmatprep.subr.mxu0 0.0
      %2306 = vmatpush1.msra.mxu0 0.0
      %2307 = vmatprep.mubr.f32.mxu0 0.0
      %2308 = vmatmul.mubr.f32.gmra.mrb[0].mxu0 %v2241
      %v2309 = vpop.f32.mrb[0].mxu0
      %v2310 = vadd.f32 0.0, %v2309
      %v2311 = vpop.f32.mrb[0].mxu0
      %v2312 = vadd.f32 0.0, %v2311
      %2313 = vdwg.mxu0
      %2314 = vmatprep.subr.mxu0 %v2226
      %2315 = vmatpush1.msra.mxu0 %v2225
      %2316 = vmatprep.subr.mxu0 0.0
      %2317 = vmatpush1.msra.mxu0 0.0
      %2318 = vmatprep.subr.mxu0 0.0
      %2319 = vmatpush1.msra.mxu0 0.0
      %2320 = vmatprep.subr.mxu0 0.0
      %2321 = vmatpush1.msra.mxu0 0.0
      %2322 = vmatprep.subr.mxu0 0.0
      %2323 = vmatpush1.msra.mxu0 0.0
      %2324 = vmatprep.subr.mxu0 0.0
      %2325 = vmatpush1.msra.mxu0 0.0
      %2326 = vmatprep.subr.mxu0 0.0
      %2327 = vmatpush1.msra.mxu0 0.0
      %2328 = vmatprep.subr.mxu0 0.0
      %2329 = vmatpush1.msra.mxu0 0.0
      %2330 = vmatprep.subr.mxu0 0.0
      %2331 = vmatpush1.msra.mxu0 0.0
      %2332 = vmatprep.subr.mxu0 0.0
      %2333 = vmatpush1.msra.mxu0 0.0
      %2334 = vmatprep.subr.mxu0 0.0
      %2335 = vmatpush1.msra.mxu0 0.0
      %2336 = vmatprep.subr.mxu0 0.0
      %2337 = vmatpush1.msra.mxu0 0.0
      %2338 = vmatprep.subr.mxu0 0.0
      %2339 = vmatpush1.msra.mxu0 0.0
      %2340 = vmatprep.subr.mxu0 0.0
      %2341 = vmatpush1.msra.mxu0 0.0
      %2342 = vmatprep.subr.mxu0 0.0
      %2343 = vmatpush1.msra.mxu0 0.0
      %2344 = vmatprep.subr.mxu0 0.0
      %2345 = vmatpush1.msra.mxu0 0.0
      %2346 = vmatprep.subr.mxu0 0.0
      %2347 = vmatpush1.msra.mxu0 0.0
      %2348 = vmatprep.subr.mxu0 0.0
      %2349 = vmatpush1.msra.mxu0 0.0
      %2350 = vmatprep.subr.mxu0 0.0
      %2351 = vmatpush1.msra.mxu0 0.0
      %2352 = vmatprep.subr.mxu0 0.0
      %2353 = vmatpush1.msra.mxu0 0.0
      %2354 = vmatprep.subr.mxu0 0.0
      %2355 = vmatpush1.msra.mxu0 0.0
      %2356 = vmatprep.subr.mxu0 0.0
      %2357 = vmatpush1.msra.mxu0 0.0
      %2358 = vmatprep.subr.mxu0 0.0
      %2359 = vmatpush1.msra.mxu0 0.0
      %2360 = vmatprep.subr.mxu0 0.0
      %2361 = vmatpush1.msra.mxu0 0.0
      %2362 = vmatprep.subr.mxu0 0.0
      %2363 = vmatpush1.msra.mxu0 0.0
      %2364 = vmatprep.subr.mxu0 0.0
      %2365 = vmatpush1.msra.mxu0 0.0
      %2366 = vmatprep.subr.mxu0 0.0
      %2367 = vmatpush1.msra.mxu0 0.0
      %2368 = vmatprep.subr.mxu0 0.0
      %2369 = vmatpush1.msra.mxu0 0.0
      %2370 = vmatprep.subr.mxu0 0.0
      %2371 = vmatpush1.msra.mxu0 0.0
      %2372 = vmatprep.subr.mxu0 0.0
      %2373 = vmatpush1.msra.mxu0 0.0
      %2374 = vmatprep.subr.mxu0 0.0
      %2375 = vmatpush1.msra.mxu0 0.0
      %2376 = vmatprep.subr.mxu0 0.0
      %2377 = vmatpush1.msra.mxu0 0.0
      %2378 = vmatprep.mubr.f32.mxu0 0.0
      %2379 = vmatmul.mubr.f32.gmra.mrb[0].mxu0 %v2241
      %v2380 = vpop.f32.mrb[0].mxu0
      %v2381 = vadd.f32 0.0, %v2380
      %v2382 = vpop.f32.mrb[0].mxu0
      %v2383 = vadd.f32 0.0, %v2382
      %2384 = vdwg.mxu0
      %2385 = vmatprep.subr.mxu0 %v2228
      %2386 = vmatpush1.msra.mxu0 %v2227
      %2387 = vmatprep.subr.mxu0 0.0
      %2388 = vmatpush1.msra.mxu0 0.0
      %2389 = vmatprep.subr.mxu0 0.0
      %2390 = vmatpush1.msra.mxu0 0.0
      %2391 = vmatprep.subr.mxu0 0.0
      %2392 = vmatpush1.msra.mxu0 0.0
      %2393 = vmatprep.subr.mxu0 0.0
      %2394 = vmatpush1.msra.mxu0 0.0
      %2395 = vmatprep.subr.mxu0 0.0
      %2396 = vmatpush1.msra.mxu0 0.0
      %2397 = vmatprep.subr.mxu0 0.0
      %2398 = vmatpush1.msra.mxu0 0.0
      %2399 = vmatprep.subr.mxu0 0.0
      %2400 = vmatpush1.msra.mxu0 0.0
      %2401 = vmatprep.subr.mxu0 0.0
      %2402 = vmatpush1.msra.mxu0 0.0
      %2403 = vmatprep.subr.mxu0 0.0
      %2404 = vmatpush1.msra.mxu0 0.0
      %2405 = vmatprep.subr.mxu0 0.0
      %2406 = vmatpush1.msra.mxu0 0.0
      %2407 = vmatprep.subr.mxu0 0.0
      %2408 = vmatpush1.msra.mxu0 0.0
      %2409 = vmatprep.subr.mxu0 0.0
      %2410 = vmatpush1.msra.mxu0 0.0
      %2411 = vmatprep.subr.mxu0 0.0
      %2412 = vmatpush1.msra.mxu0 0.0
      %2413 = vmatprep.subr.mxu0 0.0
      %2414 = vmatpush1.msra.mxu0 0.0
      %2415 = vmatprep.subr.mxu0 0.0
      %2416 = vmatpush1.msra.mxu0 0.0
      %2417 = vmatprep.subr.mxu0 0.0
      %2418 = vmatpush1.msra.mxu0 0.0
      %2419 = vmatprep.subr.mxu0 0.0
      %2420 = vmatpush1.msra.mxu0 0.0
      %2421 = vmatprep.subr.mxu0 0.0
      %2422 = vmatpush1.msra.mxu0 0.0
      %2423 = vmatprep.subr.mxu0 0.0
      %2424 = vmatpush1.msra.mxu0 0.0
      %2425 = vmatprep.subr.mxu0 0.0
      %2426 = vmatpush1.msra.mxu0 0.0
      %2427 = vmatprep.subr.mxu0 0.0
      %2428 = vmatpush1.msra.mxu0 0.0
      %2429 = vmatprep.subr.mxu0 0.0
      %2430 = vmatpush1.msra.mxu0 0.0
      %2431 = vmatprep.subr.mxu0 0.0
      %2432 = vmatpush1.msra.mxu0 0.0
      %2433 = vmatprep.subr.mxu0 0.0
      %2434 = vmatpush1.msra.mxu0 0.0
      %2435 = vmatprep.subr.mxu0 0.0
      %2436 = vmatpush1.msra.mxu0 0.0
      %2437 = vmatprep.subr.mxu0 0.0
      %2438 = vmatpush1.msra.mxu0 0.0
      %2439 = vmatprep.subr.mxu0 0.0
      %2440 = vmatpush1.msra.mxu0 0.0
      %2441 = vmatprep.subr.mxu0 0.0
      %2442 = vmatpush1.msra.mxu0 0.0
      %2443 = vmatprep.subr.mxu0 0.0
      %2444 = vmatpush1.msra.mxu0 0.0
      %2445 = vmatprep.subr.mxu0 0.0
      %2446 = vmatpush1.msra.mxu0 0.0
      %2447 = vmatprep.subr.mxu0 0.0
      %2448 = vmatpush1.msra.mxu0 0.0
      %2449 = vmatprep.mubr.f32.mxu0 0.0
      %2450 = vmatmul.mubr.f32.gmra.mrb[0].mxu0 %v2241
      %v2451 = vpop.f32.mrb[0].mxu0
      %v2452 = vadd.f32 0.0, %v2451
      %v2453 = vpop.f32.mrb[0].mxu0
      %v2454 = vadd.f32 0.0, %v2453
      %2455 = vdwg.mxu0
      %2456 = vmatprep.subr.mxu0 %v2230
      %2457 = vmatpush1.msra.mxu0 %v2229
      %2458 = vmatprep.subr.mxu0 0.0
      %2459 = vmatpush1.msra.mxu0 0.0
      %2460 = vmatprep.subr.mxu0 0.0
      %2461 = vmatpush1.msra.mxu0 0.0
      %2462 = vmatprep.subr.mxu0 0.0
      %2463 = vmatpush1.msra.mxu0 0.0
      %2464 = vmatprep.subr.mxu0 0.0
      %2465 = vmatpush1.msra.mxu0 0.0
      %2466 = vmatprep.subr.mxu0 0.0
      %2467 = vmatpush1.msra.mxu0 0.0
      %2468 = vmatprep.subr.mxu0 0.0
      %2469 = vmatpush1.msra.mxu0 0.0
      %2470 = vmatprep.subr.mxu0 0.0
      %2471 = vmatpush1.msra.mxu0 0.0
      %2472 = vmatprep.subr.mxu0 0.0
      %2473 = vmatpush1.msra.mxu0 0.0
      %2474 = vmatprep.subr.mxu0 0.0
      %2475 = vmatpush1.msra.mxu0 0.0
      %2476 = vmatprep.subr.mxu0 0.0
      %2477 = vmatpush1.msra.mxu0 0.0
      %2478 = vmatprep.subr.mxu0 0.0
      %2479 = vmatpush1.msra.mxu0 0.0
      %2480 = vmatprep.subr.mxu0 0.0
      %2481 = vmatpush1.msra.mxu0 0.0
      %2482 = vmatprep.subr.mxu0 0.0
      %2483 = vmatpush1.msra.mxu0 0.0
      %2484 = vmatprep.subr.mxu0 0.0
      %2485 = vmatpush1.msra.mxu0 0.0
      %2486 = vmatprep.subr.mxu0 0.0
      %2487 = vmatpush1.msra.mxu0 0.0
      %2488 = vmatprep.subr.mxu0 0.0
      %2489 = vmatpush1.msra.mxu0 0.0
      %2490 = vmatprep.subr.mxu0 0.0
      %2491 = vmatpush1.msra.mxu0 0.0
      %2492 = vmatprep.subr.mxu0 0.0
      %2493 = vmatpush1.msra.mxu0 0.0
      %2494 = vmatprep.subr.mxu0 0.0
      %2495 = vmatpush1.msra.mxu0 0.0
      %2496 = vmatprep.subr.mxu0 0.0
      %2497 = vmatpush1.msra.mxu0 0.0
      %2498 = vmatprep.subr.mxu0 0.0
      %2499 = vmatpush1.msra.mxu0 0.0
      %2500 = vmatprep.subr.mxu0 0.0
      %2501 = vmatpush1.msra.mxu0 0.0
      %2502 = vmatprep.subr.mxu0 0.0
      %2503 = vmatpush1.msra.mxu0 0.0
      %2504 = vmatprep.subr.mxu0 0.0
      %2505 = vmatpush1.msra.mxu0 0.0
      %2506 = vmatprep.subr.mxu0 0.0
      %2507 = vmatpush1.msra.mxu0 0.0
      %2508 = vmatprep.subr.mxu0 0.0
      %2509 = vmatpush1.msra.mxu0 0.0
      %2510 = vmatprep.subr.mxu0 0.0
      %2511 = vmatpush1.msra.mxu0 0.0
      %2512 = vmatprep.subr.mxu0 0.0
      %2513 = vmatpush1.msra.mxu0 0.0
      %2514 = vmatprep.subr.mxu0 0.0
      %2515 = vmatpush1.msra.mxu0 0.0
      %2516 = vmatprep.subr.mxu0 0.0
      %2517 = vmatpush1.msra.mxu0 0.0
      %2518 = vmatprep.subr.mxu0 0.0
      %2519 = vmatpush1.msra.mxu0 0.0
      %2520 = vmatprep.mubr.f32.mxu0 0.0
      %2521 = vmatmul.mubr.f32.gmra.mrb[0].mxu0 %v2241
      %v2522 = vpop.f32.mrb[0].mxu0
      %v2523 = vadd.f32 0.0, %v2522
      %v2524 = vpop.f32.mrb[0].mxu0
      %v2525 = vadd.f32 0.0, %v2524
      %2526 = vdwg.mxu0
      %2527 = vmatprep.subr.mxu0 0.0
      %2528 = vmatpush1.msra.mxu0 %v2221
      %2529 = vmatprep.subr.mxu0 0.0
      %2530 = vmatpush1.msra.mxu0 0.0
      %2531 = vmatprep.subr.mxu0 0.0
      %2532 = vmatpush1.msra.mxu0 0.0
      %2533 = vmatprep.subr.mxu0 0.0
      %2534 = vmatpush1.msra.mxu0 0.0
      %2535 = vmatprep.subr.mxu0 0.0
      %2536 = vmatpush1.msra.mxu0 0.0
      %2537 = vmatprep.subr.mxu0 0.0
      %2538 = vmatpush1.msra.mxu0 0.0
      %2539 = vmatprep.subr.mxu0 0.0
      %2540 = vmatpush1.msra.mxu0 0.0
      %2541 = vmatprep.subr.mxu0 0.0
      %2542 = vmatpush1.msra.mxu0 0.0
      %2543 = vmatprep.subr.mxu0 0.0
      %2544 = vmatpush1.msra.mxu0 0.0
      %2545 = vmatprep.subr.mxu0 0.0
      %2546 = vmatpush1.msra.mxu0 0.0
      %2547 = vmatprep.subr.mxu0 0.0
      %2548 = vmatpush1.msra.mxu0 0.0
      %2549 = vmatprep.subr.mxu0 0.0
      %2550 = vmatpush1.msra.mxu0 0.0
      %2551 = vmatprep.subr.mxu0 0.0
      %2552 = vmatpush1.msra.mxu0 0.0
      %2553 = vmatprep.subr.mxu0 0.0
      %2554 = vmatpush1.msra.mxu0 0.0
      %2555 = vmatprep.subr.mxu0 0.0
      %2556 = vmatpush1.msra.mxu0 0.0
      %2557 = vmatprep.subr.mxu0 0.0
      %2558 = vmatpush1.msra.mxu0 0.0
      %2559 = vmatprep.subr.mxu0 0.0
      %2560 = vmatpush1.msra.mxu0 0.0
      %2561 = vmatprep.subr.mxu0 0.0
      %2562 = vmatpush1.msra.mxu0 0.0
      %2563 = vmatprep.subr.mxu0 0.0
      %2564 = vmatpush1.msra.mxu0 0.0
      %2565 = vmatprep.subr.mxu0 0.0
      %2566 = vmatpush1.msra.mxu0 0.0
      %2567 = vmatprep.subr.mxu0 0.0
      %2568 = vmatpush1.msra.mxu0 0.0
      %2569 = vmatprep.subr.mxu0 0.0
      %2570 = vmatpush1.msra.mxu0 0.0
      %2571 = vmatprep.subr.mxu0 0.0
      %2572 = vmatpush1.msra.mxu0 0.0
      %2573 = vmatprep.subr.mxu0 0.0
      %2574 = vmatpush1.msra.mxu0 0.0
      %2575 = vmatprep.subr.mxu0 0.0
      %2576 = vmatpush1.msra.mxu0 0.0
      %2577 = vmatprep.subr.mxu0 0.0
      %2578 = vmatpush1.msra.mxu0 0.0
      %2579 = vmatprep.subr.mxu0 0.0
      %2580 = vmatpush1.msra.mxu0 0.0
      %2581 = vmatprep.subr.mxu0 0.0
      %2582 = vmatpush1.msra.mxu0 0.0
      %2583 = vmatprep.subr.mxu0 0.0
      %2584 = vmatpush1.msra.mxu0 0.0
      %2585 = vmatprep.subr.mxu0 0.0
      %2586 = vmatpush1.msra.mxu0 0.0
      %2587 = vmatprep.subr.mxu0 0.0
      %2588 = vmatpush1.msra.mxu0 0.0
      %2589 = vmatprep.subr.mxu0 0.0
      %2590 = vmatpush1.msra.mxu0 0.0
      %2591 = vmatprep.mubr.f32.mxu0 0.0
      %2592 = vmatmul.mubr.f32.gmra.mrb[0].mxu0 %v2241
      %v2593 = vpop.f32.mrb[0].mxu0
      %v2594 = vadd.f32 0.0, %v2593
      %v2595 = vpop.f32.mrb[0].mxu0
      %2596 = vdwg.mxu0
      %v2597 = vadd.f32 %v2193, %v2310
      %v2598 = vadd.f32 %v2194, %v2312
      %v2599 = vadd.f32 %v2195, %v2381
      %v2600 = vadd.f32 %v2196, %v2383
      %v2601 = vadd.f32 %v2197, %v2452
      %v2602 = vadd.f32 %v2198, %v2454
      %v2603 = vadd.f32 %v2199, %v2523
      %v2604 = vadd.f32 %v2200, %v2525
      %v2605 = vadd.f32 %v2201, %v2594
      %s2606 = scalar_lea.vmem %s1, 48
      %v2607 = vld [vmem:[%s2606] sm:$0xff]
      %v2608 = vld [vmem:[%s207] sm:$0xff]
      %v2609 = vld [vmem:[%s207 + $0x8] sm:$0xff]
      %v2610 = vld [vmem:[%s207 + $0x10] sm:$0xff]
      %v2611 = vld [vmem:[%s207 + $0x18] sm:$0xff]
      %v2612 = vld [vmem:[%s207 + $0x20] sm:$0xff]
      %v2613 = vld [vmem:[%s207 + $0x28] sm:$0xff]
      %v2614 = vld [vmem:[%s207 + $0x30] sm:$0xff]
      %v2615 = vld [vmem:[%s207 + $0x38] sm:$0xff]
      %v2616 = vld [vmem:[%s207 + $0x40] sm:$0xff]
      %v2617 = vld [vmem:[%s207 + $0x48] sm:$0xff]
      %2628 = vrot.lane.b32.xlu0 %v2608, 60
      %v2629 = vpop.permute.xlu0 %2628
      %2630 = vrot.lane.b32.xlu0 %v2609, 60
      %v2631 = vpop.permute.xlu0 %2630
      %2632 = vrot.lane.b32.xlu0 %v2610, 60
      %v2633 = vpop.permute.xlu0 %2632
      %2634 = vrot.lane.b32.xlu0 %v2611, 60
      %v2635 = vpop.permute.xlu0 %2634
      %2636 = vrot.lane.b32.xlu0 %v2612, 60
      %v2637 = vpop.permute.xlu0 %2636
      %2638 = vrot.lane.b32.xlu0 %v2613, 60
      %v2639 = vpop.permute.xlu0 %2638
      %2640 = vrot.lane.b32.xlu0 %v2614, 60
      %v2641 = vpop.permute.xlu0 %2640
      %2642 = vrot.lane.b32.xlu0 %v2615, 60
      %v2643 = vpop.permute.xlu0 %2642
      %2644 = vrot.lane.b32.xlu0 %v2616, 60
      %v2645 = vpop.permute.xlu0 %2644
      %2646 = vrot.lane.b32.xlu0 %v2617, 60
      %v2647 = vpop.permute.xlu0 %2646
      %vm2648 = vcmask 490496
      %v2649 = vsel %vm2648, %v2629, %v2631
      %v2650 = vsel %vm2648, %v2631, %v2633
      %v2651 = vsel %vm2648, %v2633, %v2635
      %v2652 = vsel %vm2648, %v2635, %v2637
      %v2653 = vsel %vm2648, %v2637, %v2639
      %v2654 = vsel %vm2648, %v2639, %v2641
      %v2655 = vsel %vm2648, %v2641, %v2643
      %v2656 = vsel %vm2648, %v2643, %v2645
      %v2657 = vsel %vm2648, %v2645, %v2647
      %v2668 = vsel %vm275, %v2607, 0
      %2670 = vmatprep.subr.mxu0 %v2650
      %2671 = vmatpush1.msra.mxu0 %v2649
      %2672 = vmatprep.subr.mxu0 0.0
      %2673 = vmatpush1.msra.mxu0 0.0
      %2674 = vmatprep.subr.mxu0 0.0
      %2675 = vmatpush1.msra.mxu0 0.0
      %2676 = vmatprep.subr.mxu0 0.0
      %2677 = vmatpush1.msra.mxu0 0.0
      %2678 = vmatprep.subr.mxu0 0.0
      %2679 = vmatpush1.msra.mxu0 0.0
      %2680 = vmatprep.subr.mxu0 0.0
      %2681 = vmatpush1.msra.mxu0 0.0
      %2682 = vmatprep.subr.mxu0 0.0
      %2683 = vmatpush1.msra.mxu0 0.0
      %2684 = vmatprep.subr.mxu0 0.0
      %2685 = vmatpush1.msra.mxu0 0.0
      %2686 = vmatprep.subr.mxu0 0.0
      %2687 = vmatpush1.msra.mxu0 0.0
      %2688 = vmatprep.subr.mxu0 0.0
      %2689 = vmatpush1.msra.mxu0 0.0
      %2690 = vmatprep.subr.mxu0 0.0
      %2691 = vmatpush1.msra.mxu0 0.0
      %2692 = vmatprep.subr.mxu0 0.0
      %2693 = vmatpush1.msra.mxu0 0.0
      %2694 = vmatprep.subr.mxu0 0.0
      %2695 = vmatpush1.msra.mxu0 0.0
      %2696 = vmatprep.subr.mxu0 0.0
      %2697 = vmatpush1.msra.mxu0 0.0
      %2698 = vmatprep.subr.mxu0 0.0
      %2699 = vmatpush1.msra.mxu0 0.0
      %2700 = vmatprep.subr.mxu0 0.0
      %2701 = vmatpush1.msra.mxu0 0.0
      %2702 = vmatprep.subr.mxu0 0.0
      %2703 = vmatpush1.msra.mxu0 0.0
      %2704 = vmatprep.subr.mxu0 0.0
      %2705 = vmatpush1.msra.mxu0 0.0
      %2706 = vmatprep.subr.mxu0 0.0
      %2707 = vmatpush1.msra.mxu0 0.0
      %2708 = vmatprep.subr.mxu0 0.0
      %2709 = vmatpush1.msra.mxu0 0.0
      %2710 = vmatprep.subr.mxu0 0.0
      %2711 = vmatpush1.msra.mxu0 0.0
      %2712 = vmatprep.subr.mxu0 0.0
      %2713 = vmatpush1.msra.mxu0 0.0
      %2714 = vmatprep.subr.mxu0 0.0
      %2715 = vmatpush1.msra.mxu0 0.0
      %2716 = vmatprep.subr.mxu0 0.0
      %2717 = vmatpush1.msra.mxu0 0.0
      %2718 = vmatprep.subr.mxu0 0.0
      %2719 = vmatpush1.msra.mxu0 0.0
      %2720 = vmatprep.subr.mxu0 0.0
      %2721 = vmatpush1.msra.mxu0 0.0
      %2722 = vmatprep.subr.mxu0 0.0
      %2723 = vmatpush1.msra.mxu0 0.0
      %2724 = vmatprep.subr.mxu0 0.0
      %2725 = vmatpush1.msra.mxu0 0.0
      %2726 = vmatprep.subr.mxu0 0.0
      %2727 = vmatpush1.msra.mxu0 0.0
      %2728 = vmatprep.subr.mxu0 0.0
      %2729 = vmatpush1.msra.mxu0 0.0
      %2730 = vmatprep.subr.mxu0 0.0
      %2731 = vmatpush1.msra.mxu0 0.0
      %2732 = vmatprep.subr.mxu0 0.0
      %2733 = vmatpush1.msra.mxu0 0.0
      %2734 = vmatprep.mubr.f32.mxu0 0.0
      %2735 = vmatmul.mubr.f32.gmra.mrb[0].mxu0 %v2668
      %v2736 = vpop.f32.mrb[0].mxu0
      %v2737 = vadd.f32 0.0, %v2736
      %v2738 = vpop.f32.mrb[0].mxu0
      %v2739 = vadd.f32 0.0, %v2738
      %2740 = vdwg.mxu0
      %2741 = vmatprep.subr.mxu0 %v2652
      %2742 = vmatpush1.msra.mxu0 %v2651
      %2743 = vmatprep.subr.mxu0 0.0
      %2744 = vmatpush1.msra.mxu0 0.0
      %2745 = vmatprep.subr.mxu0 0.0
      %2746 = vmatpush1.msra.mxu0 0.0
      %2747 = vmatprep.subr.mxu0 0.0
      %2748 = vmatpush1.msra.mxu0 0.0
      %2749 = vmatprep.subr.mxu0 0.0
      %2750 = vmatpush1.msra.mxu0 0.0
      %2751 = vmatprep.subr.mxu0 0.0
      %2752 = vmatpush1.msra.mxu0 0.0
      %2753 = vmatprep.subr.mxu0 0.0
      %2754 = vmatpush1.msra.mxu0 0.0
      %2755 = vmatprep.subr.mxu0 0.0
      %2756 = vmatpush1.msra.mxu0 0.0
      %2757 = vmatprep.subr.mxu0 0.0
      %2758 = vmatpush1.msra.mxu0 0.0
      %2759 = vmatprep.subr.mxu0 0.0
      %2760 = vmatpush1.msra.mxu0 0.0
      %2761 = vmatprep.subr.mxu0 0.0
      %2762 = vmatpush1.msra.mxu0 0.0
      %2763 = vmatprep.subr.mxu0 0.0
      %2764 = vmatpush1.msra.mxu0 0.0
      %2765 = vmatprep.subr.mxu0 0.0
      %2766 = vmatpush1.msra.mxu0 0.0
      %2767 = vmatprep.subr.mxu0 0.0
      %2768 = vmatpush1.msra.mxu0 0.0
      %2769 = vmatprep.subr.mxu0 0.0
      %2770 = vmatpush1.msra.mxu0 0.0
      %2771 = vmatprep.subr.mxu0 0.0
      %2772 = vmatpush1.msra.mxu0 0.0
      %2773 = vmatprep.subr.mxu0 0.0
      %2774 = vmatpush1.msra.mxu0 0.0
      %2775 = vmatprep.subr.mxu0 0.0
      %2776 = vmatpush1.msra.mxu0 0.0
      %2777 = vmatprep.subr.mxu0 0.0
      %2778 = vmatpush1.msra.mxu0 0.0
      %2779 = vmatprep.subr.mxu0 0.0
      %2780 = vmatpush1.msra.mxu0 0.0
      %2781 = vmatprep.subr.mxu0 0.0
      %2782 = vmatpush1.msra.mxu0 0.0
      %2783 = vmatprep.subr.mxu0 0.0
      %2784 = vmatpush1.msra.mxu0 0.0
      %2785 = vmatprep.subr.mxu0 0.0
      %2786 = vmatpush1.msra.mxu0 0.0
      %2787 = vmatprep.subr.mxu0 0.0
      %2788 = vmatpush1.msra.mxu0 0.0
      %2789 = vmatprep.subr.mxu0 0.0
      %2790 = vmatpush1.msra.mxu0 0.0
      %2791 = vmatprep.subr.mxu0 0.0
      %2792 = vmatpush1.msra.mxu0 0.0
      %2793 = vmatprep.subr.mxu0 0.0
      %2794 = vmatpush1.msra.mxu0 0.0
      %2795 = vmatprep.subr.mxu0 0.0
      %2796 = vmatpush1.msra.mxu0 0.0
      %2797 = vmatprep.subr.mxu0 0.0
      %2798 = vmatpush1.msra.mxu0 0.0
      %2799 = vmatprep.subr.mxu0 0.0
      %2800 = vmatpush1.msra.mxu0 0.0
      %2801 = vmatprep.subr.mxu0 0.0
      %2802 = vmatpush1.msra.mxu0 0.0
      %2803 = vmatprep.subr.mxu0 0.0
      %2804 = vmatpush1.msra.mxu0 0.0
      %2805 = vmatprep.mubr.f32.mxu0 0.0
      %2806 = vmatmul.mubr.f32.gmra.mrb[0].mxu0 %v2668
      %v2807 = vpop.f32.mrb[0].mxu0
      %v2808 = vadd.f32 0.0, %v2807
      %v2809 = vpop.f32.mrb[0].mxu0
      %v2810 = vadd.f32 0.0, %v2809
      %2811 = vdwg.mxu0
      %2812 = vmatprep.subr.mxu0 %v2654
      %2813 = vmatpush1.msra.mxu0 %v2653
      %2814 = vmatprep.subr.mxu0 0.0
      %2815 = vmatpush1.msra.mxu0 0.0
      %2816 = vmatprep.subr.mxu0 0.0
      %2817 = vmatpush1.msra.mxu0 0.0
      %2818 = vmatprep.subr.mxu0 0.0
      %2819 = vmatpush1.msra.mxu0 0.0
      %2820 = vmatprep.subr.mxu0 0.0
      %2821 = vmatpush1.msra.mxu0 0.0
      %2822 = vmatprep.subr.mxu0 0.0
      %2823 = vmatpush1.msra.mxu0 0.0
      %2824 = vmatprep.subr.mxu0 0.0
      %2825 = vmatpush1.msra.mxu0 0.0
      %2826 = vmatprep.subr.mxu0 0.0
      %2827 = vmatpush1.msra.mxu0 0.0
      %2828 = vmatprep.subr.mxu0 0.0
      %2829 = vmatpush1.msra.mxu0 0.0
      %2830 = vmatprep.subr.mxu0 0.0
      %2831 = vmatpush1.msra.mxu0 0.0
      %2832 = vmatprep.subr.mxu0 0.0
      %2833 = vmatpush1.msra.mxu0 0.0
      %2834 = vmatprep.subr.mxu0 0.0
      %2835 = vmatpush1.msra.mxu0 0.0
      %2836 = vmatprep.subr.mxu0 0.0
      %2837 = vmatpush1.msra.mxu0 0.0
      %2838 = vmatprep.subr.mxu0 0.0
      %2839 = vmatpush1.msra.mxu0 0.0
      %2840 = vmatprep.subr.mxu0 0.0
      %2841 = vmatpush1.msra.mxu0 0.0
      %2842 = vmatprep.subr.mxu0 0.0
      %2843 = vmatpush1.msra.mxu0 0.0
      %2844 = vmatprep.subr.mxu0 0.0
      %2845 = vmatpush1.msra.mxu0 0.0
      %2846 = vmatprep.subr.mxu0 0.0
      %2847 = vmatpush1.msra.mxu0 0.0
      %2848 = vmatprep.subr.mxu0 0.0
      %2849 = vmatpush1.msra.mxu0 0.0
      %2850 = vmatprep.subr.mxu0 0.0
      %2851 = vmatpush1.msra.mxu0 0.0
      %2852 = vmatprep.subr.mxu0 0.0
      %2853 = vmatpush1.msra.mxu0 0.0
      %2854 = vmatprep.subr.mxu0 0.0
      %2855 = vmatpush1.msra.mxu0 0.0
      %2856 = vmatprep.subr.mxu0 0.0
      %2857 = vmatpush1.msra.mxu0 0.0
      %2858 = vmatprep.subr.mxu0 0.0
      %2859 = vmatpush1.msra.mxu0 0.0
      %2860 = vmatprep.subr.mxu0 0.0
      %2861 = vmatpush1.msra.mxu0 0.0
      %2862 = vmatprep.subr.mxu0 0.0
      %2863 = vmatpush1.msra.mxu0 0.0
      %2864 = vmatprep.subr.mxu0 0.0
      %2865 = vmatpush1.msra.mxu0 0.0
      %2866 = vmatprep.subr.mxu0 0.0
      %2867 = vmatpush1.msra.mxu0 0.0
      %2868 = vmatprep.subr.mxu0 0.0
      %2869 = vmatpush1.msra.mxu0 0.0
      %2870 = vmatprep.subr.mxu0 0.0
      %2871 = vmatpush1.msra.mxu0 0.0
      %2872 = vmatprep.subr.mxu0 0.0
      %2873 = vmatpush1.msra.mxu0 0.0
      %2874 = vmatprep.subr.mxu0 0.0
      %2875 = vmatpush1.msra.mxu0 0.0
      %2876 = vmatprep.mubr.f32.mxu0 0.0
      %2877 = vmatmul.mubr.f32.gmra.mrb[0].mxu0 %v2668
      %v2878 = vpop.f32.mrb[0].mxu0
      %v2879 = vadd.f32 0.0, %v2878
      %v2880 = vpop.f32.mrb[0].mxu0
      %v2881 = vadd.f32 0.0, %v2880
      %2882 = vdwg.mxu0
      %2883 = vmatprep.subr.mxu0 %v2656
      %2884 = vmatpush1.msra.mxu0 %v2655
      %2885 = vmatprep.subr.mxu0 0.0
      %2886 = vmatpush1.msra.mxu0 0.0
      %2887 = vmatprep.subr.mxu0 0.0
      %2888 = vmatpush1.msra.mxu0 0.0
      %2889 = vmatprep.subr.mxu0 0.0
      %2890 = vmatpush1.msra.mxu0 0.0
      %2891 = vmatprep.subr.mxu0 0.0
      %2892 = vmatpush1.msra.mxu0 0.0
      %2893 = vmatprep.subr.mxu0 0.0
      %2894 = vmatpush1.msra.mxu0 0.0
      %2895 = vmatprep.subr.mxu0 0.0
      %2896 = vmatpush1.msra.mxu0 0.0
      %2897 = vmatprep.subr.mxu0 0.0
      %2898 = vmatpush1.msra.mxu0 0.0
      %2899 = vmatprep.subr.mxu0 0.0
      %2900 = vmatpush1.msra.mxu0 0.0
      %2901 = vmatprep.subr.mxu0 0.0
      %2902 = vmatpush1.msra.mxu0 0.0
      %2903 = vmatprep.subr.mxu0 0.0
      %2904 = vmatpush1.msra.mxu0 0.0
      %2905 = vmatprep.subr.mxu0 0.0
      %2906 = vmatpush1.msra.mxu0 0.0
      %2907 = vmatprep.subr.mxu0 0.0
      %2908 = vmatpush1.msra.mxu0 0.0
      %2909 = vmatprep.subr.mxu0 0.0
      %2910 = vmatpush1.msra.mxu0 0.0
      %2911 = vmatprep.subr.mxu0 0.0
      %2912 = vmatpush1.msra.mxu0 0.0
      %2913 = vmatprep.subr.mxu0 0.0
      %2914 = vmatpush1.msra.mxu0 0.0
      %2915 = vmatprep.subr.mxu0 0.0
      %2916 = vmatpush1.msra.mxu0 0.0
      %2917 = vmatprep.subr.mxu0 0.0
      %2918 = vmatpush1.msra.mxu0 0.0
      %2919 = vmatprep.subr.mxu0 0.0
      %2920 = vmatpush1.msra.mxu0 0.0
      %2921 = vmatprep.subr.mxu0 0.0
      %2922 = vmatpush1.msra.mxu0 0.0
      %2923 = vmatprep.subr.mxu0 0.0
      %2924 = vmatpush1.msra.mxu0 0.0
      %2925 = vmatprep.subr.mxu0 0.0
      %2926 = vmatpush1.msra.mxu0 0.0
      %2927 = vmatprep.subr.mxu0 0.0
      %2928 = vmatpush1.msra.mxu0 0.0
      %2929 = vmatprep.subr.mxu0 0.0
      %2930 = vmatpush1.msra.mxu0 0.0
      %2931 = vmatprep.subr.mxu0 0.0
      %2932 = vmatpush1.msra.mxu0 0.0
      %2933 = vmatprep.subr.mxu0 0.0
      %2934 = vmatpush1.msra.mxu0 0.0
      %2935 = vmatprep.subr.mxu0 0.0
      %2936 = vmatpush1.msra.mxu0 0.0
      %2937 = vmatprep.subr.mxu0 0.0
      %2938 = vmatpush1.msra.mxu0 0.0
      %2939 = vmatprep.subr.mxu0 0.0
      %2940 = vmatpush1.msra.mxu0 0.0
      %2941 = vmatprep.subr.mxu0 0.0
      %2942 = vmatpush1.msra.mxu0 0.0
      %2943 = vmatprep.subr.mxu0 0.0
      %2944 = vmatpush1.msra.mxu0 0.0
      %2945 = vmatprep.subr.mxu0 0.0
      %2946 = vmatpush1.msra.mxu0 0.0
      %2947 = vmatprep.mubr.f32.mxu0 0.0
      %2948 = vmatmul.mubr.f32.gmra.mrb[0].mxu0 %v2668
      %v2949 = vpop.f32.mrb[0].mxu0
      %v2950 = vadd.f32 0.0, %v2949
      %v2951 = vpop.f32.mrb[0].mxu0
      %v2952 = vadd.f32 0.0, %v2951
      %2953 = vdwg.mxu0
      %2954 = vmatprep.subr.mxu0 0.0
      %2955 = vmatpush1.msra.mxu0 %v2657
      %2956 = vmatprep.subr.mxu0 0.0
      %2957 = vmatpush1.msra.mxu0 0.0
      %2958 = vmatprep.subr.mxu0 0.0
      %2959 = vmatpush1.msra.mxu0 0.0
      %2960 = vmatprep.subr.mxu0 0.0
      %2961 = vmatpush1.msra.mxu0 0.0
      %2962 = vmatprep.subr.mxu0 0.0
      %2963 = vmatpush1.msra.mxu0 0.0
      %2964 = vmatprep.subr.mxu0 0.0
      %2965 = vmatpush1.msra.mxu0 0.0
      %2966 = vmatprep.subr.mxu0 0.0
      %2967 = vmatpush1.msra.mxu0 0.0
      %2968 = vmatprep.subr.mxu0 0.0
      %2969 = vmatpush1.msra.mxu0 0.0
      %2970 = vmatprep.subr.mxu0 0.0
      %2971 = vmatpush1.msra.mxu0 0.0
      %2972 = vmatprep.subr.mxu0 0.0
      %2973 = vmatpush1.msra.mxu0 0.0
      %2974 = vmatprep.subr.mxu0 0.0
      %2975 = vmatpush1.msra.mxu0 0.0
      %2976 = vmatprep.subr.mxu0 0.0
      %2977 = vmatpush1.msra.mxu0 0.0
      %2978 = vmatprep.subr.mxu0 0.0
      %2979 = vmatpush1.msra.mxu0 0.0
      %2980 = vmatprep.subr.mxu0 0.0
      %2981 = vmatpush1.msra.mxu0 0.0
      %2982 = vmatprep.subr.mxu0 0.0
      %2983 = vmatpush1.msra.mxu0 0.0
      %2984 = vmatprep.subr.mxu0 0.0
      %2985 = vmatpush1.msra.mxu0 0.0
      %2986 = vmatprep.subr.mxu0 0.0
      %2987 = vmatpush1.msra.mxu0 0.0
      %2988 = vmatprep.subr.mxu0 0.0
      %2989 = vmatpush1.msra.mxu0 0.0
      %2990 = vmatprep.subr.mxu0 0.0
      %2991 = vmatpush1.msra.mxu0 0.0
      %2992 = vmatprep.subr.mxu0 0.0
      %2993 = vmatpush1.msra.mxu0 0.0
      %2994 = vmatprep.subr.mxu0 0.0
      %2995 = vmatpush1.msra.mxu0 0.0
      %2996 = vmatprep.subr.mxu0 0.0
      %2997 = vmatpush1.msra.mxu0 0.0
      %2998 = vmatprep.subr.mxu0 0.0
      %2999 = vmatpush1.msra.mxu0 0.0
      %3000 = vmatprep.subr.mxu0 0.0
      %3001 = vmatpush1.msra.mxu0 0.0
      %3002 = vmatprep.subr.mxu0 0.0
      %3003 = vmatpush1.msra.mxu0 0.0
      %3004 = vmatprep.subr.mxu0 0.0
      %3005 = vmatpush1.msra.mxu0 0.0
      %3006 = vmatprep.subr.mxu0 0.0
      %3007 = vmatpush1.msra.mxu0 0.0
      %3008 = vmatprep.subr.mxu0 0.0
      %3009 = vmatpush1.msra.mxu0 0.0
      %3010 = vmatprep.subr.mxu0 0.0
      %3011 = vmatpush1.msra.mxu0 0.0
      %3012 = vmatprep.subr.mxu0 0.0
      %3013 = vmatpush1.msra.mxu0 0.0
      %3014 = vmatprep.subr.mxu0 0.0
      %3015 = vmatpush1.msra.mxu0 0.0
      %3016 = vmatprep.subr.mxu0 0.0
      %3017 = vmatpush1.msra.mxu0 0.0
      %3018 = vmatprep.mubr.f32.mxu0 0.0
      %3019 = vmatmul.mubr.f32.gmra.mrb[0].mxu0 %v2668
      %v3020 = vpop.f32.mrb[0].mxu0
      %v3021 = vadd.f32 0.0, %v3020
      %v3022 = vpop.f32.mrb[0].mxu0
      %3023 = vdwg.mxu0
      %v3024 = vadd.f32 %v2597, %v2737
      %v3025 = vadd.f32 %v2598, %v2739
      %v3026 = vadd.f32 %v2599, %v2808
      %v3027 = vadd.f32 %v2600, %v2810
      %v3028 = vadd.f32 %v2601, %v2879
      %v3029 = vadd.f32 %v2602, %v2881
      %v3030 = vadd.f32 %v2603, %v2950
      %v3031 = vadd.f32 %v2604, %v2952
      %v3032 = vadd.f32 %v2605, %v3021
      %s3033 = scalar_lea.vmem %s1, 56
      %v3034 = vld [vmem:[%s3033] sm:$0xff]
      %3035 = vrot.lane.b32.xlu0 %v2608, 59
      %v3036 = vpop.permute.xlu0 %3035
      %3037 = vrot.lane.b32.xlu0 %v2609, 59
      %v3038 = vpop.permute.xlu0 %3037
      %3039 = vrot.lane.b32.xlu0 %v2610, 59
      %v3040 = vpop.permute.xlu0 %3039
      %3041 = vrot.lane.b32.xlu0 %v2611, 59
      %v3042 = vpop.permute.xlu0 %3041
      %3043 = vrot.lane.b32.xlu0 %v2612, 59
      %v3044 = vpop.permute.xlu0 %3043
      %3045 = vrot.lane.b32.xlu0 %v2613, 59
      %v3046 = vpop.permute.xlu0 %3045
      %3047 = vrot.lane.b32.xlu0 %v2614, 59
      %v3048 = vpop.permute.xlu0 %3047
      %3049 = vrot.lane.b32.xlu0 %v2615, 59
      %v3050 = vpop.permute.xlu0 %3049
      %3051 = vrot.lane.b32.xlu0 %v2616, 59
      %v3052 = vpop.permute.xlu0 %3051
      %3053 = vrot.lane.b32.xlu0 %v2617, 59
      %v3054 = vpop.permute.xlu0 %3053
      %vm3055 = vcmask 482304
      %v3056 = vsel %vm3055, %v3036, %v3038
      %v3057 = vsel %vm3055, %v3038, %v3040
      %v3058 = vsel %vm3055, %v3040, %v3042
      %v3059 = vsel %vm3055, %v3042, %v3044
      %v3060 = vsel %vm3055, %v3044, %v3046
      %v3061 = vsel %vm3055, %v3046, %v3048
      %v3062 = vsel %vm3055, %v3048, %v3050
      %v3063 = vsel %vm3055, %v3050, %v3052
      %v3064 = vsel %vm3055, %v3052, %v3054
      %v3075 = vsel %vm275, %v3034, 0
      %3077 = vmatprep.subr.mxu0 %v3057
      %3078 = vmatpush1.msra.mxu0 %v3056
      %3079 = vmatprep.subr.mxu0 0.0
      %3080 = vmatpush1.msra.mxu0 0.0
      %3081 = vmatprep.subr.mxu0 0.0
      %3082 = vmatpush1.msra.mxu0 0.0
      %3083 = vmatprep.subr.mxu0 0.0
      %3084 = vmatpush1.msra.mxu0 0.0
      %3085 = vmatprep.subr.mxu0 0.0
      %3086 = vmatpush1.msra.mxu0 0.0
      %3087 = vmatprep.subr.mxu0 0.0
      %3088 = vmatpush1.msra.mxu0 0.0
      %3089 = vmatprep.subr.mxu0 0.0
      %3090 = vmatpush1.msra.mxu0 0.0
      %3091 = vmatprep.subr.mxu0 0.0
      %3092 = vmatpush1.msra.mxu0 0.0
      %3093 = vmatprep.subr.mxu0 0.0
      %3094 = vmatpush1.msra.mxu0 0.0
      %3095 = vmatprep.subr.mxu0 0.0
      %3096 = vmatpush1.msra.mxu0 0.0
      %3097 = vmatprep.subr.mxu0 0.0
      %3098 = vmatpush1.msra.mxu0 0.0
      %3099 = vmatprep.subr.mxu0 0.0
      %3100 = vmatpush1.msra.mxu0 0.0
      %3101 = vmatprep.subr.mxu0 0.0
      %3102 = vmatpush1.msra.mxu0 0.0
      %3103 = vmatprep.subr.mxu0 0.0
      %3104 = vmatpush1.msra.mxu0 0.0
      %3105 = vmatprep.subr.mxu0 0.0
      %3106 = vmatpush1.msra.mxu0 0.0
      %3107 = vmatprep.subr.mxu0 0.0
      %3108 = vmatpush1.msra.mxu0 0.0
      %3109 = vmatprep.subr.mxu0 0.0
      %3110 = vmatpush1.msra.mxu0 0.0
      %3111 = vmatprep.subr.mxu0 0.0
      %3112 = vmatpush1.msra.mxu0 0.0
      %3113 = vmatprep.subr.mxu0 0.0
      %3114 = vmatpush1.msra.mxu0 0.0
      %3115 = vmatprep.subr.mxu0 0.0
      %3116 = vmatpush1.msra.mxu0 0.0
      %3117 = vmatprep.subr.mxu0 0.0
      %3118 = vmatpush1.msra.mxu0 0.0
      %3119 = vmatprep.subr.mxu0 0.0
      %3120 = vmatpush1.msra.mxu0 0.0
      %3121 = vmatprep.subr.mxu0 0.0
      %3122 = vmatpush1.msra.mxu0 0.0
      %3123 = vmatprep.subr.mxu0 0.0
      %3124 = vmatpush1.msra.mxu0 0.0
      %3125 = vmatprep.subr.mxu0 0.0
      %3126 = vmatpush1.msra.mxu0 0.0
      %3127 = vmatprep.subr.mxu0 0.0
      %3128 = vmatpush1.msra.mxu0 0.0
      %3129 = vmatprep.subr.mxu0 0.0
      %3130 = vmatpush1.msra.mxu0 0.0
      %3131 = vmatprep.subr.mxu0 0.0
      %3132 = vmatpush1.msra.mxu0 0.0
      %3133 = vmatprep.subr.mxu0 0.0
      %3134 = vmatpush1.msra.mxu0 0.0
      %3135 = vmatprep.subr.mxu0 0.0
      %3136 = vmatpush1.msra.mxu0 0.0
      %3137 = vmatprep.subr.mxu0 0.0
      %3138 = vmatpush1.msra.mxu0 0.0
      %3139 = vmatprep.subr.mxu0 0.0
      %3140 = vmatpush1.msra.mxu0 0.0
      %3141 = vmatprep.mubr.f32.mxu0 0.0
      %3142 = vmatmul.mubr.f32.gmra.mrb[0].mxu0 %v3075
      %v3143 = vpop.f32.mrb[0].mxu0
      %v3144 = vadd.f32 0.0, %v3143
      %v3145 = vpop.f32.mrb[0].mxu0
      %v3146 = vadd.f32 0.0, %v3145
      %3147 = vdwg.mxu0
      %3148 = vmatprep.subr.mxu0 %v3059
      %3149 = vmatpush1.msra.mxu0 %v3058
      %3150 = vmatprep.subr.mxu0 0.0
      %3151 = vmatpush1.msra.mxu0 0.0
      %3152 = vmatprep.subr.mxu0 0.0
      %3153 = vmatpush1.msra.mxu0 0.0
      %3154 = vmatprep.subr.mxu0 0.0
      %3155 = vmatpush1.msra.mxu0 0.0
      %3156 = vmatprep.subr.mxu0 0.0
      %3157 = vmatpush1.msra.mxu0 0.0
      %3158 = vmatprep.subr.mxu0 0.0
      %3159 = vmatpush1.msra.mxu0 0.0
      %3160 = vmatprep.subr.mxu0 0.0
      %3161 = vmatpush1.msra.mxu0 0.0
      %3162 = vmatprep.subr.mxu0 0.0
      %3163 = vmatpush1.msra.mxu0 0.0
      %3164 = vmatprep.subr.mxu0 0.0
      %3165 = vmatpush1.msra.mxu0 0.0
      %3166 = vmatprep.subr.mxu0 0.0
      %3167 = vmatpush1.msra.mxu0 0.0
      %3168 = vmatprep.subr.mxu0 0.0
      %3169 = vmatpush1.msra.mxu0 0.0
      %3170 = vmatprep.subr.mxu0 0.0
      %3171 = vmatpush1.msra.mxu0 0.0
      %3172 = vmatprep.subr.mxu0 0.0
      %3173 = vmatpush1.msra.mxu0 0.0
      %3174 = vmatprep.subr.mxu0 0.0
      %3175 = vmatpush1.msra.mxu0 0.0
      %3176 = vmatprep.subr.mxu0 0.0
      %3177 = vmatpush1.msra.mxu0 0.0
      %3178 = vmatprep.subr.mxu0 0.0
      %3179 = vmatpush1.msra.mxu0 0.0
      %3180 = vmatprep.subr.mxu0 0.0
      %3181 = vmatpush1.msra.mxu0 0.0
      %3182 = vmatprep.subr.mxu0 0.0
      %3183 = vmatpush1.msra.mxu0 0.0
      %3184 = vmatprep.subr.mxu0 0.0
      %3185 = vmatpush1.msra.mxu0 0.0
      %3186 = vmatprep.subr.mxu0 0.0
      %3187 = vmatpush1.msra.mxu0 0.0
      %3188 = vmatprep.subr.mxu0 0.0
      %3189 = vmatpush1.msra.mxu0 0.0
      %3190 = vmatprep.subr.mxu0 0.0
      %3191 = vmatpush1.msra.mxu0 0.0
      %3192 = vmatprep.subr.mxu0 0.0
      %3193 = vmatpush1.msra.mxu0 0.0
      %3194 = vmatprep.subr.mxu0 0.0
      %3195 = vmatpush1.msra.mxu0 0.0
      %3196 = vmatprep.subr.mxu0 0.0
      %3197 = vmatpush1.msra.mxu0 0.0
      %3198 = vmatprep.subr.mxu0 0.0
      %3199 = vmatpush1.msra.mxu0 0.0
      %3200 = vmatprep.subr.mxu0 0.0
      %3201 = vmatpush1.msra.mxu0 0.0
      %3202 = vmatprep.subr.mxu0 0.0
      %3203 = vmatpush1.msra.mxu0 0.0
      %3204 = vmatprep.subr.mxu0 0.0
      %3205 = vmatpush1.msra.mxu0 0.0
      %3206 = vmatprep.subr.mxu0 0.0
      %3207 = vmatpush1.msra.mxu0 0.0
      %3208 = vmatprep.subr.mxu0 0.0
      %3209 = vmatpush1.msra.mxu0 0.0
      %3210 = vmatprep.subr.mxu0 0.0
      %3211 = vmatpush1.msra.mxu0 0.0
      %3212 = vmatprep.mubr.f32.mxu0 0.0
      %3213 = vmatmul.mubr.f32.gmra.mrb[0].mxu0 %v3075
      %v3214 = vpop.f32.mrb[0].mxu0
      %v3215 = vadd.f32 0.0, %v3214
      %v3216 = vpop.f32.mrb[0].mxu0
      %v3217 = vadd.f32 0.0, %v3216
      %3218 = vdwg.mxu0
      %3219 = vmatprep.subr.mxu0 %v3061
      %3220 = vmatpush1.msra.mxu0 %v3060
      %3221 = vmatprep.subr.mxu0 0.0
      %3222 = vmatpush1.msra.mxu0 0.0
      %3223 = vmatprep.subr.mxu0 0.0
      %3224 = vmatpush1.msra.mxu0 0.0
      %3225 = vmatprep.subr.mxu0 0.0
      %3226 = vmatpush1.msra.mxu0 0.0
      %3227 = vmatprep.subr.mxu0 0.0
      %3228 = vmatpush1.msra.mxu0 0.0
      %3229 = vmatprep.subr.mxu0 0.0
      %3230 = vmatpush1.msra.mxu0 0.0
      %3231 = vmatprep.subr.mxu0 0.0
      %3232 = vmatpush1.msra.mxu0 0.0
      %3233 = vmatprep.subr.mxu0 0.0
      %3234 = vmatpush1.msra.mxu0 0.0
      %3235 = vmatprep.subr.mxu0 0.0
      %3236 = vmatpush1.msra.mxu0 0.0
      %3237 = vmatprep.subr.mxu0 0.0
      %3238 = vmatpush1.msra.mxu0 0.0
      %3239 = vmatprep.subr.mxu0 0.0
      %3240 = vmatpush1.msra.mxu0 0.0
      %3241 = vmatprep.subr.mxu0 0.0
      %3242 = vmatpush1.msra.mxu0 0.0
      %3243 = vmatprep.subr.mxu0 0.0
      %3244 = vmatpush1.msra.mxu0 0.0
      %3245 = vmatprep.subr.mxu0 0.0
      %3246 = vmatpush1.msra.mxu0 0.0
      %3247 = vmatprep.subr.mxu0 0.0
      %3248 = vmatpush1.msra.mxu0 0.0
      %3249 = vmatprep.subr.mxu0 0.0
      %3250 = vmatpush1.msra.mxu0 0.0
      %3251 = vmatprep.subr.mxu0 0.0
      %3252 = vmatpush1.msra.mxu0 0.0
      %3253 = vmatprep.subr.mxu0 0.0
      %3254 = vmatpush1.msra.mxu0 0.0
      %3255 = vmatprep.subr.mxu0 0.0
      %3256 = vmatpush1.msra.mxu0 0.0
      %3257 = vmatprep.subr.mxu0 0.0
      %3258 = vmatpush1.msra.mxu0 0.0
      %3259 = vmatprep.subr.mxu0 0.0
      %3260 = vmatpush1.msra.mxu0 0.0
      %3261 = vmatprep.subr.mxu0 0.0
      %3262 = vmatpush1.msra.mxu0 0.0
      %3263 = vmatprep.subr.mxu0 0.0
      %3264 = vmatpush1.msra.mxu0 0.0
      %3265 = vmatprep.subr.mxu0 0.0
      %3266 = vmatpush1.msra.mxu0 0.0
      %3267 = vmatprep.subr.mxu0 0.0
      %3268 = vmatpush1.msra.mxu0 0.0
      %3269 = vmatprep.subr.mxu0 0.0
      %3270 = vmatpush1.msra.mxu0 0.0
      %3271 = vmatprep.subr.mxu0 0.0
      %3272 = vmatpush1.msra.mxu0 0.0
      %3273 = vmatprep.subr.mxu0 0.0
      %3274 = vmatpush1.msra.mxu0 0.0
      %3275 = vmatprep.subr.mxu0 0.0
      %3276 = vmatpush1.msra.mxu0 0.0
      %3277 = vmatprep.subr.mxu0 0.0
      %3278 = vmatpush1.msra.mxu0 0.0
      %3279 = vmatprep.subr.mxu0 0.0
      %3280 = vmatpush1.msra.mxu0 0.0
      %3281 = vmatprep.subr.mxu0 0.0
      %3282 = vmatpush1.msra.mxu0 0.0
      %3283 = vmatprep.mubr.f32.mxu0 0.0
      %3284 = vmatmul.mubr.f32.gmra.mrb[0].mxu0 %v3075
      %v3285 = vpop.f32.mrb[0].mxu0
      %v3286 = vadd.f32 0.0, %v3285
      %v3287 = vpop.f32.mrb[0].mxu0
      %v3288 = vadd.f32 0.0, %v3287
      %3289 = vdwg.mxu0
      %3290 = vmatprep.subr.mxu0 %v3063
      %3291 = vmatpush1.msra.mxu0 %v3062
      %3292 = vmatprep.subr.mxu0 0.0
      %3293 = vmatpush1.msra.mxu0 0.0
      %3294 = vmatprep.subr.mxu0 0.0
      %3295 = vmatpush1.msra.mxu0 0.0
      %3296 = vmatprep.subr.mxu0 0.0
      %3297 = vmatpush1.msra.mxu0 0.0
      %3298 = vmatprep.subr.mxu0 0.0
      %3299 = vmatpush1.msra.mxu0 0.0
      %3300 = vmatprep.subr.mxu0 0.0
      %3301 = vmatpush1.msra.mxu0 0.0
      %3302 = vmatprep.subr.mxu0 0.0
      %3303 = vmatpush1.msra.mxu0 0.0
      %3304 = vmatprep.subr.mxu0 0.0
      %3305 = vmatpush1.msra.mxu0 0.0
      %3306 = vmatprep.subr.mxu0 0.0
      %3307 = vmatpush1.msra.mxu0 0.0
      %3308 = vmatprep.subr.mxu0 0.0
      %3309 = vmatpush1.msra.mxu0 0.0
      %3310 = vmatprep.subr.mxu0 0.0
      %3311 = vmatpush1.msra.mxu0 0.0
      %3312 = vmatprep.subr.mxu0 0.0
      %3313 = vmatpush1.msra.mxu0 0.0
      %3314 = vmatprep.subr.mxu0 0.0
      %3315 = vmatpush1.msra.mxu0 0.0
      %3316 = vmatprep.subr.mxu0 0.0
      %3317 = vmatpush1.msra.mxu0 0.0
      %3318 = vmatprep.subr.mxu0 0.0
      %3319 = vmatpush1.msra.mxu0 0.0
      %3320 = vmatprep.subr.mxu0 0.0
      %3321 = vmatpush1.msra.mxu0 0.0
      %3322 = vmatprep.subr.mxu0 0.0
      %3323 = vmatpush1.msra.mxu0 0.0
      %3324 = vmatprep.subr.mxu0 0.0
      %3325 = vmatpush1.msra.mxu0 0.0
      %3326 = vmatprep.subr.mxu0 0.0
      %3327 = vmatpush1.msra.mxu0 0.0
      %3328 = vmatprep.subr.mxu0 0.0
      %3329 = vmatpush1.msra.mxu0 0.0
      %3330 = vmatprep.subr.mxu0 0.0
      %3331 = vmatpush1.msra.mxu0 0.0
      %3332 = vmatprep.subr.mxu0 0.0
      %3333 = vmatpush1.msra.mxu0 0.0
      %3334 = vmatprep.subr.mxu0 0.0
      %3335 = vmatpush1.msra.mxu0 0.0
      %3336 = vmatprep.subr.mxu0 0.0
      %3337 = vmatpush1.msra.mxu0 0.0
      %3338 = vmatprep.subr.mxu0 0.0
      %3339 = vmatpush1.msra.mxu0 0.0
      %3340 = vmatprep.subr.mxu0 0.0
      %3341 = vmatpush1.msra.mxu0 0.0
      %3342 = vmatprep.subr.mxu0 0.0
      %3343 = vmatpush1.msra.mxu0 0.0
      %3344 = vmatprep.subr.mxu0 0.0
      %3345 = vmatpush1.msra.mxu0 0.0
      %3346 = vmatprep.subr.mxu0 0.0
      %3347 = vmatpush1.msra.mxu0 0.0
      %3348 = vmatprep.subr.mxu0 0.0
      %3349 = vmatpush1.msra.mxu0 0.0
      %3350 = vmatprep.subr.mxu0 0.0
      %3351 = vmatpush1.msra.mxu0 0.0
      %3352 = vmatprep.subr.mxu0 0.0
      %3353 = vmatpush1.msra.mxu0 0.0
      %3354 = vmatprep.mubr.f32.mxu0 0.0
      %3355 = vmatmul.mubr.f32.gmra.mrb[0].mxu0 %v3075
      %v3356 = vpop.f32.mrb[0].mxu0
      %v3357 = vadd.f32 0.0, %v3356
      %v3358 = vpop.f32.mrb[0].mxu0
      %v3359 = vadd.f32 0.0, %v3358
      %3360 = vdwg.mxu0
      %3361 = vmatprep.subr.mxu0 0.0
      %3362 = vmatpush1.msra.mxu0 %v3064
      %3363 = vmatprep.subr.mxu0 0.0
      %3364 = vmatpush1.msra.mxu0 0.0
      %3365 = vmatprep.subr.mxu0 0.0
      %3366 = vmatpush1.msra.mxu0 0.0
      %3367 = vmatprep.subr.mxu0 0.0
      %3368 = vmatpush1.msra.mxu0 0.0
      %3369 = vmatprep.subr.mxu0 0.0
      %3370 = vmatpush1.msra.mxu0 0.0
      %3371 = vmatprep.subr.mxu0 0.0
      %3372 = vmatpush1.msra.mxu0 0.0
      %3373 = vmatprep.subr.mxu0 0.0
      %3374 = vmatpush1.msra.mxu0 0.0
      %3375 = vmatprep.subr.mxu0 0.0
      %3376 = vmatpush1.msra.mxu0 0.0
      %3377 = vmatprep.subr.mxu0 0.0
      %3378 = vmatpush1.msra.mxu0 0.0
      %3379 = vmatprep.subr.mxu0 0.0
      %3380 = vmatpush1.msra.mxu0 0.0
      %3381 = vmatprep.subr.mxu0 0.0
      %3382 = vmatpush1.msra.mxu0 0.0
      %3383 = vmatprep.subr.mxu0 0.0
      %3384 = vmatpush1.msra.mxu0 0.0
      %3385 = vmatprep.subr.mxu0 0.0
      %3386 = vmatpush1.msra.mxu0 0.0
      %3387 = vmatprep.subr.mxu0 0.0
      %3388 = vmatpush1.msra.mxu0 0.0
      %3389 = vmatprep.subr.mxu0 0.0
      %3390 = vmatpush1.msra.mxu0 0.0
      %3391 = vmatprep.subr.mxu0 0.0
      %3392 = vmatpush1.msra.mxu0 0.0
      %3393 = vmatprep.subr.mxu0 0.0
      %3394 = vmatpush1.msra.mxu0 0.0
      %3395 = vmatprep.subr.mxu0 0.0
      %3396 = vmatpush1.msra.mxu0 0.0
      %3397 = vmatprep.subr.mxu0 0.0
      %3398 = vmatpush1.msra.mxu0 0.0
      %3399 = vmatprep.subr.mxu0 0.0
      %3400 = vmatpush1.msra.mxu0 0.0
      %3401 = vmatprep.subr.mxu0 0.0
      %3402 = vmatpush1.msra.mxu0 0.0
      %3403 = vmatprep.subr.mxu0 0.0
      %3404 = vmatpush1.msra.mxu0 0.0
      %3405 = vmatprep.subr.mxu0 0.0
      %3406 = vmatpush1.msra.mxu0 0.0
      %3407 = vmatprep.subr.mxu0 0.0
      %3408 = vmatpush1.msra.mxu0 0.0
      %3409 = vmatprep.subr.mxu0 0.0
      %3410 = vmatpush1.msra.mxu0 0.0
      %3411 = vmatprep.subr.mxu0 0.0
      %3412 = vmatpush1.msra.mxu0 0.0
      %3413 = vmatprep.subr.mxu0 0.0
      %3414 = vmatpush1.msra.mxu0 0.0
      %3415 = vmatprep.subr.mxu0 0.0
      %3416 = vmatpush1.msra.mxu0 0.0
      %3417 = vmatprep.subr.mxu0 0.0
      %3418 = vmatpush1.msra.mxu0 0.0
      %3419 = vmatprep.subr.mxu0 0.0
      %3420 = vmatpush1.msra.mxu0 0.0
      %3421 = vmatprep.subr.mxu0 0.0
      %3422 = vmatpush1.msra.mxu0 0.0
      %3423 = vmatprep.subr.mxu0 0.0
      %3424 = vmatpush1.msra.mxu0 0.0
      %3425 = vmatprep.mubr.f32.mxu0 0.0
      %3426 = vmatmul.mubr.f32.gmra.mrb[0].mxu0 %v3075
      %v3427 = vpop.f32.mrb[0].mxu0
      %v3428 = vadd.f32 0.0, %v3427
      %v3429 = vpop.f32.mrb[0].mxu0
      %3430 = vdwg.mxu0
      %v3431 = vadd.f32 %v3024, %v3144
      %v3432 = vadd.f32 %v3025, %v3146
      %v3433 = vadd.f32 %v3026, %v3215
      %v3434 = vadd.f32 %v3027, %v3217
      %v3435 = vadd.f32 %v3028, %v3286
      %v3436 = vadd.f32 %v3029, %v3288
      %v3437 = vadd.f32 %v3030, %v3357
      %v3438 = vadd.f32 %v3031, %v3359
      %v3439 = vadd.f32 %v3032, %v3428
      %s3440 = scalar_lea.vmem %s1, 64
      %v3441 = vld [vmem:[%s3440] sm:$0xff]
      %3442 = vrot.lane.b32.xlu0 %v2608, 58
      %v3443 = vpop.permute.xlu0 %3442
      %3444 = vrot.lane.b32.xlu0 %v2609, 58
      %v3445 = vpop.permute.xlu0 %3444
      %3446 = vrot.lane.b32.xlu0 %v2610, 58
      %v3447 = vpop.permute.xlu0 %3446
      %3448 = vrot.lane.b32.xlu0 %v2611, 58
      %v3449 = vpop.permute.xlu0 %3448
      %3450 = vrot.lane.b32.xlu0 %v2612, 58
      %v3451 = vpop.permute.xlu0 %3450
      %3452 = vrot.lane.b32.xlu0 %v2613, 58
      %v3453 = vpop.permute.xlu0 %3452
      %3454 = vrot.lane.b32.xlu0 %v2614, 58
      %v3455 = vpop.permute.xlu0 %3454
      %3456 = vrot.lane.b32.xlu0 %v2615, 58
      %v3457 = vpop.permute.xlu0 %3456
      %3458 = vrot.lane.b32.xlu0 %v2616, 58
      %v3459 = vpop.permute.xlu0 %3458
      %3460 = vrot.lane.b32.xlu0 %v2617, 58
      %v3461 = vpop.permute.xlu0 %3460
      %vm3462 = vcmask 474112
      %v3463 = vsel %vm3462, %v3443, %v3445
      %v3464 = vsel %vm3462, %v3445, %v3447
      %v3465 = vsel %vm3462, %v3447, %v3449
      %v3466 = vsel %vm3462, %v3449, %v3451
      %v3467 = vsel %vm3462, %v3451, %v3453
      %v3468 = vsel %vm3462, %v3453, %v3455
      %v3469 = vsel %vm3462, %v3455, %v3457
      %v3470 = vsel %vm3462, %v3457, %v3459
      %v3471 = vsel %vm3462, %v3459, %v3461
      %v3482 = vsel %vm275, %v3441, 0
      %3484 = vmatprep.subr.mxu0 %v3464
      %3485 = vmatpush1.msra.mxu0 %v3463
      %3486 = vmatprep.subr.mxu0 0.0
      %3487 = vmatpush1.msra.mxu0 0.0
      %3488 = vmatprep.subr.mxu0 0.0
      %3489 = vmatpush1.msra.mxu0 0.0
      %3490 = vmatprep.subr.mxu0 0.0
      %3491 = vmatpush1.msra.mxu0 0.0
      %3492 = vmatprep.subr.mxu0 0.0
      %3493 = vmatpush1.msra.mxu0 0.0
      %3494 = vmatprep.subr.mxu0 0.0
      %3495 = vmatpush1.msra.mxu0 0.0
      %3496 = vmatprep.subr.mxu0 0.0
      %3497 = vmatpush1.msra.mxu0 0.0
      %3498 = vmatprep.subr.mxu0 0.0
      %3499 = vmatpush1.msra.mxu0 0.0
      %3500 = vmatprep.subr.mxu0 0.0
      %3501 = vmatpush1.msra.mxu0 0.0
      %3502 = vmatprep.subr.mxu0 0.0
      %3503 = vmatpush1.msra.mxu0 0.0
      %3504 = vmatprep.subr.mxu0 0.0
      %3505 = vmatpush1.msra.mxu0 0.0
      %3506 = vmatprep.subr.mxu0 0.0
      %3507 = vmatpush1.msra.mxu0 0.0
      %3508 = vmatprep.subr.mxu0 0.0
      %3509 = vmatpush1.msra.mxu0 0.0
      %3510 = vmatprep.subr.mxu0 0.0
      %3511 = vmatpush1.msra.mxu0 0.0
      %3512 = vmatprep.subr.mxu0 0.0
      %3513 = vmatpush1.msra.mxu0 0.0
      %3514 = vmatprep.subr.mxu0 0.0
      %3515 = vmatpush1.msra.mxu0 0.0
      %3516 = vmatprep.subr.mxu0 0.0
      %3517 = vmatpush1.msra.mxu0 0.0
      %3518 = vmatprep.subr.mxu0 0.0
      %3519 = vmatpush1.msra.mxu0 0.0
      %3520 = vmatprep.subr.mxu0 0.0
      %3521 = vmatpush1.msra.mxu0 0.0
      %3522 = vmatprep.subr.mxu0 0.0
      %3523 = vmatpush1.msra.mxu0 0.0
      %3524 = vmatprep.subr.mxu0 0.0
      %3525 = vmatpush1.msra.mxu0 0.0
      %3526 = vmatprep.subr.mxu0 0.0
      %3527 = vmatpush1.msra.mxu0 0.0
      %3528 = vmatprep.subr.mxu0 0.0
      %3529 = vmatpush1.msra.mxu0 0.0
      %3530 = vmatprep.subr.mxu0 0.0
      %3531 = vmatpush1.msra.mxu0 0.0
      %3532 = vmatprep.subr.mxu0 0.0
      %3533 = vmatpush1.msra.mxu0 0.0
      %3534 = vmatprep.subr.mxu0 0.0
      %3535 = vmatpush1.msra.mxu0 0.0
      %3536 = vmatprep.subr.mxu0 0.0
      %3537 = vmatpush1.msra.mxu0 0.0
      %3538 = vmatprep.subr.mxu0 0.0
      %3539 = vmatpush1.msra.mxu0 0.0
      %3540 = vmatprep.subr.mxu0 0.0
      %3541 = vmatpush1.msra.mxu0 0.0
      %3542 = vmatprep.subr.mxu0 0.0
      %3543 = vmatpush1.msra.mxu0 0.0
      %3544 = vmatprep.subr.mxu0 0.0
      %3545 = vmatpush1.msra.mxu0 0.0
      %3546 = vmatprep.subr.mxu0 0.0
      %3547 = vmatpush1.msra.mxu0 0.0
      %3548 = vmatprep.mubr.f32.mxu0 0.0
      %3549 = vmatmul.mubr.f32.gmra.mrb[0].mxu0 %v3482
      %v3550 = vpop.f32.mrb[0].mxu0
      %v3551 = vadd.f32 0.0, %v3550
      %v3552 = vpop.f32.mrb[0].mxu0
      %v3553 = vadd.f32 0.0, %v3552
      %3554 = vdwg.mxu0
      %3555 = vmatprep.subr.mxu0 %v3466
      %3556 = vmatpush1.msra.mxu0 %v3465
      %3557 = vmatprep.subr.mxu0 0.0
      %3558 = vmatpush1.msra.mxu0 0.0
      %3559 = vmatprep.subr.mxu0 0.0
      %3560 = vmatpush1.msra.mxu0 0.0
      %3561 = vmatprep.subr.mxu0 0.0
      %3562 = vmatpush1.msra.mxu0 0.0
      %3563 = vmatprep.subr.mxu0 0.0
      %3564 = vmatpush1.msra.mxu0 0.0
      %3565 = vmatprep.subr.mxu0 0.0
      %3566 = vmatpush1.msra.mxu0 0.0
      %3567 = vmatprep.subr.mxu0 0.0
      %3568 = vmatpush1.msra.mxu0 0.0
      %3569 = vmatprep.subr.mxu0 0.0
      %3570 = vmatpush1.msra.mxu0 0.0
      %3571 = vmatprep.subr.mxu0 0.0
      %3572 = vmatpush1.msra.mxu0 0.0
      %3573 = vmatprep.subr.mxu0 0.0
      %3574 = vmatpush1.msra.mxu0 0.0
      %3575 = vmatprep.subr.mxu0 0.0
      %3576 = vmatpush1.msra.mxu0 0.0
      %3577 = vmatprep.subr.mxu0 0.0
      %3578 = vmatpush1.msra.mxu0 0.0
      %3579 = vmatprep.subr.mxu0 0.0
      %3580 = vmatpush1.msra.mxu0 0.0
      %3581 = vmatprep.subr.mxu0 0.0
      %3582 = vmatpush1.msra.mxu0 0.0
      %3583 = vmatprep.subr.mxu0 0.0
      %3584 = vmatpush1.msra.mxu0 0.0
      %3585 = vmatprep.subr.mxu0 0.0
      %3586 = vmatpush1.msra.mxu0 0.0
      %3587 = vmatprep.subr.mxu0 0.0
      %3588 = vmatpush1.msra.mxu0 0.0
      %3589 = vmatprep.subr.mxu0 0.0
      %3590 = vmatpush1.msra.mxu0 0.0
      %3591 = vmatprep.subr.mxu0 0.0
      %3592 = vmatpush1.msra.mxu0 0.0
      %3593 = vmatprep.subr.mxu0 0.0
      %3594 = vmatpush1.msra.mxu0 0.0
      %3595 = vmatprep.subr.mxu0 0.0
      %3596 = vmatpush1.msra.mxu0 0.0
      %3597 = vmatprep.subr.mxu0 0.0
      %3598 = vmatpush1.msra.mxu0 0.0
      %3599 = vmatprep.subr.mxu0 0.0
      %3600 = vmatpush1.msra.mxu0 0.0
      %3601 = vmatprep.subr.mxu0 0.0
      %3602 = vmatpush1.msra.mxu0 0.0
      %3603 = vmatprep.subr.mxu0 0.0
      %3604 = vmatpush1.msra.mxu0 0.0
      %3605 = vmatprep.subr.mxu0 0.0
      %3606 = vmatpush1.msra.mxu0 0.0
      %3607 = vmatprep.subr.mxu0 0.0
      %3608 = vmatpush1.msra.mxu0 0.0
      %3609 = vmatprep.subr.mxu0 0.0
      %3610 = vmatpush1.msra.mxu0 0.0
      %3611 = vmatprep.subr.mxu0 0.0
      %3612 = vmatpush1.msra.mxu0 0.0
      %3613 = vmatprep.subr.mxu0 0.0
      %3614 = vmatpush1.msra.mxu0 0.0
      %3615 = vmatprep.subr.mxu0 0.0
      %3616 = vmatpush1.msra.mxu0 0.0
      %3617 = vmatprep.subr.mxu0 0.0
      %3618 = vmatpush1.msra.mxu0 0.0
      %3619 = vmatprep.mubr.f32.mxu0 0.0
      %3620 = vmatmul.mubr.f32.gmra.mrb[0].mxu0 %v3482
      %v3621 = vpop.f32.mrb[0].mxu0
      %v3622 = vadd.f32 0.0, %v3621
      %v3623 = vpop.f32.mrb[0].mxu0
      %v3624 = vadd.f32 0.0, %v3623
      %3625 = vdwg.mxu0
      %3626 = vmatprep.subr.mxu0 %v3468
      %3627 = vmatpush1.msra.mxu0 %v3467
      %3628 = vmatprep.subr.mxu0 0.0
      %3629 = vmatpush1.msra.mxu0 0.0
      %3630 = vmatprep.subr.mxu0 0.0
      %3631 = vmatpush1.msra.mxu0 0.0
      %3632 = vmatprep.subr.mxu0 0.0
      %3633 = vmatpush1.msra.mxu0 0.0
      %3634 = vmatprep.subr.mxu0 0.0
      %3635 = vmatpush1.msra.mxu0 0.0
      %3636 = vmatprep.subr.mxu0 0.0
      %3637 = vmatpush1.msra.mxu0 0.0
      %3638 = vmatprep.subr.mxu0 0.0
      %3639 = vmatpush1.msra.mxu0 0.0
      %3640 = vmatprep.subr.mxu0 0.0
      %3641 = vmatpush1.msra.mxu0 0.0
      %3642 = vmatprep.subr.mxu0 0.0
      %3643 = vmatpush1.msra.mxu0 0.0
      %3644 = vmatprep.subr.mxu0 0.0
      %3645 = vmatpush1.msra.mxu0 0.0
      %3646 = vmatprep.subr.mxu0 0.0
      %3647 = vmatpush1.msra.mxu0 0.0
      %3648 = vmatprep.subr.mxu0 0.0
      %3649 = vmatpush1.msra.mxu0 0.0
      %3650 = vmatprep.subr.mxu0 0.0
      %3651 = vmatpush1.msra.mxu0 0.0
      %3652 = vmatprep.subr.mxu0 0.0
      %3653 = vmatpush1.msra.mxu0 0.0
      %3654 = vmatprep.subr.mxu0 0.0
      %3655 = vmatpush1.msra.mxu0 0.0
      %3656 = vmatprep.subr.mxu0 0.0
      %3657 = vmatpush1.msra.mxu0 0.0
      %3658 = vmatprep.subr.mxu0 0.0
      %3659 = vmatpush1.msra.mxu0 0.0
      %3660 = vmatprep.subr.mxu0 0.0
      %3661 = vmatpush1.msra.mxu0 0.0
      %3662 = vmatprep.subr.mxu0 0.0
      %3663 = vmatpush1.msra.mxu0 0.0
      %3664 = vmatprep.subr.mxu0 0.0
      %3665 = vmatpush1.msra.mxu0 0.0
      %3666 = vmatprep.subr.mxu0 0.0
      %3667 = vmatpush1.msra.mxu0 0.0
      %3668 = vmatprep.subr.mxu0 0.0
      %3669 = vmatpush1.msra.mxu0 0.0
      %3670 = vmatprep.subr.mxu0 0.0
      %3671 = vmatpush1.msra.mxu0 0.0
      %3672 = vmatprep.subr.mxu0 0.0
      %3673 = vmatpush1.msra.mxu0 0.0
      %3674 = vmatprep.subr.mxu0 0.0
      %3675 = vmatpush1.msra.mxu0 0.0
      %3676 = vmatprep.subr.mxu0 0.0
      %3677 = vmatpush1.msra.mxu0 0.0
      %3678 = vmatprep.subr.mxu0 0.0
      %3679 = vmatpush1.msra.mxu0 0.0
      %3680 = vmatprep.subr.mxu0 0.0
      %3681 = vmatpush1.msra.mxu0 0.0
      %3682 = vmatprep.subr.mxu0 0.0
      %3683 = vmatpush1.msra.mxu0 0.0
      %3684 = vmatprep.subr.mxu0 0.0
      %3685 = vmatpush1.msra.mxu0 0.0
      %3686 = vmatprep.subr.mxu0 0.0
      %3687 = vmatpush1.msra.mxu0 0.0
      %3688 = vmatprep.subr.mxu0 0.0
      %3689 = vmatpush1.msra.mxu0 0.0
      %3690 = vmatprep.mubr.f32.mxu0 0.0
      %3691 = vmatmul.mubr.f32.gmra.mrb[0].mxu0 %v3482
      %v3692 = vpop.f32.mrb[0].mxu0
      %v3693 = vadd.f32 0.0, %v3692
      %v3694 = vpop.f32.mrb[0].mxu0
      %v3695 = vadd.f32 0.0, %v3694
      %3696 = vdwg.mxu0
      %3697 = vmatprep.subr.mxu0 %v3470
      %3698 = vmatpush1.msra.mxu0 %v3469
      %3699 = vmatprep.subr.mxu0 0.0
      %3700 = vmatpush1.msra.mxu0 0.0
      %3701 = vmatprep.subr.mxu0 0.0
      %3702 = vmatpush1.msra.mxu0 0.0
      %3703 = vmatprep.subr.mxu0 0.0
      %3704 = vmatpush1.msra.mxu0 0.0
      %3705 = vmatprep.subr.mxu0 0.0
      %3706 = vmatpush1.msra.mxu0 0.0
      %3707 = vmatprep.subr.mxu0 0.0
      %3708 = vmatpush1.msra.mxu0 0.0
      %3709 = vmatprep.subr.mxu0 0.0
      %3710 = vmatpush1.msra.mxu0 0.0
      %3711 = vmatprep.subr.mxu0 0.0
      %3712 = vmatpush1.msra.mxu0 0.0
      %3713 = vmatprep.subr.mxu0 0.0
      %3714 = vmatpush1.msra.mxu0 0.0
      %3715 = vmatprep.subr.mxu0 0.0
      %3716 = vmatpush1.msra.mxu0 0.0
      %3717 = vmatprep.subr.mxu0 0.0
      %3718 = vmatpush1.msra.mxu0 0.0
      %3719 = vmatprep.subr.mxu0 0.0
      %3720 = vmatpush1.msra.mxu0 0.0
      %3721 = vmatprep.subr.mxu0 0.0
      %3722 = vmatpush1.msra.mxu0 0.0
      %3723 = vmatprep.subr.mxu0 0.0
      %3724 = vmatpush1.msra.mxu0 0.0
      %3725 = vmatprep.subr.mxu0 0.0
      %3726 = vmatpush1.msra.mxu0 0.0
      %3727 = vmatprep.subr.mxu0 0.0
      %3728 = vmatpush1.msra.mxu0 0.0
      %3729 = vmatprep.subr.mxu0 0.0
      %3730 = vmatpush1.msra.mxu0 0.0
      %3731 = vmatprep.subr.mxu0 0.0
      %3732 = vmatpush1.msra.mxu0 0.0
      %3733 = vmatprep.subr.mxu0 0.0
      %3734 = vmatpush1.msra.mxu0 0.0
      %3735 = vmatprep.subr.mxu0 0.0
      %3736 = vmatpush1.msra.mxu0 0.0
      %3737 = vmatprep.subr.mxu0 0.0
      %3738 = vmatpush1.msra.mxu0 0.0
      %3739 = vmatprep.subr.mxu0 0.0
      %3740 = vmatpush1.msra.mxu0 0.0
      %3741 = vmatprep.subr.mxu0 0.0
      %3742 = vmatpush1.msra.mxu0 0.0
      %3743 = vmatprep.subr.mxu0 0.0
      %3744 = vmatpush1.msra.mxu0 0.0
      %3745 = vmatprep.subr.mxu0 0.0
      %3746 = vmatpush1.msra.mxu0 0.0
      %3747 = vmatprep.subr.mxu0 0.0
      %3748 = vmatpush1.msra.mxu0 0.0
      %3749 = vmatprep.subr.mxu0 0.0
      %3750 = vmatpush1.msra.mxu0 0.0
      %3751 = vmatprep.subr.mxu0 0.0
      %3752 = vmatpush1.msra.mxu0 0.0
      %3753 = vmatprep.subr.mxu0 0.0
      %3754 = vmatpush1.msra.mxu0 0.0
      %3755 = vmatprep.subr.mxu0 0.0
      %3756 = vmatpush1.msra.mxu0 0.0
      %3757 = vmatprep.subr.mxu0 0.0
      %3758 = vmatpush1.msra.mxu0 0.0
      %3759 = vmatprep.subr.mxu0 0.0
      %3760 = vmatpush1.msra.mxu0 0.0
      %3761 = vmatprep.mubr.f32.mxu0 0.0
      %3762 = vmatmul.mubr.f32.gmra.mrb[0].mxu0 %v3482
      %v3763 = vpop.f32.mrb[0].mxu0
      %v3764 = vadd.f32 0.0, %v3763
      %v3765 = vpop.f32.mrb[0].mxu0
      %v3766 = vadd.f32 0.0, %v3765
      %3767 = vdwg.mxu0
      %3768 = vmatprep.subr.mxu0 0.0
      %3769 = vmatpush1.msra.mxu0 %v3471
      %3770 = vmatprep.subr.mxu0 0.0
      %3771 = vmatpush1.msra.mxu0 0.0
      %3772 = vmatprep.subr.mxu0 0.0
      %3773 = vmatpush1.msra.mxu0 0.0
      %3774 = vmatprep.subr.mxu0 0.0
      %3775 = vmatpush1.msra.mxu0 0.0
      %3776 = vmatprep.subr.mxu0 0.0
      %3777 = vmatpush1.msra.mxu0 0.0
      %3778 = vmatprep.subr.mxu0 0.0
      %3779 = vmatpush1.msra.mxu0 0.0
      %3780 = vmatprep.subr.mxu0 0.0
      %3781 = vmatpush1.msra.mxu0 0.0
      %3782 = vmatprep.subr.mxu0 0.0
      %3783 = vmatpush1.msra.mxu0 0.0
      %3784 = vmatprep.subr.mxu0 0.0
      %3785 = vmatpush1.msra.mxu0 0.0
      %3786 = vmatprep.subr.mxu0 0.0
      %3787 = vmatpush1.msra.mxu0 0.0
      %3788 = vmatprep.subr.mxu0 0.0
      %3789 = vmatpush1.msra.mxu0 0.0
      %3790 = vmatprep.subr.mxu0 0.0
      %3791 = vmatpush1.msra.mxu0 0.0
      %3792 = vmatprep.subr.mxu0 0.0
      %3793 = vmatpush1.msra.mxu0 0.0
      %3794 = vmatprep.subr.mxu0 0.0
      %3795 = vmatpush1.msra.mxu0 0.0
      %3796 = vmatprep.subr.mxu0 0.0
      %3797 = vmatpush1.msra.mxu0 0.0
      %3798 = vmatprep.subr.mxu0 0.0
      %3799 = vmatpush1.msra.mxu0 0.0
      %3800 = vmatprep.subr.mxu0 0.0
      %3801 = vmatpush1.msra.mxu0 0.0
      %3802 = vmatprep.subr.mxu0 0.0
      %3803 = vmatpush1.msra.mxu0 0.0
      %3804 = vmatprep.subr.mxu0 0.0
      %3805 = vmatpush1.msra.mxu0 0.0
      %3806 = vmatprep.subr.mxu0 0.0
      %3807 = vmatpush1.msra.mxu0 0.0
      %3808 = vmatprep.subr.mxu0 0.0
      %3809 = vmatpush1.msra.mxu0 0.0
      %3810 = vmatprep.subr.mxu0 0.0
      %3811 = vmatpush1.msra.mxu0 0.0
      %3812 = vmatprep.subr.mxu0 0.0
      %3813 = vmatpush1.msra.mxu0 0.0
      %3814 = vmatprep.subr.mxu0 0.0
      %3815 = vmatpush1.msra.mxu0 0.0
      %3816 = vmatprep.subr.mxu0 0.0
      %3817 = vmatpush1.msra.mxu0 0.0
      %3818 = vmatprep.subr.mxu0 0.0
      %3819 = vmatpush1.msra.mxu0 0.0
      %3820 = vmatprep.subr.mxu0 0.0
      %3821 = vmatpush1.msra.mxu0 0.0
      %3822 = vmatprep.subr.mxu0 0.0
      %3823 = vmatpush1.msra.mxu0 0.0
      %3824 = vmatprep.subr.mxu0 0.0
      %3825 = vmatpush1.msra.mxu0 0.0
      %3826 = vmatprep.subr.mxu0 0.0
      %3827 = vmatpush1.msra.mxu0 0.0
      %3828 = vmatprep.subr.mxu0 0.0
      %3829 = vmatpush1.msra.mxu0 0.0
      %3830 = vmatprep.subr.mxu0 0.0
      %3831 = vmatpush1.msra.mxu0 0.0
      %3832 = vmatprep.mubr.f32.mxu0 0.0
      %3833 = vmatmul.mubr.f32.gmra.mrb[0].mxu0 %v3482
      %v3834 = vpop.f32.mrb[0].mxu0
      %v3835 = vadd.f32 0.0, %v3834
      %v3836 = vpop.f32.mrb[0].mxu0
      %3837 = vdwg.mxu0
      %v3838 = vadd.f32 %v3431, %v3551
      %v3839 = vadd.f32 %v3432, %v3553
      %v3840 = vadd.f32 %v3433, %v3622
      %v3841 = vadd.f32 %v3434, %v3624
      %v3842 = vadd.f32 %v3435, %v3693
      %v3843 = vadd.f32 %v3436, %v3695
      %v3844 = vadd.f32 %v3437, %v3764
      %v3845 = vadd.f32 %v3438, %v3766
      %v3846 = vadd.f32 %v3439, %v3835
      %v3847 = vld [vmem:[%s2] sm:$0xff]
      %3849 = vset.pattern.permute.xlu0 0
      %3850 = vperm.xlu0 %3849, %v3847
      %v3851 = vpop.permute.xlu0 %3850
      %v3853 = vadd.f32 %v3838, %v3851
      %v3854 = vadd.f32 %v3839, %v3851
      %v3855 = vadd.f32 %v3840, %v3851
      %v3856 = vadd.f32 %v3841, %v3851
      %v3857 = vadd.f32 %v3842, %v3851
      %v3858 = vadd.f32 %v3843, %v3851
      %v3859 = vadd.f32 %v3844, %v3851
      %v3860 = vadd.f32 %v3845, %v3851
      %v3861 = vadd.f32 %v3846, %v3851
      %v3862 = vld [vmem:[%s212] sm:$0xff]
      %v3863 = vld [vmem:[%s212 + $0x8] sm:$0xff]
      %v3864 = vld [vmem:[%s212 + $0x10] sm:$0xff]
      %v3865 = vld [vmem:[%s212 + $0x18] sm:$0xff]
      %v3866 = vld [vmem:[%s212 + $0x20] sm:$0xff]
      %v3867 = vld [vmem:[%s212 + $0x28] sm:$0xff]
      %v3868 = vld [vmem:[%s212 + $0x30] sm:$0xff]
      %v3869 = vld [vmem:[%s212 + $0x38] sm:$0xff]
      %v3870 = vld [vmem:[%s212 + $0x40] sm:$0xff]
      %v3871 = vadd.f32 %v3853, %v3862
      %v3872 = vadd.f32 %v3854, %v3863
      %v3873 = vadd.f32 %v3855, %v3864
      %v3874 = vadd.f32 %v3856, %v3865
      %v3875 = vadd.f32 %v3857, %v3866
      %v3876 = vadd.f32 %v3858, %v3867
      %v3877 = vadd.f32 %v3859, %v3868
      %v3878 = vadd.f32 %v3860, %v3869
      %v3879 = vadd.f32 %v3861, %v3870
      %v3880 = vmax.f32 %v3871, 0.0
      %v3881 = vmax.f32 %v3872, 0.0
      %v3882 = vmax.f32 %v3873, 0.0
      %v3883 = vmax.f32 %v3874, 0.0
      %v3884 = vmax.f32 %v3875, 0.0
      %v3885 = vmax.f32 %v3876, 0.0
      %v3886 = vmax.f32 %v3877, 0.0
      %v3887 = vmax.f32 %v3878, 0.0
      %v3888 = vmax.f32 %v3879, 0.0
      %3889 = vst [vmem:[%s217] sm:$0xff] %v3880
      %3890 = vst [vmem:[%s217 + $0x8] sm:$0xff] %v3881
      %3891 = vst [vmem:[%s217 + $0x10] sm:$0xff] %v3882
      %3892 = vst [vmem:[%s217 + $0x18] sm:$0xff] %v3883
      %3893 = vst [vmem:[%s217 + $0x20] sm:$0xff] %v3884
      %3894 = vst [vmem:[%s217 + $0x28] sm:$0xff] %v3885
      %3895 = vst [vmem:[%s217 + $0x30] sm:$0xff] %v3886
      %3896 = vst [vmem:[%s217 + $0x38] sm:$0xff] %v3887
      %vm3897 = vcmask 523264
      %3898 = vst.msk [vmem:[%s217 + $0x40] sm:$0xff] %vm3897, %v3888
      %p3899 = scmp.lt.s32.totalorder %s15, 1
      %s3900 = scalar_select %p3899, %s15, 1
      %s3901 = smul.addr %s3900, 9
      %s3902 = smul.addr %s3901, 8
      %s3903 = scalar_lea.vmem %s4, %s3902
      // Predicated region
      $region37: #{residual_upsample_block.3} parent=35 // pred_check
        %p3904 = pneg %p127
      $region38: #{residual_upsample_block.3} parent=35 // pred_check_branch
        %3906 = sbr.rel (%p3904) target = $region40
      $region39: #{residual_upsample_block.3} parent=35 // pred_region
        _
      $region40: #{residual_upsample_block.3} parent=35 // pred_fallthru
        _
    $region36: #{residual_upsample_block.3} parent=5 // pred_fallthru
      _
    %p3907 = scmp.le.s32.totalorder 2, %s10
    // Predicated region
    $region41: #{residual_upsample_block.3} parent=5 // pred_check
      %p3908 = pneg %p3907
    $region42: #{residual_upsample_block.3} parent=5 // pred_check_branch
      %3910 = sbr.rel (%p3908) target = $region44
    $region43: #{residual_upsample_block.3} parent=5 // pred_region
      %s3911 = ssub.s32 %s10, 2
      // Predicated region
      $region45: #{residual_upsample_block.3} parent=43 // pred_check
        %p3912 = pneg %p133
      $region46: #{residual_upsample_block.3} parent=43 // pred_check_branch
        %3914 = sbr.rel (%p3912) target = $region48
      $region47: #{residual_upsample_block.3} parent=43 // pred_region
        %p3915 = scmp.lt.s32.totalorder %s16, 1
        %s3916 = scalar_select %p3915, %s16, 1
        %s3917 = smul.addr %s3916, 9
        %s3918 = smul.addr %s3917, 8
        %s3919 = scalar_lea.vmem %s4, %s3918
      $region48: #{residual_upsample_block.3} parent=43 // pred_fallthru
        _
    $region44: #{residual_upsample_block.3} parent=5 // pred_fallthru
      _
  $region6: #{residual_upsample_block.3} parent=0 // loop_footer
    %s14 = sadd.s32 1, %s10
  $region7: #{residual_upsample_block.3} parent=0 // loop_footer_branch
    %9 = sbr.rel target = $region3
  $region8: #{residual_upsample_block.3} parent=0 // loop_exit
    _

</llo_original>
